<compile_context>
chip_gen: v7x
topology: tpu7x:2x2x1
jax: 0.10.0
libtpu: 0.0.40
codegen_flags: <defaults>
</compile_context>

<pallas_src>
import math
import functools

import jax
import jax.numpy as jnp
from jax import lax
from jax.experimental import pallas as pl
from jax.experimental.pallas import tpu as pltpu


def _layernorm(v, w, b, eps=1e-5):
    mu = jnp.mean(v, axis=-1, keepdims=True)
    var = jnp.mean((v - mu) ** 2, axis=-1, keepdims=True)
    return (v - mu) * lax.rsqrt(var + eps) * w + b


def _make_cell_kernel(B, T, D, H, F, L):
    assert D % H == 0
    dh = D // H
    scale = 1.0 / math.sqrt(dh)
    BT = B * T

    def kernel(x_ref,
               wqkv_ref, bqkv_ref, wo_ref, bo_ref,
               ln1w_ref, ln1b_ref,
               w1_ref, b1_ref, w2_ref, b2_ref,
               ln2w_ref, ln2b_ref,
               mlpw_ref, mlpb_ref,
               o_ref):
        x2 = x_ref[...]                                      # (B*T, D) f32, VMEM-resident

        for l in range(L):                                   # static unroll over layers
            # ---- fused QKV projection: one lane-dense MXU matmul (N = 3D) ----------
            qkv = jnp.dot(x2.astype(jnp.bfloat16), wqkv_ref[l],
                          preferred_element_type=jnp.float32) + bqkv_ref[l]  # (BT, 3D)
            q3 = qkv[:, 0 * D:1 * D].reshape(B, T, D)
            k3 = qkv[:, 1 * D:2 * D].reshape(B, T, D)
            v3 = qkv[:, 2 * D:3 * D].reshape(B, T, D)

            # ---- self-attention: batched over samples, static loop over heads ------
            head_outs = []
            for h in range(H):
                qh = q3[:, :, h * dh:(h + 1) * dh].astype(jnp.bfloat16)   # (B, T, dh)
                kh = k3[:, :, h * dh:(h + 1) * dh].astype(jnp.bfloat16)
                vh = v3[:, :, h * dh:(h + 1) * dh].astype(jnp.bfloat16)
                s = jnp.einsum('bqd,bkd->bqk', qh, kh,
                               preferred_element_type=jnp.float32) * scale  # (B, T, T)
                s = s - jnp.max(s, axis=-1, keepdims=True)
                p = jnp.exp(s)
                p = p * pl.reciprocal(jnp.sum(p, axis=-1, keepdims=True), approx=True)
                oh = jnp.einsum('bqk,bkd->bqd', p.astype(jnp.bfloat16), vh,
                                preferred_element_type=jnp.float32)         # (B, T, dh)
                head_outs.append(oh.reshape(BT, dh))
            heads = jnp.concatenate(head_outs, axis=-1)                     # (BT, D)

            # ---- output projection + residual + LayerNorm (post-norm) --------------
            attn_out = jnp.dot(heads.astype(jnp.bfloat16), wo_ref[l],
                               preferred_element_type=jnp.float32) + bo_ref[l]
            y = _layernorm(x2 + attn_out, ln1w_ref[l], ln1b_ref[l])

            # ---- feed-forward -------------------------------------------------------
            f = jnp.dot(y.astype(jnp.bfloat16), w1_ref[l],
                        preferred_element_type=jnp.float32) + b1_ref[l]     # (BT, F)
            f = jax.nn.gelu(f, approximate=True)   # TODO(synk): erf GELU to match torch default
            f = jnp.dot(f.astype(jnp.bfloat16), w2_ref[l],
                        preferred_element_type=jnp.float32) + b2_ref[l]     # (BT, D)
            x2 = _layernorm(y + f, ln2w_ref[l], ln2b_ref[l])

        # ---- Flatten(1) + Dropout(eval) + Linear(T*D, 1) + ReLU ---------------------
        # Out-dim is 1: compute as a VPU multiply + reduce (no 1-lane MXU matmul).
        z3 = x2.reshape(B, T, D)
        prod = z3 * mlpw_ref[...]                       # (T, D) weight broadcast over B
        s1 = jnp.sum(prod, axis=-1)                     # (B, T)   lane reduce
        logit = jnp.sum(s1, axis=-1, keepdims=True) + mlpb_ref[...]   # (B, 1)
        o_ref[...] = jnp.maximum(logit, 0.0).astype(o_ref.dtype)

    return kernel


@functools.partial(jax.jit, static_argnames=("num_heads",))
def cell_model_forward(x, params, *, num_heads):
    """x: (B, T, D) float32. params: dict of stacked per-layer weights."""
    B, T, D = x.shape
    L = params["wqkv"].shape[0]
    F = params["w1"].shape[2]

    kernel = _make_cell_kernel(B, T, D, num_heads, F, L)
    x2 = x.reshape(B * T, D)        # fill the sublane axis; host-side reshape is free

    # Single fused invocation: whole batch + every layer's weights live in VMEM
    # (a few hundred KB here — far under 64 MiB even on v7x).  If B grows, add a
    # batch-block grid axis marked "parallel" to split across v7x's two TensorCores.
    return pl.pallas_call(
        kernel,
        out_shape=jax.ShapeDtypeStruct((B, 1), jnp.float32),
        compiler_params=pltpu.CompilerParams(vmem_limit_bytes=64 * 1024 * 1024),
    )(x2,
      params["wqkv"], params["bqkv"], params["wo"], params["bo"],
      params["ln1w"], params["ln1b"],
      params["w1"], params["b1"], params["w2"], params["b2"],
      params["ln2w"], params["ln2b"],
      params["mlp_w"], params["mlp_b"])


# ----------------------------------------------------------------------------
# deterministic parameter construction (weights stacked over layers)
# ----------------------------------------------------------------------------
def init_params(key, num_transformers, num_tokens, dim_token, num_heads, feed_forward):
    D, F, L, T = dim_token, feed_forward, num_transformers, num_tokens
    wqkv, bqkv, wo, bo = [], [], [], []
    ln1w, ln1b, ln2w, ln2b = [], [], [], []
    w1, b1, w2, b2 = [], [], [], []
    for _ in range(L):
        key, *ks = jax.random.split(key, 7)
        wqkv.append(0.05 * jax.random.normal(ks[0], (D, 3 * D), jnp.float32))
        bqkv.append(jnp.zeros((1, 3 * D), jnp.float32))
        wo.append(0.05 * jax.random.normal(ks[1], (D, D), jnp.float32))
        bo.append(jnp.zeros((1, D), jnp.float32))
        ln1w.append(jnp.ones((1, D), jnp.float32))
        ln1b.append(jnp.zeros((1, D), jnp.float32))
        w1.append(0.05 * jax.random.normal(ks[2], (D, F), jnp.float32))
        b1.append(0.01 * jax.random.normal(ks[3], (1, F), jnp.float32))
        w2.append(0.05 * jax.random.normal(ks[4], (F, D), jnp.float32))
        b2.append(0.01 * jax.random.normal(ks[5], (1, D), jnp.float32))
        ln2w.append(jnp.ones((1, D), jnp.float32))
        ln2b.append(jnp.zeros((1, D), jnp.float32))
    key, k1, k2 = jax.random.split(key, 3)
    # Linear(T*D, 1) weight stored as (T, D): W_flat[t*D + d] == mlp_w[t, d]
    mlp_w = 0.05 * jax.random.normal(k1, (T, D), jnp.float32)
    mlp_b = 0.01 * jax.random.normal(k2, (1, 1), jnp.float32)

    stack_bf16 = lambda xs: jnp.stack(xs).astype(jnp.bfloat16)   # matmul operands
    stack_f32 = lambda xs: jnp.stack(xs)                         # biases / LN params
    return {
        "wqkv": stack_bf16(wqkv), "bqkv": stack_f32(bqkv),
        "wo": stack_bf16(wo), "bo": stack_f32(bo),
        "ln1w": stack_f32(ln1w), "ln1b": stack_f32(ln1b),
        "w1": stack_bf16(w1), "b1": stack_f32(b1),
        "w2": stack_bf16(w2), "b2": stack_f32(b2),
        "ln2w": stack_f32(ln2w), "ln2b": stack_f32(ln2b),
        "mlp_w": mlp_w, "mlp_b": mlp_b,
    }


if __name__ == "__main__":
    # small, shape-consistent config: mlp=1 -> single Linear(num_tokens*dim_token, 1)
    batch = 2
    num_tokens = 8
    dim_token = 32
    num_transformers = 2
    num_heads = 4
    feed_forward = 64

    key = jax.random.PRNGKey(0)
    key, kx = jax.random.split(key)
    x = jax.random.normal(kx, (batch, num_tokens, dim_token), jnp.float32)

    params = init_params(key, num_transformers, num_tokens, dim_token,
                         num_heads, feed_forward)

    out = cell_model_forward(x, params, num_heads=num_heads)
    out = jax.block_until_ready(out)
    assert out.shape == (batch, 1), out.shape
    assert bool(jnp.all(jnp.isfinite(out)))
    print("KERNEL_OK")
</pallas_src>

<mosaic_0001>
module attributes {stable_mosaic.version = 11 : i64} {
  func.func @kernel(%arg0: memref<16x32xf32, #tpu.memory_space<vmem>>, %arg1: memref<2x32x96xbf16, #tpu.memory_space<vmem>>, %arg2: memref<2x1x96xf32, #tpu.memory_space<vmem>>, %arg3: memref<2x32x32xbf16, #tpu.memory_space<vmem>>, %arg4: memref<2x1x32xf32, #tpu.memory_space<vmem>>, %arg5: memref<2x1x32xf32, #tpu.memory_space<vmem>>, %arg6: memref<2x1x32xf32, #tpu.memory_space<vmem>>, %arg7: memref<2x32x64xbf16, #tpu.memory_space<vmem>>, %arg8: memref<2x1x64xf32, #tpu.memory_space<vmem>>, %arg9: memref<2x64x32xbf16, #tpu.memory_space<vmem>>, %arg10: memref<2x1x32xf32, #tpu.memory_space<vmem>>, %arg11: memref<2x1x32xf32, #tpu.memory_space<vmem>>, %arg12: memref<2x1x32xf32, #tpu.memory_space<vmem>>, %arg13: memref<8x32xf32, #tpu.memory_space<vmem>>, %arg14: memref<1x1xf32, #tpu.memory_space<vmem>>, %arg15: memref<2x1xf32, #tpu.memory_space<vmem>>) attributes {dimension_semantics = [], scalar_prefetch = 0 : i64, scratch_operands = 0 : i64, tpu.core_type = #tpu.core_type<tc>} {
    %c0 = arith.constant 0 : index
    %c0_0 = arith.constant 0 : index
    %0 = vector.load %arg0[%c0, %c0_0] : memref<16x32xf32, #tpu.memory_space<vmem>>, vector<16x32xf32>
    %1 = arith.truncf %0 : vector<16x32xf32> to vector<16x32xbf16>
    %c0_1 = arith.constant 0 : index
    %c0_2 = arith.constant 0 : index
    %c0_3 = arith.constant 0 : index
    %2 = vector.load %arg1[%c0_1, %c0_2, %c0_3] : memref<2x32x96xbf16, #tpu.memory_space<vmem>>, vector<1x32x96xbf16>
    %3 = vector.shape_cast %2 : vector<1x32x96xbf16> to vector<32x96xbf16>
    %cst = arith.constant dense<0.000000e+00> : vector<16x96xf32>
    %4 = tpu.matmul %1, %3, %cst {dimension_numbers = #tpu.dot_dimension_numbers<[1], [0], [0], [1], [0, 0, 1, 1], [], []>} : vector<16x32xbf16>, vector<32x96xbf16>, vector<16x96xf32> -> vector<16x96xf32>
    %c0_4 = arith.constant 0 : index
    %c0_5 = arith.constant 0 : index
    %c0_6 = arith.constant 0 : index
    %5 = vector.load %arg2[%c0_4, %c0_5, %c0_6] : memref<2x1x96xf32, #tpu.memory_space<vmem>>, vector<1x1x96xf32>
    %6 = vector.shape_cast %5 : vector<1x1x96xf32> to vector<1x96xf32>
    %7 = vector.broadcast %6 : vector<1x96xf32> to vector<16x96xf32>
    %8 = arith.addf %4, %7 : vector<16x96xf32>
    %9 = vector.extract_strided_slice %8 {offsets = [0, 0], sizes = [16, 32], strides = [1, 1]} : vector<16x96xf32> to vector<16x32xf32>
    %10 = vector.shape_cast %9 : vector<16x32xf32> to vector<2x8x32xf32>
    %11 = vector.extract_strided_slice %8 {offsets = [0, 32], sizes = [16, 32], strides = [1, 1]} : vector<16x96xf32> to vector<16x32xf32>
    %12 = vector.shape_cast %11 : vector<16x32xf32> to vector<2x8x32xf32>
    %13 = vector.extract_strided_slice %8 {offsets = [0, 64], sizes = [16, 32], strides = [1, 1]} : vector<16x96xf32> to vector<16x32xf32>
    %14 = vector.shape_cast %13 : vector<16x32xf32> to vector<2x8x32xf32>
    %15 = vector.extract_strided_slice %10 {offsets = [0, 0, 0], sizes = [2, 8, 8], strides = [1, 1, 1]} : vector<2x8x32xf32> to vector<2x8x8xf32>
    %16 = arith.truncf %15 : vector<2x8x8xf32> to vector<2x8x8xbf16>
    %17 = vector.extract_strided_slice %12 {offsets = [0, 0, 0], sizes = [2, 8, 8], strides = [1, 1, 1]} : vector<2x8x32xf32> to vector<2x8x8xf32>
    %18 = arith.truncf %17 : vector<2x8x8xf32> to vector<2x8x8xbf16>
    %19 = vector.extract_strided_slice %14 {offsets = [0, 0, 0], sizes = [2, 8, 8], strides = [1, 1, 1]} : vector<2x8x32xf32> to vector<2x8x8xf32>
    %20 = arith.truncf %19 : vector<2x8x8xf32> to vector<2x8x8xbf16>
    "tpu.trace_start"() <{level = 10 : i32, message = "bqd,bkd->bqk"}> : () -> ()
    %cst_7 = arith.constant dense<0.000000e+00> : vector<2x8x8xf32>
    %21 = tpu.matmul %16, %18, %cst_7 {dimension_numbers = #tpu.dot_dimension_numbers<[2], [2], [1], [1], [0, 0, 0, 1, 1, 1], [0], [0]>} : vector<2x8x8xbf16>, vector<2x8x8xbf16>, vector<2x8x8xf32> -> vector<2x8x8xf32>
    "tpu.trace_stop"() : () -> ()
    %cst_8 = arith.constant 0.353553385 : f32
    %22 = vector.broadcast %cst_8 : f32 to vector<2x8x8xf32>
    %23 = arith.mulf %21, %22 : vector<2x8x8xf32>
    %cst_9 = arith.constant dense<0xFF800000> : vector<2x8xf32>
    %24 = vector.multi_reduction <maximumf>, %23, %cst_9 [2] : vector<2x8x8xf32> to vector<2x8xf32>
    %25 = vector.shape_cast %24 : vector<2x8xf32> to vector<2x8x1xf32>
    %26 = vector.broadcast %25 : vector<2x8x1xf32> to vector<2x8x8xf32>
    %27 = arith.subf %23, %26 : vector<2x8x8xf32>
    %28 = math.exp %27 : vector<2x8x8xf32>
    %cst_10 = arith.constant dense<0.000000e+00> : vector<2x8xf32>
    %29 = vector.multi_reduction <add>, %28, %cst_10 [2] : vector<2x8x8xf32> to vector<2x8xf32>
    %30 = vector.shape_cast %29 : vector<2x8xf32> to vector<2x8x1xf32>
    %31 = tpu.reciprocal %30 {approx = true} : vector<2x8x1xf32> -> vector<2x8x1xf32>
    %32 = vector.broadcast %31 : vector<2x8x1xf32> to vector<2x8x8xf32>
    %33 = arith.mulf %28, %32 : vector<2x8x8xf32>
    %34 = arith.truncf %33 : vector<2x8x8xf32> to vector<2x8x8xbf16>
    "tpu.trace_start"() <{level = 10 : i32, message = "bqk,bkd->bqd"}> : () -> ()
    %cst_11 = arith.constant dense<0.000000e+00> : vector<2x8x8xf32>
    %35 = tpu.matmul %34, %20, %cst_11 {dimension_numbers = #tpu.dot_dimension_numbers<[2], [1], [1], [2], [0, 0, 0, 1, 1, 2], [0], [0]>} : vector<2x8x8xbf16>, vector<2x8x8xbf16>, vector<2x8x8xf32> -> vector<2x8x8xf32>
    "tpu.trace_stop"() : () -> ()
    %36 = vector.shape_cast %35 : vector<2x8x8xf32> to vector<16x8xf32>
    %37 = vector.extract_strided_slice %10 {offsets = [0, 0, 8], sizes = [2, 8, 8], strides = [1, 1, 1]} : vector<2x8x32xf32> to vector<2x8x8xf32>
    %38 = arith.truncf %37 : vector<2x8x8xf32> to vector<2x8x8xbf16>
    %39 = vector.extract_strided_slice %12 {offsets = [0, 0, 8], sizes = [2, 8, 8], strides = [1, 1, 1]} : vector<2x8x32xf32> to vector<2x8x8xf32>
    %40 = arith.truncf %39 : vector<2x8x8xf32> to vector<2x8x8xbf16>
    %41 = vector.extract_strided_slice %14 {offsets = [0, 0, 8], sizes = [2, 8, 8], strides = [1, 1, 1]} : vector<2x8x32xf32> to vector<2x8x8xf32>
    %42 = arith.truncf %41 : vector<2x8x8xf32> to vector<2x8x8xbf16>
    "tpu.trace_start"() <{level = 10 : i32, message = "bqd,bkd->bqk"}> : () -> ()
    %cst_12 = arith.constant dense<0.000000e+00> : vector<2x8x8xf32>
    %43 = tpu.matmul %38, %40, %cst_12 {dimension_numbers = #tpu.dot_dimension_numbers<[2], [2], [1], [1], [0, 0, 0, 1, 1, 1], [0], [0]>} : vector<2x8x8xbf16>, vector<2x8x8xbf16>, vector<2x8x8xf32> -> vector<2x8x8xf32>
    "tpu.trace_stop"() : () -> ()
    %cst_13 = arith.constant 0.353553385 : f32
    %44 = vector.broadcast %cst_13 : f32 to vector<2x8x8xf32>
    %45 = arith.mulf %43, %44 : vector<2x8x8xf32>
    %cst_14 = arith.constant dense<0xFF800000> : vector<2x8xf32>
    %46 = vector.multi_reduction <maximumf>, %45, %cst_14 [2] : vector<2x8x8xf32> to vector<2x8xf32>
    %47 = vector.shape_cast %46 : vector<2x8xf32> to vector<2x8x1xf32>
    %48 = vector.broadcast %47 : vector<2x8x1xf32> to vector<2x8x8xf32>
    %49 = arith.subf %45, %48 : vector<2x8x8xf32>
    %50 = math.exp %49 : vector<2x8x8xf32>
    %cst_15 = arith.constant dense<0.000000e+00> : vector<2x8xf32>
    %51 = vector.multi_reduction <add>, %50, %cst_15 [2] : vector<2x8x8xf32> to vector<2x8xf32>
    %52 = vector.shape_cast %51 : vector<2x8xf32> to vector<2x8x1xf32>
    %53 = tpu.reciprocal %52 {approx = true} : vector<2x8x1xf32> -> vector<2x8x1xf32>
    %54 = vector.broadcast %53 : vector<2x8x1xf32> to vector<2x8x8xf32>
    %55 = arith.mulf %50, %54 : vector<2x8x8xf32>
    %56 = arith.truncf %55 : vector<2x8x8xf32> to vector<2x8x8xbf16>
    "tpu.trace_start"() <{level = 10 : i32, message = "bqk,bkd->bqd"}> : () -> ()
    %cst_16 = arith.constant dense<0.000000e+00> : vector<2x8x8xf32>
    %57 = tpu.matmul %56, %42, %cst_16 {dimension_numbers = #tpu.dot_dimension_numbers<[2], [1], [1], [2], [0, 0, 0, 1, 1, 2], [0], [0]>} : vector<2x8x8xbf16>, vector<2x8x8xbf16>, vector<2x8x8xf32> -> vector<2x8x8xf32>
    "tpu.trace_stop"() : () -> ()
    %58 = vector.shape_cast %57 : vector<2x8x8xf32> to vector<16x8xf32>
    %59 = vector.extract_strided_slice %10 {offsets = [0, 0, 16], sizes = [2, 8, 8], strides = [1, 1, 1]} : vector<2x8x32xf32> to vector<2x8x8xf32>
    %60 = arith.truncf %59 : vector<2x8x8xf32> to vector<2x8x8xbf16>
    %61 = vector.extract_strided_slice %12 {offsets = [0, 0, 16], sizes = [2, 8, 8], strides = [1, 1, 1]} : vector<2x8x32xf32> to vector<2x8x8xf32>
    %62 = arith.truncf %61 : vector<2x8x8xf32> to vector<2x8x8xbf16>
    %63 = vector.extract_strided_slice %14 {offsets = [0, 0, 16], sizes = [2, 8, 8], strides = [1, 1, 1]} : vector<2x8x32xf32> to vector<2x8x8xf32>
    %64 = arith.truncf %63 : vector<2x8x8xf32> to vector<2x8x8xbf16>
    "tpu.trace_start"() <{level = 10 : i32, message = "bqd,bkd->bqk"}> : () -> ()
    %cst_17 = arith.constant dense<0.000000e+00> : vector<2x8x8xf32>
    %65 = tpu.matmul %60, %62, %cst_17 {dimension_numbers = #tpu.dot_dimension_numbers<[2], [2], [1], [1], [0, 0, 0, 1, 1, 1], [0], [0]>} : vector<2x8x8xbf16>, vector<2x8x8xbf16>, vector<2x8x8xf32> -> vector<2x8x8xf32>
    "tpu.trace_stop"() : () -> ()
    %cst_18 = arith.constant 0.353553385 : f32
    %66 = vector.broadcast %cst_18 : f32 to vector<2x8x8xf32>
    %67 = arith.mulf %65, %66 : vector<2x8x8xf32>
    %cst_19 = arith.constant dense<0xFF800000> : vector<2x8xf32>
    %68 = vector.multi_reduction <maximumf>, %67, %cst_19 [2] : vector<2x8x8xf32> to vector<2x8xf32>
    %69 = vector.shape_cast %68 : vector<2x8xf32> to vector<2x8x1xf32>
    %70 = vector.broadcast %69 : vector<2x8x1xf32> to vector<2x8x8xf32>
    %71 = arith.subf %67, %70 : vector<2x8x8xf32>
    %72 = math.exp %71 : vector<2x8x8xf32>
    %cst_20 = arith.constant dense<0.000000e+00> : vector<2x8xf32>
    %73 = vector.multi_reduction <add>, %72, %cst_20 [2] : vector<2x8x8xf32> to vector<2x8xf32>
    %74 = vector.shape_cast %73 : vector<2x8xf32> to vector<2x8x1xf32>
    %75 = tpu.reciprocal %74 {approx = true} : vector<2x8x1xf32> -> vector<2x8x1xf32>
    %76 = vector.broadcast %75 : vector<2x8x1xf32> to vector<2x8x8xf32>
    %77 = arith.mulf %72, %76 : vector<2x8x8xf32>
    %78 = arith.truncf %77 : vector<2x8x8xf32> to vector<2x8x8xbf16>
    "tpu.trace_start"() <{level = 10 : i32, message = "bqk,bkd->bqd"}> : () -> ()
    %cst_21 = arith.constant dense<0.000000e+00> : vector<2x8x8xf32>
    %79 = tpu.matmul %78, %64, %cst_21 {dimension_numbers = #tpu.dot_dimension_numbers<[2], [1], [1], [2], [0, 0, 0, 1, 1, 2], [0], [0]>} : vector<2x8x8xbf16>, vector<2x8x8xbf16>, vector<2x8x8xf32> -> vector<2x8x8xf32>
    "tpu.trace_stop"() : () -> ()
    %80 = vector.shape_cast %79 : vector<2x8x8xf32> to vector<16x8xf32>
    %81 = vector.extract_strided_slice %10 {offsets = [0, 0, 24], sizes = [2, 8, 8], strides = [1, 1, 1]} : vector<2x8x32xf32> to vector<2x8x8xf32>
    %82 = arith.truncf %81 : vector<2x8x8xf32> to vector<2x8x8xbf16>
    %83 = vector.extract_strided_slice %12 {offsets = [0, 0, 24], sizes = [2, 8, 8], strides = [1, 1, 1]} : vector<2x8x32xf32> to vector<2x8x8xf32>
    %84 = arith.truncf %83 : vector<2x8x8xf32> to vector<2x8x8xbf16>
    %85 = vector.extract_strided_slice %14 {offsets = [0, 0, 24], sizes = [2, 8, 8], strides = [1, 1, 1]} : vector<2x8x32xf32> to vector<2x8x8xf32>
    %86 = arith.truncf %85 : vector<2x8x8xf32> to vector<2x8x8xbf16>
    "tpu.trace_start"() <{level = 10 : i32, message = "bqd,bkd->bqk"}> : () -> ()
    %cst_22 = arith.constant dense<0.000000e+00> : vector<2x8x8xf32>
    %87 = tpu.matmul %82, %84, %cst_22 {dimension_numbers = #tpu.dot_dimension_numbers<[2], [2], [1], [1], [0, 0, 0, 1, 1, 1], [0], [0]>} : vector<2x8x8xbf16>, vector<2x8x8xbf16>, vector<2x8x8xf32> -> vector<2x8x8xf32>
    "tpu.trace_stop"() : () -> ()
    %cst_23 = arith.constant 0.353553385 : f32
    %88 = vector.broadcast %cst_23 : f32 to vector<2x8x8xf32>
    %89 = arith.mulf %87, %88 : vector<2x8x8xf32>
    %cst_24 = arith.constant dense<0xFF800000> : vector<2x8xf32>
    %90 = vector.multi_reduction <maximumf>, %89, %cst_24 [2] : vector<2x8x8xf32> to vector<2x8xf32>
    %91 = vector.shape_cast %90 : vector<2x8xf32> to vector<2x8x1xf32>
    %92 = vector.broadcast %91 : vector<2x8x1xf32> to vector<2x8x8xf32>
    %93 = arith.subf %89, %92 : vector<2x8x8xf32>
    %94 = math.exp %93 : vector<2x8x8xf32>
    %cst_25 = arith.constant dense<0.000000e+00> : vector<2x8xf32>
    %95 = vector.multi_reduction <add>, %94, %cst_25 [2] : vector<2x8x8xf32> to vector<2x8xf32>
    %96 = vector.shape_cast %95 : vector<2x8xf32> to vector<2x8x1xf32>
    %97 = tpu.reciprocal %96 {approx = true} : vector<2x8x1xf32> -> vector<2x8x1xf32>
    %98 = vector.broadcast %97 : vector<2x8x1xf32> to vector<2x8x8xf32>
    %99 = arith.mulf %94, %98 : vector<2x8x8xf32>
    %100 = arith.truncf %99 : vector<2x8x8xf32> to vector<2x8x8xbf16>
    "tpu.trace_start"() <{level = 10 : i32, message = "bqk,bkd->bqd"}> : () -> ()
    %cst_26 = arith.constant dense<0.000000e+00> : vector<2x8x8xf32>
    %101 = tpu.matmul %100, %86, %cst_26 {dimension_numbers = #tpu.dot_dimension_numbers<[2], [1], [1], [2], [0, 0, 0, 1, 1, 2], [0], [0]>} : vector<2x8x8xbf16>, vector<2x8x8xbf16>, vector<2x8x8xf32> -> vector<2x8x8xf32>
    "tpu.trace_stop"() : () -> ()
    %102 = vector.shape_cast %101 : vector<2x8x8xf32> to vector<16x8xf32>
    %103 = tpu.concatenate %36, %58, %80, %102 in 1 : vector<16x8xf32>, vector<16x8xf32>, vector<16x8xf32>, vector<16x8xf32> -> vector<16x32xf32>
    %104 = arith.truncf %103 : vector<16x32xf32> to vector<16x32xbf16>
    %c0_27 = arith.constant 0 : index
    %c0_28 = arith.constant 0 : index
    %c0_29 = arith.constant 0 : index
    %105 = vector.load %arg3[%c0_27, %c0_28, %c0_29] : memref<2x32x32xbf16, #tpu.memory_space<vmem>>, vector<1x32x32xbf16>
    %106 = vector.shape_cast %105 : vector<1x32x32xbf16> to vector<32x32xbf16>
    %cst_30 = arith.constant dense<0.000000e+00> : vector<16x32xf32>
    %107 = tpu.matmul %104, %106, %cst_30 {dimension_numbers = #tpu.dot_dimension_numbers<[1], [0], [0], [1], [0, 0, 1, 1], [], []>} : vector<16x32xbf16>, vector<32x32xbf16>, vector<16x32xf32> -> vector<16x32xf32>
    %c0_31 = arith.constant 0 : index
    %c0_32 = arith.constant 0 : index
    %c0_33 = arith.constant 0 : index
    %108 = vector.load %arg4[%c0_31, %c0_32, %c0_33] : memref<2x1x32xf32, #tpu.memory_space<vmem>>, vector<1x1x32xf32>
    %109 = vector.shape_cast %108 : vector<1x1x32xf32> to vector<1x32xf32>
    %110 = vector.broadcast %109 : vector<1x32xf32> to vector<16x32xf32>
    %111 = arith.addf %107, %110 : vector<16x32xf32>
    %112 = arith.addf %0, %111 : vector<16x32xf32>
    %c0_34 = arith.constant 0 : index
    %c0_35 = arith.constant 0 : index
    %c0_36 = arith.constant 0 : index
    %113 = vector.load %arg5[%c0_34, %c0_35, %c0_36] : memref<2x1x32xf32, #tpu.memory_space<vmem>>, vector<1x1x32xf32>
    %114 = vector.shape_cast %113 : vector<1x1x32xf32> to vector<1x32xf32>
    %c0_37 = arith.constant 0 : index
    %c0_38 = arith.constant 0 : index
    %c0_39 = arith.constant 0 : index
    %115 = vector.load %arg6[%c0_37, %c0_38, %c0_39] : memref<2x1x32xf32, #tpu.memory_space<vmem>>, vector<1x1x32xf32>
    %116 = vector.shape_cast %115 : vector<1x1x32xf32> to vector<1x32xf32>
    %cst_40 = arith.constant dense<0.000000e+00> : vector<16xf32>
    %117 = vector.multi_reduction <add>, %112, %cst_40 [1] : vector<16x32xf32> to vector<16xf32>
    %118 = vector.shape_cast %117 : vector<16xf32> to vector<16x1xf32>
    %cst_41 = arith.constant 3.200000e+01 : f32
    %119 = vector.broadcast %cst_41 : f32 to vector<16x1xf32>
    %120 = arith.divf %118, %119 : vector<16x1xf32>
    %121 = vector.broadcast %120 : vector<16x1xf32> to vector<16x32xf32>
    %122 = arith.subf %112, %121 : vector<16x32xf32>
    %123 = arith.mulf %122, %122 : vector<16x32xf32>
    %cst_42 = arith.constant dense<0.000000e+00> : vector<16xf32>
    %124 = vector.multi_reduction <add>, %123, %cst_42 [1] : vector<16x32xf32> to vector<16xf32>
    %125 = vector.shape_cast %124 : vector<16xf32> to vector<16x1xf32>
    %cst_43 = arith.constant 3.200000e+01 : f32
    %126 = vector.broadcast %cst_43 : f32 to vector<16x1xf32>
    %127 = arith.divf %125, %126 : vector<16x1xf32>
    %128 = vector.broadcast %120 : vector<16x1xf32> to vector<16x32xf32>
    %129 = arith.subf %112, %128 : vector<16x32xf32>
    %cst_44 = arith.constant 9.99999974E-6 : f32
    %130 = vector.broadcast %cst_44 : f32 to vector<16x1xf32>
    %131 = arith.addf %127, %130 : vector<16x1xf32>
    %132 = math.rsqrt %131 : vector<16x1xf32>
    %133 = vector.broadcast %132 : vector<16x1xf32> to vector<16x32xf32>
    %134 = arith.mulf %129, %133 : vector<16x32xf32>
    %135 = vector.broadcast %114 : vector<1x32xf32> to vector<16x32xf32>
    %136 = arith.mulf %134, %135 : vector<16x32xf32>
    %137 = vector.broadcast %116 : vector<1x32xf32> to vector<16x32xf32>
    %138 = arith.addf %136, %137 : vector<16x32xf32>
    %139 = arith.truncf %138 : vector<16x32xf32> to vector<16x32xbf16>
    %c0_45 = arith.constant 0 : index
    %c0_46 = arith.constant 0 : index
    %c0_47 = arith.constant 0 : index
    %140 = vector.load %arg7[%c0_45, %c0_46, %c0_47] : memref<2x32x64xbf16, #tpu.memory_space<vmem>>, vector<1x32x64xbf16>
    %141 = vector.shape_cast %140 : vector<1x32x64xbf16> to vector<32x64xbf16>
    %cst_48 = arith.constant dense<0.000000e+00> : vector<16x64xf32>
    %142 = tpu.matmul %139, %141, %cst_48 {dimension_numbers = #tpu.dot_dimension_numbers<[1], [0], [0], [1], [0, 0, 1, 1], [], []>} : vector<16x32xbf16>, vector<32x64xbf16>, vector<16x64xf32> -> vector<16x64xf32>
    %c0_49 = arith.constant 0 : index
    %c0_50 = arith.constant 0 : index
    %c0_51 = arith.constant 0 : index
    %143 = vector.load %arg8[%c0_49, %c0_50, %c0_51] : memref<2x1x64xf32, #tpu.memory_space<vmem>>, vector<1x1x64xf32>
    %144 = vector.shape_cast %143 : vector<1x1x64xf32> to vector<1x64xf32>
    %145 = vector.broadcast %144 : vector<1x64xf32> to vector<16x64xf32>
    %146 = arith.addf %142, %145 : vector<16x64xf32>
    %147 = arith.mulf %146, %146 : vector<16x64xf32>
    %148 = arith.mulf %146, %147 : vector<16x64xf32>
    %cst_52 = arith.constant 4.471500e-02 : f32
    %149 = vector.broadcast %cst_52 : f32 to vector<16x64xf32>
    %150 = arith.mulf %149, %148 : vector<16x64xf32>
    %151 = arith.addf %146, %150 : vector<16x64xf32>
    %cst_53 = arith.constant 0.797884583 : f32
    %152 = vector.broadcast %cst_53 : f32 to vector<16x64xf32>
    %153 = arith.mulf %152, %151 : vector<16x64xf32>
    %154 = math.tanh %153 : vector<16x64xf32>
    %cst_54 = arith.constant 1.000000e+00 : f32
    %155 = vector.broadcast %cst_54 : f32 to vector<16x64xf32>
    %156 = arith.addf %155, %154 : vector<16x64xf32>
    %cst_55 = arith.constant 5.000000e-01 : f32
    %157 = vector.broadcast %cst_55 : f32 to vector<16x64xf32>
    %158 = arith.mulf %157, %156 : vector<16x64xf32>
    %159 = arith.mulf %146, %158 : vector<16x64xf32>
    %160 = arith.truncf %159 : vector<16x64xf32> to vector<16x64xbf16>
    %c0_56 = arith.constant 0 : index
    %c0_57 = arith.constant 0 : index
    %c0_58 = arith.constant 0 : index
    %161 = vector.load %arg9[%c0_56, %c0_57, %c0_58] : memref<2x64x32xbf16, #tpu.memory_space<vmem>>, vector<1x64x32xbf16>
    %162 = vector.shape_cast %161 : vector<1x64x32xbf16> to vector<64x32xbf16>
    %cst_59 = arith.constant dense<0.000000e+00> : vector<16x32xf32>
    %163 = tpu.matmul %160, %162, %cst_59 {dimension_numbers = #tpu.dot_dimension_numbers<[1], [0], [0], [1], [0, 0, 1, 1], [], []>} : vector<16x64xbf16>, vector<64x32xbf16>, vector<16x32xf32> -> vector<16x32xf32>
    %c0_60 = arith.constant 0 : index
    %c0_61 = arith.constant 0 : index
    %c0_62 = arith.constant 0 : index
    %164 = vector.load %arg10[%c0_60, %c0_61, %c0_62] : memref<2x1x32xf32, #tpu.memory_space<vmem>>, vector<1x1x32xf32>
    %165 = vector.shape_cast %164 : vector<1x1x32xf32> to vector<1x32xf32>
    %166 = vector.broadcast %165 : vector<1x32xf32> to vector<16x32xf32>
    %167 = arith.addf %163, %166 : vector<16x32xf32>
    %168 = arith.addf %138, %167 : vector<16x32xf32>
    %c0_63 = arith.constant 0 : index
    %c0_64 = arith.constant 0 : index
    %c0_65 = arith.constant 0 : index
    %169 = vector.load %arg11[%c0_63, %c0_64, %c0_65] : memref<2x1x32xf32, #tpu.memory_space<vmem>>, vector<1x1x32xf32>
    %170 = vector.shape_cast %169 : vector<1x1x32xf32> to vector<1x32xf32>
    %c0_66 = arith.constant 0 : index
    %c0_67 = arith.constant 0 : index
    %c0_68 = arith.constant 0 : index
    %171 = vector.load %arg12[%c0_66, %c0_67, %c0_68] : memref<2x1x32xf32, #tpu.memory_space<vmem>>, vector<1x1x32xf32>
    %172 = vector.shape_cast %171 : vector<1x1x32xf32> to vector<1x32xf32>
    %cst_69 = arith.constant dense<0.000000e+00> : vector<16xf32>
    %173 = vector.multi_reduction <add>, %168, %cst_69 [1] : vector<16x32xf32> to vector<16xf32>
    %174 = vector.shape_cast %173 : vector<16xf32> to vector<16x1xf32>
    %cst_70 = arith.constant 3.200000e+01 : f32
    %175 = vector.broadcast %cst_70 : f32 to vector<16x1xf32>
    %176 = arith.divf %174, %175 : vector<16x1xf32>
    %177 = vector.broadcast %176 : vector<16x1xf32> to vector<16x32xf32>
    %178 = arith.subf %168, %177 : vector<16x32xf32>
    %179 = arith.mulf %178, %178 : vector<16x32xf32>
    %cst_71 = arith.constant dense<0.000000e+00> : vector<16xf32>
    %180 = vector.multi_reduction <add>, %179, %cst_71 [1] : vector<16x32xf32> to vector<16xf32>
    %181 = vector.shape_cast %180 : vector<16xf32> to vector<16x1xf32>
    %cst_72 = arith.constant 3.200000e+01 : f32
    %182 = vector.broadcast %cst_72 : f32 to vector<16x1xf32>
    %183 = arith.divf %181, %182 : vector<16x1xf32>
    %184 = vector.broadcast %176 : vector<16x1xf32> to vector<16x32xf32>
    %185 = arith.subf %168, %184 : vector<16x32xf32>
    %cst_73 = arith.constant 9.99999974E-6 : f32
    %186 = vector.broadcast %cst_73 : f32 to vector<16x1xf32>
    %187 = arith.addf %183, %186 : vector<16x1xf32>
    %188 = math.rsqrt %187 : vector<16x1xf32>
    %189 = vector.broadcast %188 : vector<16x1xf32> to vector<16x32xf32>
    %190 = arith.mulf %185, %189 : vector<16x32xf32>
    %191 = vector.broadcast %170 : vector<1x32xf32> to vector<16x32xf32>
    %192 = arith.mulf %190, %191 : vector<16x32xf32>
    %193 = vector.broadcast %172 : vector<1x32xf32> to vector<16x32xf32>
    %194 = arith.addf %192, %193 : vector<16x32xf32>
    %195 = arith.truncf %194 : vector<16x32xf32> to vector<16x32xbf16>
    %c1 = arith.constant 1 : index
    %c0_74 = arith.constant 0 : index
    %c0_75 = arith.constant 0 : index
    %196 = vector.load %arg1[%c1, %c0_74, %c0_75] : memref<2x32x96xbf16, #tpu.memory_space<vmem>>, vector<1x32x96xbf16>
    %197 = vector.shape_cast %196 : vector<1x32x96xbf16> to vector<32x96xbf16>
    %cst_76 = arith.constant dense<0.000000e+00> : vector<16x96xf32>
    %198 = tpu.matmul %195, %197, %cst_76 {dimension_numbers = #tpu.dot_dimension_numbers<[1], [0], [0], [1], [0, 0, 1, 1], [], []>} : vector<16x32xbf16>, vector<32x96xbf16>, vector<16x96xf32> -> vector<16x96xf32>
    %c1_77 = arith.constant 1 : index
    %c0_78 = arith.constant 0 : index
    %c0_79 = arith.constant 0 : index
    %199 = vector.load %arg2[%c1_77, %c0_78, %c0_79] : memref<2x1x96xf32, #tpu.memory_space<vmem>>, vector<1x1x96xf32>
    %200 = vector.shape_cast %199 : vector<1x1x96xf32> to vector<1x96xf32>
    %201 = vector.broadcast %200 : vector<1x96xf32> to vector<16x96xf32>
    %202 = arith.addf %198, %201 : vector<16x96xf32>
    %203 = vector.extract_strided_slice %202 {offsets = [0, 0], sizes = [16, 32], strides = [1, 1]} : vector<16x96xf32> to vector<16x32xf32>
    %204 = vector.shape_cast %203 : vector<16x32xf32> to vector<2x8x32xf32>
    %205 = vector.extract_strided_slice %202 {offsets = [0, 32], sizes = [16, 32], strides = [1, 1]} : vector<16x96xf32> to vector<16x32xf32>
    %206 = vector.shape_cast %205 : vector<16x32xf32> to vector<2x8x32xf32>
    %207 = vector.extract_strided_slice %202 {offsets = [0, 64], sizes = [16, 32], strides = [1, 1]} : vector<16x96xf32> to vector<16x32xf32>
    %208 = vector.shape_cast %207 : vector<16x32xf32> to vector<2x8x32xf32>
    %209 = vector.extract_strided_slice %204 {offsets = [0, 0, 0], sizes = [2, 8, 8], strides = [1, 1, 1]} : vector<2x8x32xf32> to vector<2x8x8xf32>
    %210 = arith.truncf %209 : vector<2x8x8xf32> to vector<2x8x8xbf16>
    %211 = vector.extract_strided_slice %206 {offsets = [0, 0, 0], sizes = [2, 8, 8], strides = [1, 1, 1]} : vector<2x8x32xf32> to vector<2x8x8xf32>
    %212 = arith.truncf %211 : vector<2x8x8xf32> to vector<2x8x8xbf16>
    %213 = vector.extract_strided_slice %208 {offsets = [0, 0, 0], sizes = [2, 8, 8], strides = [1, 1, 1]} : vector<2x8x32xf32> to vector<2x8x8xf32>
    %214 = arith.truncf %213 : vector<2x8x8xf32> to vector<2x8x8xbf16>
    "tpu.trace_start"() <{level = 10 : i32, message = "bqd,bkd->bqk"}> : () -> ()
    %cst_80 = arith.constant dense<0.000000e+00> : vector<2x8x8xf32>
    %215 = tpu.matmul %210, %212, %cst_80 {dimension_numbers = #tpu.dot_dimension_numbers<[2], [2], [1], [1], [0, 0, 0, 1, 1, 1], [0], [0]>} : vector<2x8x8xbf16>, vector<2x8x8xbf16>, vector<2x8x8xf32> -> vector<2x8x8xf32>
    "tpu.trace_stop"() : () -> ()
    %cst_81 = arith.constant 0.353553385 : f32
    %216 = vector.broadcast %cst_81 : f32 to vector<2x8x8xf32>
    %217 = arith.mulf %215, %216 : vector<2x8x8xf32>
    %cst_82 = arith.constant dense<0xFF800000> : vector<2x8xf32>
    %218 = vector.multi_reduction <maximumf>, %217, %cst_82 [2] : vector<2x8x8xf32> to vector<2x8xf32>
    %219 = vector.shape_cast %218 : vector<2x8xf32> to vector<2x8x1xf32>
    %220 = vector.broadcast %219 : vector<2x8x1xf32> to vector<2x8x8xf32>
    %221 = arith.subf %217, %220 : vector<2x8x8xf32>
    %222 = math.exp %221 : vector<2x8x8xf32>
    %cst_83 = arith.constant dense<0.000000e+00> : vector<2x8xf32>
    %223 = vector.multi_reduction <add>, %222, %cst_83 [2] : vector<2x8x8xf32> to vector<2x8xf32>
    %224 = vector.shape_cast %223 : vector<2x8xf32> to vector<2x8x1xf32>
    %225 = tpu.reciprocal %224 {approx = true} : vector<2x8x1xf32> -> vector<2x8x1xf32>
    %226 = vector.broadcast %225 : vector<2x8x1xf32> to vector<2x8x8xf32>
    %227 = arith.mulf %222, %226 : vector<2x8x8xf32>
    %228 = arith.truncf %227 : vector<2x8x8xf32> to vector<2x8x8xbf16>
    "tpu.trace_start"() <{level = 10 : i32, message = "bqk,bkd->bqd"}> : () -> ()
    %cst_84 = arith.constant dense<0.000000e+00> : vector<2x8x8xf32>
    %229 = tpu.matmul %228, %214, %cst_84 {dimension_numbers = #tpu.dot_dimension_numbers<[2], [1], [1], [2], [0, 0, 0, 1, 1, 2], [0], [0]>} : vector<2x8x8xbf16>, vector<2x8x8xbf16>, vector<2x8x8xf32> -> vector<2x8x8xf32>
    "tpu.trace_stop"() : () -> ()
    %230 = vector.shape_cast %229 : vector<2x8x8xf32> to vector<16x8xf32>
    %231 = vector.extract_strided_slice %204 {offsets = [0, 0, 8], sizes = [2, 8, 8], strides = [1, 1, 1]} : vector<2x8x32xf32> to vector<2x8x8xf32>
    %232 = arith.truncf %231 : vector<2x8x8xf32> to vector<2x8x8xbf16>
    %233 = vector.extract_strided_slice %206 {offsets = [0, 0, 8], sizes = [2, 8, 8], strides = [1, 1, 1]} : vector<2x8x32xf32> to vector<2x8x8xf32>
    %234 = arith.truncf %233 : vector<2x8x8xf32> to vector<2x8x8xbf16>
    %235 = vector.extract_strided_slice %208 {offsets = [0, 0, 8], sizes = [2, 8, 8], strides = [1, 1, 1]} : vector<2x8x32xf32> to vector<2x8x8xf32>
    %236 = arith.truncf %235 : vector<2x8x8xf32> to vector<2x8x8xbf16>
    "tpu.trace_start"() <{level = 10 : i32, message = "bqd,bkd->bqk"}> : () -> ()
    %cst_85 = arith.constant dense<0.000000e+00> : vector<2x8x8xf32>
    %237 = tpu.matmul %232, %234, %cst_85 {dimension_numbers = #tpu.dot_dimension_numbers<[2], [2], [1], [1], [0, 0, 0, 1, 1, 1], [0], [0]>} : vector<2x8x8xbf16>, vector<2x8x8xbf16>, vector<2x8x8xf32> -> vector<2x8x8xf32>
    "tpu.trace_stop"() : () -> ()
    %cst_86 = arith.constant 0.353553385 : f32
    %238 = vector.broadcast %cst_86 : f32 to vector<2x8x8xf32>
    %239 = arith.mulf %237, %238 : vector<2x8x8xf32>
    %cst_87 = arith.constant dense<0xFF800000> : vector<2x8xf32>
    %240 = vector.multi_reduction <maximumf>, %239, %cst_87 [2] : vector<2x8x8xf32> to vector<2x8xf32>
    %241 = vector.shape_cast %240 : vector<2x8xf32> to vector<2x8x1xf32>
    %242 = vector.broadcast %241 : vector<2x8x1xf32> to vector<2x8x8xf32>
    %243 = arith.subf %239, %242 : vector<2x8x8xf32>
    %244 = math.exp %243 : vector<2x8x8xf32>
    %cst_88 = arith.constant dense<0.000000e+00> : vector<2x8xf32>
    %245 = vector.multi_reduction <add>, %244, %cst_88 [2] : vector<2x8x8xf32> to vector<2x8xf32>
    %246 = vector.shape_cast %245 : vector<2x8xf32> to vector<2x8x1xf32>
    %247 = tpu.reciprocal %246 {approx = true} : vector<2x8x1xf32> -> vector<2x8x1xf32>
    %248 = vector.broadcast %247 : vector<2x8x1xf32> to vector<2x8x8xf32>
    %249 = arith.mulf %244, %248 : vector<2x8x8xf32>
    %250 = arith.truncf %249 : vector<2x8x8xf32> to vector<2x8x8xbf16>
    "tpu.trace_start"() <{level = 10 : i32, message = "bqk,bkd->bqd"}> : () -> ()
    %cst_89 = arith.constant dense<0.000000e+00> : vector<2x8x8xf32>
    %251 = tpu.matmul %250, %236, %cst_89 {dimension_numbers = #tpu.dot_dimension_numbers<[2], [1], [1], [2], [0, 0, 0, 1, 1, 2], [0], [0]>} : vector<2x8x8xbf16>, vector<2x8x8xbf16>, vector<2x8x8xf32> -> vector<2x8x8xf32>
    "tpu.trace_stop"() : () -> ()
    %252 = vector.shape_cast %251 : vector<2x8x8xf32> to vector<16x8xf32>
    %253 = vector.extract_strided_slice %204 {offsets = [0, 0, 16], sizes = [2, 8, 8], strides = [1, 1, 1]} : vector<2x8x32xf32> to vector<2x8x8xf32>
    %254 = arith.truncf %253 : vector<2x8x8xf32> to vector<2x8x8xbf16>
    %255 = vector.extract_strided_slice %206 {offsets = [0, 0, 16], sizes = [2, 8, 8], strides = [1, 1, 1]} : vector<2x8x32xf32> to vector<2x8x8xf32>
    %256 = arith.truncf %255 : vector<2x8x8xf32> to vector<2x8x8xbf16>
    %257 = vector.extract_strided_slice %208 {offsets = [0, 0, 16], sizes = [2, 8, 8], strides = [1, 1, 1]} : vector<2x8x32xf32> to vector<2x8x8xf32>
    %258 = arith.truncf %257 : vector<2x8x8xf32> to vector<2x8x8xbf16>
    "tpu.trace_start"() <{level = 10 : i32, message = "bqd,bkd->bqk"}> : () -> ()
    %cst_90 = arith.constant dense<0.000000e+00> : vector<2x8x8xf32>
    %259 = tpu.matmul %254, %256, %cst_90 {dimension_numbers = #tpu.dot_dimension_numbers<[2], [2], [1], [1], [0, 0, 0, 1, 1, 1], [0], [0]>} : vector<2x8x8xbf16>, vector<2x8x8xbf16>, vector<2x8x8xf32> -> vector<2x8x8xf32>
    "tpu.trace_stop"() : () -> ()
    %cst_91 = arith.constant 0.353553385 : f32
    %260 = vector.broadcast %cst_91 : f32 to vector<2x8x8xf32>
    %261 = arith.mulf %259, %260 : vector<2x8x8xf32>
    %cst_92 = arith.constant dense<0xFF800000> : vector<2x8xf32>
    %262 = vector.multi_reduction <maximumf>, %261, %cst_92 [2] : vector<2x8x8xf32> to vector<2x8xf32>
    %263 = vector.shape_cast %262 : vector<2x8xf32> to vector<2x8x1xf32>
    %264 = vector.broadcast %263 : vector<2x8x1xf32> to vector<2x8x8xf32>
    %265 = arith.subf %261, %264 : vector<2x8x8xf32>
    %266 = math.exp %265 : vector<2x8x8xf32>
    %cst_93 = arith.constant dense<0.000000e+00> : vector<2x8xf32>
    %267 = vector.multi_reduction <add>, %266, %cst_93 [2] : vector<2x8x8xf32> to vector<2x8xf32>
    %268 = vector.shape_cast %267 : vector<2x8xf32> to vector<2x8x1xf32>
    %269 = tpu.reciprocal %268 {approx = true} : vector<2x8x1xf32> -> vector<2x8x1xf32>
    %270 = vector.broadcast %269 : vector<2x8x1xf32> to vector<2x8x8xf32>
    %271 = arith.mulf %266, %270 : vector<2x8x8xf32>
    %272 = arith.truncf %271 : vector<2x8x8xf32> to vector<2x8x8xbf16>
    "tpu.trace_start"() <{level = 10 : i32, message = "bqk,bkd->bqd"}> : () -> ()
    %cst_94 = arith.constant dense<0.000000e+00> : vector<2x8x8xf32>
    %273 = tpu.matmul %272, %258, %cst_94 {dimension_numbers = #tpu.dot_dimension_numbers<[2], [1], [1], [2], [0, 0, 0, 1, 1, 2], [0], [0]>} : vector<2x8x8xbf16>, vector<2x8x8xbf16>, vector<2x8x8xf32> -> vector<2x8x8xf32>
    "tpu.trace_stop"() : () -> ()
    %274 = vector.shape_cast %273 : vector<2x8x8xf32> to vector<16x8xf32>
    %275 = vector.extract_strided_slice %204 {offsets = [0, 0, 24], sizes = [2, 8, 8], strides = [1, 1, 1]} : vector<2x8x32xf32> to vector<2x8x8xf32>
    %276 = arith.truncf %275 : vector<2x8x8xf32> to vector<2x8x8xbf16>
    %277 = vector.extract_strided_slice %206 {offsets = [0, 0, 24], sizes = [2, 8, 8], strides = [1, 1, 1]} : vector<2x8x32xf32> to vector<2x8x8xf32>
    %278 = arith.truncf %277 : vector<2x8x8xf32> to vector<2x8x8xbf16>
    %279 = vector.extract_strided_slice %208 {offsets = [0, 0, 24], sizes = [2, 8, 8], strides = [1, 1, 1]} : vector<2x8x32xf32> to vector<2x8x8xf32>
    %280 = arith.truncf %279 : vector<2x8x8xf32> to vector<2x8x8xbf16>
    "tpu.trace_start"() <{level = 10 : i32, message = "bqd,bkd->bqk"}> : () -> ()
    %cst_95 = arith.constant dense<0.000000e+00> : vector<2x8x8xf32>
    %281 = tpu.matmul %276, %278, %cst_95 {dimension_numbers = #tpu.dot_dimension_numbers<[2], [2], [1], [1], [0, 0, 0, 1, 1, 1], [0], [0]>} : vector<2x8x8xbf16>, vector<2x8x8xbf16>, vector<2x8x8xf32> -> vector<2x8x8xf32>
    "tpu.trace_stop"() : () -> ()
    %cst_96 = arith.constant 0.353553385 : f32
    %282 = vector.broadcast %cst_96 : f32 to vector<2x8x8xf32>
    %283 = arith.mulf %281, %282 : vector<2x8x8xf32>
    %cst_97 = arith.constant dense<0xFF800000> : vector<2x8xf32>
    %284 = vector.multi_reduction <maximumf>, %283, %cst_97 [2] : vector<2x8x8xf32> to vector<2x8xf32>
    %285 = vector.shape_cast %284 : vector<2x8xf32> to vector<2x8x1xf32>
    %286 = vector.broadcast %285 : vector<2x8x1xf32> to vector<2x8x8xf32>
    %287 = arith.subf %283, %286 : vector<2x8x8xf32>
    %288 = math.exp %287 : vector<2x8x8xf32>
    %cst_98 = arith.constant dense<0.000000e+00> : vector<2x8xf32>
    %289 = vector.multi_reduction <add>, %288, %cst_98 [2] : vector<2x8x8xf32> to vector<2x8xf32>
    %290 = vector.shape_cast %289 : vector<2x8xf32> to vector<2x8x1xf32>
    %291 = tpu.reciprocal %290 {approx = true} : vector<2x8x1xf32> -> vector<2x8x1xf32>
    %292 = vector.broadcast %291 : vector<2x8x1xf32> to vector<2x8x8xf32>
    %293 = arith.mulf %288, %292 : vector<2x8x8xf32>
    %294 = arith.truncf %293 : vector<2x8x8xf32> to vector<2x8x8xbf16>
    "tpu.trace_start"() <{level = 10 : i32, message = "bqk,bkd->bqd"}> : () -> ()
    %cst_99 = arith.constant dense<0.000000e+00> : vector<2x8x8xf32>
    %295 = tpu.matmul %294, %280, %cst_99 {dimension_numbers = #tpu.dot_dimension_numbers<[2], [1], [1], [2], [0, 0, 0, 1, 1, 2], [0], [0]>} : vector<2x8x8xbf16>, vector<2x8x8xbf16>, vector<2x8x8xf32> -> vector<2x8x8xf32>
    "tpu.trace_stop"() : () -> ()
    %296 = vector.shape_cast %295 : vector<2x8x8xf32> to vector<16x8xf32>
    %297 = tpu.concatenate %230, %252, %274, %296 in 1 : vector<16x8xf32>, vector<16x8xf32>, vector<16x8xf32>, vector<16x8xf32> -> vector<16x32xf32>
    %298 = arith.truncf %297 : vector<16x32xf32> to vector<16x32xbf16>
    %c1_100 = arith.constant 1 : index
    %c0_101 = arith.constant 0 : index
    %c0_102 = arith.constant 0 : index
    %299 = vector.load %arg3[%c1_100, %c0_101, %c0_102] : memref<2x32x32xbf16, #tpu.memory_space<vmem>>, vector<1x32x32xbf16>
    %300 = vector.shape_cast %299 : vector<1x32x32xbf16> to vector<32x32xbf16>
    %cst_103 = arith.constant dense<0.000000e+00> : vector<16x32xf32>
    %301 = tpu.matmul %298, %300, %cst_103 {dimension_numbers = #tpu.dot_dimension_numbers<[1], [0], [0], [1], [0, 0, 1, 1], [], []>} : vector<16x32xbf16>, vector<32x32xbf16>, vector<16x32xf32> -> vector<16x32xf32>
    %c1_104 = arith.constant 1 : index
    %c0_105 = arith.constant 0 : index
    %c0_106 = arith.constant 0 : index
    %302 = vector.load %arg4[%c1_104, %c0_105, %c0_106] : memref<2x1x32xf32, #tpu.memory_space<vmem>>, vector<1x1x32xf32>
    %303 = vector.shape_cast %302 : vector<1x1x32xf32> to vector<1x32xf32>
    %304 = vector.broadcast %303 : vector<1x32xf32> to vector<16x32xf32>
    %305 = arith.addf %301, %304 : vector<16x32xf32>
    %306 = arith.addf %194, %305 : vector<16x32xf32>
    %c1_107 = arith.constant 1 : index
    %c0_108 = arith.constant 0 : index
    %c0_109 = arith.constant 0 : index
    %307 = vector.load %arg5[%c1_107, %c0_108, %c0_109] : memref<2x1x32xf32, #tpu.memory_space<vmem>>, vector<1x1x32xf32>
    %308 = vector.shape_cast %307 : vector<1x1x32xf32> to vector<1x32xf32>
    %c1_110 = arith.constant 1 : index
    %c0_111 = arith.constant 0 : index
    %c0_112 = arith.constant 0 : index
    %309 = vector.load %arg6[%c1_110, %c0_111, %c0_112] : memref<2x1x32xf32, #tpu.memory_space<vmem>>, vector<1x1x32xf32>
    %310 = vector.shape_cast %309 : vector<1x1x32xf32> to vector<1x32xf32>
    %cst_113 = arith.constant dense<0.000000e+00> : vector<16xf32>
    %311 = vector.multi_reduction <add>, %306, %cst_113 [1] : vector<16x32xf32> to vector<16xf32>
    %312 = vector.shape_cast %311 : vector<16xf32> to vector<16x1xf32>
    %cst_114 = arith.constant 3.200000e+01 : f32
    %313 = vector.broadcast %cst_114 : f32 to vector<16x1xf32>
    %314 = arith.divf %312, %313 : vector<16x1xf32>
    %315 = vector.broadcast %314 : vector<16x1xf32> to vector<16x32xf32>
    %316 = arith.subf %306, %315 : vector<16x32xf32>
    %317 = arith.mulf %316, %316 : vector<16x32xf32>
    %cst_115 = arith.constant dense<0.000000e+00> : vector<16xf32>
    %318 = vector.multi_reduction <add>, %317, %cst_115 [1] : vector<16x32xf32> to vector<16xf32>
    %319 = vector.shape_cast %318 : vector<16xf32> to vector<16x1xf32>
    %cst_116 = arith.constant 3.200000e+01 : f32
    %320 = vector.broadcast %cst_116 : f32 to vector<16x1xf32>
    %321 = arith.divf %319, %320 : vector<16x1xf32>
    %322 = vector.broadcast %314 : vector<16x1xf32> to vector<16x32xf32>
    %323 = arith.subf %306, %322 : vector<16x32xf32>
    %cst_117 = arith.constant 9.99999974E-6 : f32
    %324 = vector.broadcast %cst_117 : f32 to vector<16x1xf32>
    %325 = arith.addf %321, %324 : vector<16x1xf32>
    %326 = math.rsqrt %325 : vector<16x1xf32>
    %327 = vector.broadcast %326 : vector<16x1xf32> to vector<16x32xf32>
    %328 = arith.mulf %323, %327 : vector<16x32xf32>
    %329 = vector.broadcast %308 : vector<1x32xf32> to vector<16x32xf32>
    %330 = arith.mulf %328, %329 : vector<16x32xf32>
    %331 = vector.broadcast %310 : vector<1x32xf32> to vector<16x32xf32>
    %332 = arith.addf %330, %331 : vector<16x32xf32>
    %333 = arith.truncf %332 : vector<16x32xf32> to vector<16x32xbf16>
    %c1_118 = arith.constant 1 : index
    %c0_119 = arith.constant 0 : index
    %c0_120 = arith.constant 0 : index
    %334 = vector.load %arg7[%c1_118, %c0_119, %c0_120] : memref<2x32x64xbf16, #tpu.memory_space<vmem>>, vector<1x32x64xbf16>
    %335 = vector.shape_cast %334 : vector<1x32x64xbf16> to vector<32x64xbf16>
    %cst_121 = arith.constant dense<0.000000e+00> : vector<16x64xf32>
    %336 = tpu.matmul %333, %335, %cst_121 {dimension_numbers = #tpu.dot_dimension_numbers<[1], [0], [0], [1], [0, 0, 1, 1], [], []>} : vector<16x32xbf16>, vector<32x64xbf16>, vector<16x64xf32> -> vector<16x64xf32>
    %c1_122 = arith.constant 1 : index
    %c0_123 = arith.constant 0 : index
    %c0_124 = arith.constant 0 : index
    %337 = vector.load %arg8[%c1_122, %c0_123, %c0_124] : memref<2x1x64xf32, #tpu.memory_space<vmem>>, vector<1x1x64xf32>
    %338 = vector.shape_cast %337 : vector<1x1x64xf32> to vector<1x64xf32>
    %339 = vector.broadcast %338 : vector<1x64xf32> to vector<16x64xf32>
    %340 = arith.addf %336, %339 : vector<16x64xf32>
    %341 = arith.mulf %340, %340 : vector<16x64xf32>
    %342 = arith.mulf %340, %341 : vector<16x64xf32>
    %cst_125 = arith.constant 4.471500e-02 : f32
    %343 = vector.broadcast %cst_125 : f32 to vector<16x64xf32>
    %344 = arith.mulf %343, %342 : vector<16x64xf32>
    %345 = arith.addf %340, %344 : vector<16x64xf32>
    %cst_126 = arith.constant 0.797884583 : f32
    %346 = vector.broadcast %cst_126 : f32 to vector<16x64xf32>
    %347 = arith.mulf %346, %345 : vector<16x64xf32>
    %348 = math.tanh %347 : vector<16x64xf32>
    %cst_127 = arith.constant 1.000000e+00 : f32
    %349 = vector.broadcast %cst_127 : f32 to vector<16x64xf32>
    %350 = arith.addf %349, %348 : vector<16x64xf32>
    %cst_128 = arith.constant 5.000000e-01 : f32
    %351 = vector.broadcast %cst_128 : f32 to vector<16x64xf32>
    %352 = arith.mulf %351, %350 : vector<16x64xf32>
    %353 = arith.mulf %340, %352 : vector<16x64xf32>
    %354 = arith.truncf %353 : vector<16x64xf32> to vector<16x64xbf16>
    %c1_129 = arith.constant 1 : index
    %c0_130 = arith.constant 0 : index
    %c0_131 = arith.constant 0 : index
    %355 = vector.load %arg9[%c1_129, %c0_130, %c0_131] : memref<2x64x32xbf16, #tpu.memory_space<vmem>>, vector<1x64x32xbf16>
    %356 = vector.shape_cast %355 : vector<1x64x32xbf16> to vector<64x32xbf16>
    %cst_132 = arith.constant dense<0.000000e+00> : vector<16x32xf32>
    %357 = tpu.matmul %354, %356, %cst_132 {dimension_numbers = #tpu.dot_dimension_numbers<[1], [0], [0], [1], [0, 0, 1, 1], [], []>} : vector<16x64xbf16>, vector<64x32xbf16>, vector<16x32xf32> -> vector<16x32xf32>
    %c1_133 = arith.constant 1 : index
    %c0_134 = arith.constant 0 : index
    %c0_135 = arith.constant 0 : index
    %358 = vector.load %arg10[%c1_133, %c0_134, %c0_135] : memref<2x1x32xf32, #tpu.memory_space<vmem>>, vector<1x1x32xf32>
    %359 = vector.shape_cast %358 : vector<1x1x32xf32> to vector<1x32xf32>
    %360 = vector.broadcast %359 : vector<1x32xf32> to vector<16x32xf32>
    %361 = arith.addf %357, %360 : vector<16x32xf32>
    %362 = arith.addf %332, %361 : vector<16x32xf32>
    %c1_136 = arith.constant 1 : index
    %c0_137 = arith.constant 0 : index
    %c0_138 = arith.constant 0 : index
    %363 = vector.load %arg11[%c1_136, %c0_137, %c0_138] : memref<2x1x32xf32, #tpu.memory_space<vmem>>, vector<1x1x32xf32>
    %364 = vector.shape_cast %363 : vector<1x1x32xf32> to vector<1x32xf32>
    %c1_139 = arith.constant 1 : index
    %c0_140 = arith.constant 0 : index
    %c0_141 = arith.constant 0 : index
    %365 = vector.load %arg12[%c1_139, %c0_140, %c0_141] : memref<2x1x32xf32, #tpu.memory_space<vmem>>, vector<1x1x32xf32>
    %366 = vector.shape_cast %365 : vector<1x1x32xf32> to vector<1x32xf32>
    %cst_142 = arith.constant dense<0.000000e+00> : vector<16xf32>
    %367 = vector.multi_reduction <add>, %362, %cst_142 [1] : vector<16x32xf32> to vector<16xf32>
    %368 = vector.shape_cast %367 : vector<16xf32> to vector<16x1xf32>
    %cst_143 = arith.constant 3.200000e+01 : f32
    %369 = vector.broadcast %cst_143 : f32 to vector<16x1xf32>
    %370 = arith.divf %368, %369 : vector<16x1xf32>
    %371 = vector.broadcast %370 : vector<16x1xf32> to vector<16x32xf32>
    %372 = arith.subf %362, %371 : vector<16x32xf32>
    %373 = arith.mulf %372, %372 : vector<16x32xf32>
    %cst_144 = arith.constant dense<0.000000e+00> : vector<16xf32>
    %374 = vector.multi_reduction <add>, %373, %cst_144 [1] : vector<16x32xf32> to vector<16xf32>
    %375 = vector.shape_cast %374 : vector<16xf32> to vector<16x1xf32>
    %cst_145 = arith.constant 3.200000e+01 : f32
    %376 = vector.broadcast %cst_145 : f32 to vector<16x1xf32>
    %377 = arith.divf %375, %376 : vector<16x1xf32>
    %378 = vector.broadcast %370 : vector<16x1xf32> to vector<16x32xf32>
    %379 = arith.subf %362, %378 : vector<16x32xf32>
    %cst_146 = arith.constant 9.99999974E-6 : f32
    %380 = vector.broadcast %cst_146 : f32 to vector<16x1xf32>
    %381 = arith.addf %377, %380 : vector<16x1xf32>
    %382 = math.rsqrt %381 : vector<16x1xf32>
    %383 = vector.broadcast %382 : vector<16x1xf32> to vector<16x32xf32>
    %384 = arith.mulf %379, %383 : vector<16x32xf32>
    %385 = vector.broadcast %364 : vector<1x32xf32> to vector<16x32xf32>
    %386 = arith.mulf %384, %385 : vector<16x32xf32>
    %387 = vector.broadcast %366 : vector<1x32xf32> to vector<16x32xf32>
    %388 = arith.addf %386, %387 : vector<16x32xf32>
    %389 = vector.shape_cast %388 : vector<16x32xf32> to vector<2x8x32xf32>
    %c0_147 = arith.constant 0 : index
    %c0_148 = arith.constant 0 : index
    %390 = vector.load %arg13[%c0_147, %c0_148] : memref<8x32xf32, #tpu.memory_space<vmem>>, vector<8x32xf32>
    %391 = vector.shape_cast %390 : vector<8x32xf32> to vector<1x8x32xf32>
    %392 = vector.broadcast %391 : vector<1x8x32xf32> to vector<2x8x32xf32>
    %393 = arith.mulf %389, %392 : vector<2x8x32xf32>
    %cst_149 = arith.constant dense<0.000000e+00> : vector<2x8xf32>
    %394 = vector.multi_reduction <add>, %393, %cst_149 [2] : vector<2x8x32xf32> to vector<2x8xf32>
    %cst_150 = arith.constant dense<0.000000e+00> : vector<2xf32>
    %395 = vector.multi_reduction <add>, %394, %cst_150 [1] : vector<2x8xf32> to vector<2xf32>
    %396 = vector.shape_cast %395 : vector<2xf32> to vector<2x1xf32>
    %c0_151 = arith.constant 0 : index
    %c0_152 = arith.constant 0 : index
    %397 = vector.load %arg14[%c0_151, %c0_152] : memref<1x1xf32, #tpu.memory_space<vmem>>, vector<1x1xf32>
    %398 = vector.broadcast %397 : vector<1x1xf32> to vector<2x1xf32>
    %399 = arith.addf %396, %398 : vector<2x1xf32>
    %cst_153 = arith.constant 0.000000e+00 : f32
    %400 = vector.broadcast %cst_153 : f32 to vector<2x1xf32>
    %401 = arith.maximumf %399, %400 : vector<2x1xf32>
    %c0_154 = arith.constant 0 : index
    %c0_155 = arith.constant 0 : index
    %402 = vector.load %arg15[%c0_154, %c0_155] : memref<2x1xf32, #tpu.memory_space<vmem>>, vector<2x1xf32>
    tpu.vector_store %arg15[%c0_154, %c0_155], %401 {strides = array<i32>} : memref<2x1xf32, #tpu.memory_space<vmem>>, vector<2x1xf32>,
    return
  }
}

</mosaic_0001>

<llo_original>
// kernel: cell_model_forward.1
$region0: #{cell_model_forward.1}
  #allocation0 [shape = 'u32[]', space=smem, size = 0x4, offset = 0x4, fixed_abs, tag = 'smem constant byte address 0x4 - core index']
  #allocation1 [shape = 'u32[144,128]{1,0:T(1,128)}', space=vmem, size = 0x12000, scoped, tag = 'internal scratch']
  #allocation2 [shape = 'f32[1,1]{1,0:T(1,128)S(1)}', space=vmem, size = 0x200, scoped, tag = 'scoped memory for cell_model_forward.1']
  %s0 = inlined_call_operand.hbm [shape: f32[16,32], index: 0, kind: input, shape index: {}]
  %s1 = inlined_call_operand.hbm [shape: bf16[2,32,96], index: 1, kind: input, shape index: {}]
  %s2 = inlined_call_operand.hbm [shape: f32[2,1,96], index: 2, kind: input, shape index: {}]
  %s3 = inlined_call_operand.hbm [shape: bf16[2,32,32], index: 3, kind: input, shape index: {}]
  %s4 = inlined_call_operand.hbm [shape: f32[2,1,32], index: 4, kind: input, shape index: {}]
  %s5 = inlined_call_operand.hbm [shape: f32[2,1,32], index: 5, kind: input, shape index: {}]
  %s6 = inlined_call_operand.hbm [shape: f32[2,1,32], index: 6, kind: input, shape index: {}]
  %s7 = inlined_call_operand.hbm [shape: bf16[2,32,64], index: 7, kind: input, shape index: {}]
  %s8 = inlined_call_operand.hbm [shape: f32[2,1,64], index: 8, kind: input, shape index: {}]
  %s9 = inlined_call_operand.hbm [shape: bf16[2,64,32], index: 9, kind: input, shape index: {}]
  %s10 = inlined_call_operand.hbm [shape: f32[2,1,32], index: 10, kind: input, shape index: {}]
  %s11 = inlined_call_operand.hbm [shape: f32[2,1,32], index: 11, kind: input, shape index: {}]
  %s12 = inlined_call_operand.hbm [shape: f32[2,1,32], index: 12, kind: input, shape index: {}]
  %s13 = inlined_call_operand.hbm [shape: f32[8,32], index: 13, kind: input, shape index: {}]
  %s14 = inlined_call_operand.<no memory space> [shape: f32[1,1], index: 14, kind: input, shape index: {}]
  %s15 = inlined_call_operand.hbm [shape: f32[2,1], index: 15, kind: output, shape index: {}]
  %s16 = sld [smem:[#allocation0]]
  $region126: #{cell_model_forward.1} parent=0
    _
  %s18 = ssub.s32 1, %s16
  %s19 = scalar_select 0, %s18, %s16
  %v20 = vstv %s14
  %21 = vst [vmem:[#allocation2] sm:$0x1] %v20
  $region1: #{cell_model_forward.1} parent=0
    #allocation3 [shape = 'u8[8192]{0}', space=vmem, size = 0x2000, scoped, tag = 'input window, operand 0, single buffered']
    #allocation4 [shape = 's32[1]{0}', space=sflag, size = 0x4, scoped, tag = 'scoped memory for cell_model_forward.1']
    #allocation5 [shape = 's32[1]{0}', space=sflag, size = 0x4, scoped, tag = 'scoped memory for cell_model_forward.1']
    #allocation6 [shape = 'u8[16384]{0}', space=vmem, size = 0x4000, scoped, tag = 'input window, operand 1, single buffered']
    #allocation7 [shape = 's32[1]{0}', space=sflag, size = 0x4, scoped, tag = 'scoped memory for cell_model_forward.1']
    #allocation8 [shape = 'u8[1024]{0}', space=vmem, size = 0x400, scoped, tag = 'input window, operand 2, single buffered']
    #allocation9 [shape = 'u8[16384]{0}', space=vmem, size = 0x4000, scoped, tag = 'input window, operand 3, single buffered']
    #allocation10 [shape = 's32[1]{0}', space=sflag, size = 0x4, scoped, tag = 'scoped memory for cell_model_forward.1']
    #allocation11 [shape = 'u8[1024]{0}', space=vmem, size = 0x400, scoped, tag = 'input window, operand 4, single buffered']
    #allocation12 [shape = 'u8[1024]{0}', space=vmem, size = 0x400, scoped, tag = 'input window, operand 5, single buffered']
    #allocation13 [shape = 's32[1]{0}', space=sflag, size = 0x4, scoped, tag = 'scoped memory for cell_model_forward.1']
    #allocation14 [shape = 'u8[1024]{0}', space=vmem, size = 0x400, scoped, tag = 'input window, operand 6, single buffered']
    #allocation15 [shape = 'u8[16384]{0}', space=vmem, size = 0x4000, scoped, tag = 'input window, operand 7, single buffered']
    #allocation16 [shape = 's32[1]{0}', space=sflag, size = 0x4, scoped, tag = 'scoped memory for cell_model_forward.1']
    #allocation17 [shape = 'u8[1024]{0}', space=vmem, size = 0x400, scoped, tag = 'input window, operand 8, single buffered']
    #allocation18 [shape = 'u8[32768]{0}', space=vmem, size = 0x8000, scoped, tag = 'input window, operand 9, single buffered']
    #allocation19 [shape = 's32[1]{0}', space=sflag, size = 0x4, scoped, tag = 'scoped memory for cell_model_forward.1']
    #allocation20 [shape = 'u8[1024]{0}', space=vmem, size = 0x400, scoped, tag = 'input window, operand 10, single buffered']
    #allocation21 [shape = 'u8[1024]{0}', space=vmem, size = 0x400, scoped, tag = 'input window, operand 11, single buffered']
    #allocation22 [shape = 's32[1]{0}', space=sflag, size = 0x4, scoped, tag = 'scoped memory for cell_model_forward.1']
    #allocation23 [shape = 'u8[1024]{0}', space=vmem, size = 0x400, scoped, tag = 'input window, operand 12, single buffered']
    #allocation24 [shape = 'u8[4096]{0}', space=vmem, size = 0x1000, scoped, tag = 'input window, operand 13, single buffered']
    #allocation25 [shape = 's32[1]{0}', space=sflag, size = 0x4, scoped, tag = 'scoped memory for cell_model_forward.1']
    #allocation26 [shape = 'u8[1024]{0}', space=vmem, size = 0x400, scoped, tag = 'output window, operand 0, single buffered']
    %22 = vsyncpa [#allocation4], 0
    %23 = vsyncpa [#allocation7], 0
    %24 = vsyncpa [#allocation10], 0
    %25 = vsyncpa [#allocation13], 0
    %26 = vsyncpa [#allocation16], 0
    %27 = vsyncpa [#allocation19], 0
    %28 = vsyncpa [#allocation22], 0
    %29 = vsyncpa [#allocation25], 0
    %30 = vsyncpa [#allocation5], 0
    // Predicated region
    $region2: #{cell_model_forward.1} parent=1 // pred_check
      _
    $region3: #{cell_model_forward.1} parent=1 // pred_check_branch
      %32 = sbr.rel (0) target = $region5
    $region4: #{cell_model_forward.1} parent=1 // pred_region
      %s34 = ssub.s32 256, 256
      %35 = vsyncadd [#allocation4], %s34
      %s36 = sshll.u32 [#allocation3], 4
      %s37 = int_to_ptr.vmem [resolvable:$true] %s36
      %42 = dma.hbm_to_vmem [thread:$0]  %s0, 256, %s37, [#allocation4], 128, 128, 8
    $region5: #{cell_model_forward.1} parent=1 // pred_fallthru
      _
    // Predicated region
    $region6: #{cell_model_forward.1} parent=1 // pred_check
      _
    $region7: #{cell_model_forward.1} parent=1 // pred_check_branch
      %44 = sbr.rel (0) target = $region9
    $region8: #{cell_model_forward.1} parent=1 // pred_region
      %s46 = ssub.s32 512, 512
      %47 = vsyncadd [#allocation7], %s46
      %s48 = sshll.u32 [#allocation6], 4
      %s49 = int_to_ptr.vmem [resolvable:$true] %s48
      %54 = dma.hbm_to_vmem [thread:$0]  %s1, 512, %s49, [#allocation7], 64, 64, 4
    $region9: #{cell_model_forward.1} parent=1 // pred_fallthru
      _
    // Predicated region
    $region10: #{cell_model_forward.1} parent=1 // pred_check
      _
    $region11: #{cell_model_forward.1} parent=1 // pred_check_branch
      %56 = sbr.rel (0) target = $region13
    $region12: #{cell_model_forward.1} parent=1 // pred_region
      %s58 = ssub.s32 32, 32
      %59 = vsyncadd [#allocation7], %s58
      %s60 = sshll.u32 [#allocation8], 4
      %s61 = int_to_ptr.vmem [resolvable:$true] %s60
      %66 = dma.hbm_to_vmem [thread:$0]  %s2, 32, %s61, [#allocation7], 16, 16, 1
    $region13: #{cell_model_forward.1} parent=1 // pred_fallthru
      _
    // Predicated region
    $region14: #{cell_model_forward.1} parent=1 // pred_check
      _
    $region15: #{cell_model_forward.1} parent=1 // pred_check_branch
      %68 = sbr.rel (0) target = $region17
    $region16: #{cell_model_forward.1} parent=1 // pred_region
      %s70 = ssub.s32 512, 512
      %71 = vsyncadd [#allocation10], %s70
      %s72 = sshll.u32 [#allocation9], 4
      %s73 = int_to_ptr.vmem [resolvable:$true] %s72
      %78 = dma.hbm_to_vmem [thread:$0]  %s3, 512, %s73, [#allocation10], 64, 64, 4
    $region17: #{cell_model_forward.1} parent=1 // pred_fallthru
      _
    // Predicated region
    $region18: #{cell_model_forward.1} parent=1 // pred_check
      _
    $region19: #{cell_model_forward.1} parent=1 // pred_check_branch
      %80 = sbr.rel (0) target = $region21
    $region20: #{cell_model_forward.1} parent=1 // pred_region
      %s82 = ssub.s32 32, 32
      %83 = vsyncadd [#allocation10], %s82
      %s84 = sshll.u32 [#allocation11], 4
      %s85 = int_to_ptr.vmem [resolvable:$true] %s84
      %90 = dma.hbm_to_vmem [thread:$0]  %s4, 32, %s85, [#allocation10], 16, 16, 1
    $region21: #{cell_model_forward.1} parent=1 // pred_fallthru
      _
    // Predicated region
    $region22: #{cell_model_forward.1} parent=1 // pred_check
      _
    $region23: #{cell_model_forward.1} parent=1 // pred_check_branch
      %92 = sbr.rel (0) target = $region25
    $region24: #{cell_model_forward.1} parent=1 // pred_region
      %s94 = ssub.s32 32, 32
      %95 = vsyncadd [#allocation13], %s94
      %s96 = sshll.u32 [#allocation12], 4
      %s97 = int_to_ptr.vmem [resolvable:$true] %s96
      %102 = dma.hbm_to_vmem [thread:$0]  %s5, 32, %s97, [#allocation13], 16, 16, 1
    $region25: #{cell_model_forward.1} parent=1 // pred_fallthru
      _
    // Predicated region
    $region26: #{cell_model_forward.1} parent=1 // pred_check
      _
    $region27: #{cell_model_forward.1} parent=1 // pred_check_branch
      %104 = sbr.rel (0) target = $region29
    $region28: #{cell_model_forward.1} parent=1 // pred_region
      %s106 = ssub.s32 32, 32
      %107 = vsyncadd [#allocation13], %s106
      %s108 = sshll.u32 [#allocation14], 4
      %s109 = int_to_ptr.vmem [resolvable:$true] %s108
      %114 = dma.hbm_to_vmem [thread:$0]  %s6, 32, %s109, [#allocation13], 16, 16, 1
    $region29: #{cell_model_forward.1} parent=1 // pred_fallthru
      _
    // Predicated region
    $region30: #{cell_model_forward.1} parent=1 // pred_check
      _
    $region31: #{cell_model_forward.1} parent=1 // pred_check_branch
      %116 = sbr.rel (0) target = $region33
    $region32: #{cell_model_forward.1} parent=1 // pred_region
      %s118 = ssub.s32 512, 512
      %119 = vsyncadd [#allocation16], %s118
      %s120 = sshll.u32 [#allocation15], 4
      %s121 = int_to_ptr.vmem [resolvable:$true] %s120
      %126 = dma.hbm_to_vmem [thread:$0]  %s7, 512, %s121, [#allocation16], 64, 64, 4
    $region33: #{cell_model_forward.1} parent=1 // pred_fallthru
      _
    // Predicated region
    $region34: #{cell_model_forward.1} parent=1 // pred_check
      _
    $region35: #{cell_model_forward.1} parent=1 // pred_check_branch
      %128 = sbr.rel (0) target = $region37
    $region36: #{cell_model_forward.1} parent=1 // pred_region
      %s130 = ssub.s32 32, 32
      %131 = vsyncadd [#allocation16], %s130
      %s132 = sshll.u32 [#allocation17], 4
      %s133 = int_to_ptr.vmem [resolvable:$true] %s132
      %138 = dma.hbm_to_vmem [thread:$0]  %s8, 32, %s133, [#allocation16], 16, 16, 1
    $region37: #{cell_model_forward.1} parent=1 // pred_fallthru
      _
    // Predicated region
    $region38: #{cell_model_forward.1} parent=1 // pred_check
      _
    $region39: #{cell_model_forward.1} parent=1 // pred_check_branch
      %140 = sbr.rel (0) target = $region41
    $region40: #{cell_model_forward.1} parent=1 // pred_region
      %s142 = ssub.s32 1024, 1024
      %143 = vsyncadd [#allocation19], %s142
      %s144 = sshll.u32 [#allocation18], 4
      %s145 = int_to_ptr.vmem [resolvable:$true] %s144
      %150 = dma.hbm_to_vmem [thread:$0]  %s9, 1024, %s145, [#allocation19], 64, 64, 4
    $region41: #{cell_model_forward.1} parent=1 // pred_fallthru
      _
    // Predicated region
    $region42: #{cell_model_forward.1} parent=1 // pred_check
      _
    $region43: #{cell_model_forward.1} parent=1 // pred_check_branch
      %152 = sbr.rel (0) target = $region45
    $region44: #{cell_model_forward.1} parent=1 // pred_region
      %s154 = ssub.s32 32, 32
      %155 = vsyncadd [#allocation19], %s154
      %s156 = sshll.u32 [#allocation20], 4
      %s157 = int_to_ptr.vmem [resolvable:$true] %s156
      %162 = dma.hbm_to_vmem [thread:$0]  %s10, 32, %s157, [#allocation19], 16, 16, 1
    $region45: #{cell_model_forward.1} parent=1 // pred_fallthru
      _
    // Predicated region
    $region46: #{cell_model_forward.1} parent=1 // pred_check
      _
    $region47: #{cell_model_forward.1} parent=1 // pred_check_branch
      %164 = sbr.rel (0) target = $region49
    $region48: #{cell_model_forward.1} parent=1 // pred_region
      %s166 = ssub.s32 32, 32
      %167 = vsyncadd [#allocation22], %s166
      %s168 = sshll.u32 [#allocation21], 4
      %s169 = int_to_ptr.vmem [resolvable:$true] %s168
      %174 = dma.hbm_to_vmem [thread:$0]  %s11, 32, %s169, [#allocation22], 16, 16, 1
    $region49: #{cell_model_forward.1} parent=1 // pred_fallthru
      _
    // Predicated region
    $region50: #{cell_model_forward.1} parent=1 // pred_check
      _
    $region51: #{cell_model_forward.1} parent=1 // pred_check_branch
      %176 = sbr.rel (0) target = $region53
    $region52: #{cell_model_forward.1} parent=1 // pred_region
      %s178 = ssub.s32 32, 32
      %179 = vsyncadd [#allocation22], %s178
      %s180 = sshll.u32 [#allocation23], 4
      %s181 = int_to_ptr.vmem [resolvable:$true] %s180
      %186 = dma.hbm_to_vmem [thread:$0]  %s12, 32, %s181, [#allocation22], 16, 16, 1
    $region53: #{cell_model_forward.1} parent=1 // pred_fallthru
      _
    // Predicated region
    $region54: #{cell_model_forward.1} parent=1 // pred_check
      _
    $region55: #{cell_model_forward.1} parent=1 // pred_check_branch
      %188 = sbr.rel (0) target = $region57
    $region56: #{cell_model_forward.1} parent=1 // pred_region
      %s190 = ssub.s32 128, 128
      %191 = vsyncadd [#allocation25], %s190
      %s193 = sshll.u32 [#allocation24], 4
      %s194 = int_to_ptr.vmem [resolvable:$true] %s193
      %196 = dma.hbm_to_vmem [thread:$0]  %s13, 128, %s194, [#allocation25]
    $region57: #{cell_model_forward.1} parent=1 // pred_fallthru
      _
    // Predicated region
    $region58: #{cell_model_forward.1} parent=1 // pred_check
      _
    $region59: #{cell_model_forward.1} parent=1 // pred_check_branch
      %198 = sbr.rel (0) target = $region61
    $region60: #{cell_model_forward.1} parent=1 // pred_region
      _
    $region61: #{cell_model_forward.1} parent=1 // pred_fallthru
      _
    // Predicated region
    $region62: #{cell_model_forward.1} parent=1 // pred_check
      _
    $region63: #{cell_model_forward.1} parent=1 // pred_check_branch
      %200 = sbr.rel (0) target = $region65
    $region64: #{cell_model_forward.1} parent=1 // pred_region
      %201 = dma.done [#allocation4], 256
    $region65: #{cell_model_forward.1} parent=1 // pred_fallthru
      _
    // Predicated region
    $region66: #{cell_model_forward.1} parent=1 // pred_check
      _
    $region67: #{cell_model_forward.1} parent=1 // pred_check_branch
      %203 = sbr.rel (0) target = $region69
    $region68: #{cell_model_forward.1} parent=1 // pred_region
      %204 = dma.done [#allocation7], 512
    $region69: #{cell_model_forward.1} parent=1 // pred_fallthru
      _
    // Predicated region
    $region70: #{cell_model_forward.1} parent=1 // pred_check
      _
    $region71: #{cell_model_forward.1} parent=1 // pred_check_branch
      %206 = sbr.rel (0) target = $region73
    $region72: #{cell_model_forward.1} parent=1 // pred_region
      %207 = dma.done [#allocation7], 32
    $region73: #{cell_model_forward.1} parent=1 // pred_fallthru
      _
    // Predicated region
    $region74: #{cell_model_forward.1} parent=1 // pred_check
      _
    $region75: #{cell_model_forward.1} parent=1 // pred_check_branch
      %209 = sbr.rel (0) target = $region77
    $region76: #{cell_model_forward.1} parent=1 // pred_region
      %210 = dma.done [#allocation10], 512
    $region77: #{cell_model_forward.1} parent=1 // pred_fallthru
      _
    // Predicated region
    $region78: #{cell_model_forward.1} parent=1 // pred_check
      _
    $region79: #{cell_model_forward.1} parent=1 // pred_check_branch
      %212 = sbr.rel (0) target = $region81
    $region80: #{cell_model_forward.1} parent=1 // pred_region
      %213 = dma.done [#allocation10], 32
    $region81: #{cell_model_forward.1} parent=1 // pred_fallthru
      _
    // Predicated region
    $region82: #{cell_model_forward.1} parent=1 // pred_check
      _
    $region83: #{cell_model_forward.1} parent=1 // pred_check_branch
      %215 = sbr.rel (0) target = $region85
    $region84: #{cell_model_forward.1} parent=1 // pred_region
      %216 = dma.done [#allocation13], 32
    $region85: #{cell_model_forward.1} parent=1 // pred_fallthru
      _
    // Predicated region
    $region86: #{cell_model_forward.1} parent=1 // pred_check
      _
    $region87: #{cell_model_forward.1} parent=1 // pred_check_branch
      %218 = sbr.rel (0) target = $region89
    $region88: #{cell_model_forward.1} parent=1 // pred_region
      %219 = dma.done [#allocation13], 32
    $region89: #{cell_model_forward.1} parent=1 // pred_fallthru
      _
    // Predicated region
    $region90: #{cell_model_forward.1} parent=1 // pred_check
      _
    $region91: #{cell_model_forward.1} parent=1 // pred_check_branch
      %221 = sbr.rel (0) target = $region93
    $region92: #{cell_model_forward.1} parent=1 // pred_region
      %222 = dma.done [#allocation16], 512
    $region93: #{cell_model_forward.1} parent=1 // pred_fallthru
      _
    // Predicated region
    $region94: #{cell_model_forward.1} parent=1 // pred_check
      _
    $region95: #{cell_model_forward.1} parent=1 // pred_check_branch
      %224 = sbr.rel (0) target = $region97
    $region96: #{cell_model_forward.1} parent=1 // pred_region
      %225 = dma.done [#allocation16], 32
    $region97: #{cell_model_forward.1} parent=1 // pred_fallthru
      _
    // Predicated region
    $region98: #{cell_model_forward.1} parent=1 // pred_check
      _
    $region99: #{cell_model_forward.1} parent=1 // pred_check_branch
      %227 = sbr.rel (0) target = $region101
    $region100: #{cell_model_forward.1} parent=1 // pred_region
      %228 = dma.done [#allocation19], 1024
    $region101: #{cell_model_forward.1} parent=1 // pred_fallthru
      _
    // Predicated region
    $region102: #{cell_model_forward.1} parent=1 // pred_check
      _
    $region103: #{cell_model_forward.1} parent=1 // pred_check_branch
      %230 = sbr.rel (0) target = $region105
    $region104: #{cell_model_forward.1} parent=1 // pred_region
      %231 = dma.done [#allocation19], 32
    $region105: #{cell_model_forward.1} parent=1 // pred_fallthru
      _
    // Predicated region
    $region106: #{cell_model_forward.1} parent=1 // pred_check
      _
    $region107: #{cell_model_forward.1} parent=1 // pred_check_branch
      %233 = sbr.rel (0) target = $region109
    $region108: #{cell_model_forward.1} parent=1 // pred_region
      %234 = dma.done [#allocation22], 32
    $region109: #{cell_model_forward.1} parent=1 // pred_fallthru
      _
    // Predicated region
    $region110: #{cell_model_forward.1} parent=1 // pred_check
      _
    $region111: #{cell_model_forward.1} parent=1 // pred_check_branch
      %236 = sbr.rel (0) target = $region113
    $region112: #{cell_model_forward.1} parent=1 // pred_region
      %237 = dma.done [#allocation22], 32
    $region113: #{cell_model_forward.1} parent=1 // pred_fallthru
      _
    // Predicated region
    $region114: #{cell_model_forward.1} parent=1 // pred_check
      _
    $region115: #{cell_model_forward.1} parent=1 // pred_check_branch
      %239 = sbr.rel (0) target = $region117
    $region116: #{cell_model_forward.1} parent=1 // pred_region
      %240 = dma.done [#allocation25], 128
    $region117: #{cell_model_forward.1} parent=1 // pred_fallthru
      _
    %v242 = vld [vmem:[#allocation3] sm:$0xff]
    %v243 = vld [vmem:[#allocation3 + $0x8] sm:$0xff]
    %v244 = vpack.c.bf16 %v243, %v242
    %v245 = vld [vmem:[#allocation6] sm:$0xf]
    %v246 = vld [vmem:[#allocation6 + $0x4] sm:$0xf]
    %v247 = vld [vmem:[#allocation6 + $0x8] sm:$0xf]
    %v248 = vld [vmem:[#allocation6 + $0xc] sm:$0xf]
    %v249 = vld [vmem:[#allocation8] sm:$0x1]
    %v251 = vlaneseq
    %v252 = vshrl.u32 %v251, 7
    %v253 = vsub.s32 0, %v252
    %v254 = vrot.slane %v249, %v253
    %v260 = vunpack.c.l.b16 %v245
    %v261 = vunpack.c.l.b16 %v246
    %v262 = vunpack.c.l.b16 %v247
    %v263 = vunpack.c.l.b16 %v248
    %v264 = vpack.c.b16 %v261, %v260
    %v265 = vpack.c.b16 %v263, %v262
    %vm268 = vcmask 261120
    %v270 = vsel %vm268, %v244, 0
    %272 = vmatprep.subr.bf16.mxu0 0
    %273 = vmatpush1.bf16.msra.mxu0 %v264
    %274 = vmatprep.subr.bf16.mxu0 0
    %275 = vmatpush1.bf16.msra.mxu0 %v265
    %276 = vmatprep.subr.bf16.mxu0 0
    %277 = vmatpush1.bf16.msra.mxu0 0
    %278 = vmatprep.subr.bf16.mxu0 0
    %279 = vmatpush1.bf16.msra.mxu0 0
    %280 = vmatprep.subr.bf16.mxu0 0
    %281 = vmatpush1.bf16.msra.mxu0 0
    %282 = vmatprep.subr.bf16.mxu0 0
    %283 = vmatpush1.bf16.msra.mxu0 0
    %284 = vmatprep.subr.bf16.mxu0 0
    %285 = vmatpush1.bf16.msra.mxu0 0
    %286 = vmatprep.subr.bf16.mxu0 0
    %287 = vmatpush1.bf16.msra.mxu0 0
    %288 = vmatprep.subr.bf16.mxu0 0
    %289 = vmatpush1.bf16.msra.mxu0 0
    %290 = vmatprep.subr.bf16.mxu0 0
    %291 = vmatpush1.bf16.msra.mxu0 0
    %292 = vmatprep.subr.bf16.mxu0 0
    %293 = vmatpush1.bf16.msra.mxu0 0
    %294 = vmatprep.subr.bf16.mxu0 0
    %295 = vmatpush1.bf16.msra.mxu0 0
    %296 = vmatprep.subr.bf16.mxu0 0
    %297 = vmatpush1.bf16.msra.mxu0 0
    %298 = vmatprep.subr.bf16.mxu0 0
    %299 = vmatpush1.bf16.msra.mxu0 0
    %300 = vmatprep.subr.bf16.mxu0 0
    %301 = vmatpush1.bf16.msra.mxu0 0
    %302 = vmatprep.subr.bf16.mxu0 0
    %303 = vmatpush1.bf16.msra.mxu0 0
    %304 = vmatprep.mubr.bf16.mxu0 0
    %305 = vmatmul.mubr.bf16.gmra.mrb[0].mxu0 %v270
    %v306 = vpop.f32.mrb[0].mxu0
    %v307 = vadd.f32 %v254, %v306
    %v308 = vpop.f32.mrb[0].mxu0
    %v309 = vpop.f32.mrb[0].mxu0
    %v310 = vadd.f32 %v254, %v309
    %v311 = vpop.f32.mrb[0].mxu0
    %312 = vdwg.mxu0
    %v313 = vpack.c.bf16 %v307, %v307
    %v314 = vpack.c.bf16 %v310, %v310
    %316 = vrot.lane.b32.xlu0 %v313, 96
    %v317 = vpop.permute.xlu0 %316
    %vm318 = vcmask 64512
    %v320 = vsel %vm318, %v313, 0
    %v323 = vsel %vm318, %v317, 0
    %325 = vmatprep.subr.bf16.mxu0 0
    %326 = vmatpush1.bf16.xpose.msra.mxu0 %v323
    %327 = vmatprep.subr.bf16.mxu0 0
    %328 = vmatpush1.bf16.xpose.msra.mxu0 0
    %329 = vmatprep.subr.bf16.mxu0 0
    %330 = vmatpush1.bf16.xpose.msra.mxu0 0
    %331 = vmatprep.subr.bf16.mxu0 0
    %332 = vmatpush1.bf16.xpose.msra.mxu0 0
    %333 = vmatprep.subr.bf16.mxu0 0
    %334 = vmatpush1.bf16.xpose.msra.mxu0 0
    %335 = vmatprep.subr.bf16.mxu0 0
    %336 = vmatpush1.bf16.xpose.msra.mxu0 0
    %337 = vmatprep.subr.bf16.mxu0 0
    %338 = vmatpush1.bf16.xpose.msra.mxu0 0
    %339 = vmatprep.subr.bf16.mxu0 0
    %340 = vmatpush1.bf16.xpose.msra.mxu0 0
    %341 = vmatprep.subr.bf16.mxu0 0
    %342 = vmatpush1.bf16.xpose.msra.mxu0 0
    %343 = vmatprep.subr.bf16.mxu0 0
    %344 = vmatpush1.bf16.xpose.msra.mxu0 0
    %345 = vmatprep.subr.bf16.mxu0 0
    %346 = vmatpush1.bf16.xpose.msra.mxu0 0
    %347 = vmatprep.subr.bf16.mxu0 0
    %348 = vmatpush1.bf16.xpose.msra.mxu0 0
    %349 = vmatprep.subr.bf16.mxu0 0
    %350 = vmatpush1.bf16.xpose.msra.mxu0 0
    %351 = vmatprep.subr.bf16.mxu0 0
    %352 = vmatpush1.bf16.xpose.msra.mxu0 0
    %353 = vmatprep.subr.bf16.mxu0 0
    %354 = vmatpush1.bf16.xpose.msra.mxu0 0
    %355 = vmatprep.subr.bf16.mxu0 0
    %356 = vmatpush1.bf16.xpose.msra.mxu0 0
    %357 = vmatprep.mubr.bf16.mxu0 0
    %358 = vmatmul.mubr.bf16.gmra.mrb[0].mxu0 %v320
    %v359 = vpop.f32.mrb[0].mxu0
    %v360 = vadd.f32 0.0, %v359
    %v361 = vpop.f32.mrb[0].mxu0
    %v362 = vpop.f32.mrb[0].mxu0
    %v363 = vpop.f32.mrb[0].mxu0
    %364 = vdwg.mxu0
    %366 = vrot.lane.b32.xlu0 %v314, 96
    %v367 = vpop.permute.xlu0 %366
    %v369 = vsel %vm318, %v314, 0
    %v372 = vsel %vm318, %v367, 0
    %374 = vmatprep.subr.bf16.mxu0 0
    %375 = vmatpush1.bf16.xpose.msra.mxu0 %v372
    %376 = vmatprep.subr.bf16.mxu0 0
    %377 = vmatpush1.bf16.xpose.msra.mxu0 0
    %378 = vmatprep.subr.bf16.mxu0 0
    %379 = vmatpush1.bf16.xpose.msra.mxu0 0
    %380 = vmatprep.subr.bf16.mxu0 0
    %381 = vmatpush1.bf16.xpose.msra.mxu0 0
    %382 = vmatprep.subr.bf16.mxu0 0
    %383 = vmatpush1.bf16.xpose.msra.mxu0 0
    %384 = vmatprep.subr.bf16.mxu0 0
    %385 = vmatpush1.bf16.xpose.msra.mxu0 0
    %386 = vmatprep.subr.bf16.mxu0 0
    %387 = vmatpush1.bf16.xpose.msra.mxu0 0
    %388 = vmatprep.subr.bf16.mxu0 0
    %389 = vmatpush1.bf16.xpose.msra.mxu0 0
    %390 = vmatprep.subr.bf16.mxu0 0
    %391 = vmatpush1.bf16.xpose.msra.mxu0 0
    %392 = vmatprep.subr.bf16.mxu0 0
    %393 = vmatpush1.bf16.xpose.msra.mxu0 0
    %394 = vmatprep.subr.bf16.mxu0 0
    %395 = vmatpush1.bf16.xpose.msra.mxu0 0
    %396 = vmatprep.subr.bf16.mxu0 0
    %397 = vmatpush1.bf16.xpose.msra.mxu0 0
    %398 = vmatprep.subr.bf16.mxu0 0
    %399 = vmatpush1.bf16.xpose.msra.mxu0 0
    %400 = vmatprep.subr.bf16.mxu0 0
    %401 = vmatpush1.bf16.xpose.msra.mxu0 0
    %402 = vmatprep.subr.bf16.mxu0 0
    %403 = vmatpush1.bf16.xpose.msra.mxu0 0
    %404 = vmatprep.subr.bf16.mxu0 0
    %405 = vmatpush1.bf16.xpose.msra.mxu0 0
    %406 = vmatprep.mubr.bf16.mxu0 0
    %407 = vmatmul.mubr.bf16.gmra.mrb[0].mxu0 %v369
    %v408 = vpop.f32.mrb[0].mxu0
    %v409 = vadd.f32 0.0, %v408
    %v410 = vpop.f32.mrb[0].mxu0
    %v411 = vpop.f32.mrb[0].mxu0
    %v412 = vpop.f32.mrb[0].mxu0
    %413 = vdwg.mxu0
    %v414 = vmul.f32 %v360, 0.35355338
    %v415 = vmul.f32 %v409, 0.35355338
    %v416 = vsel %vm318, %v414, -inf
    %417 = vmax.xlane.f32.xlu0 %v416
    %v418 = vpop.xlane.xlu0 %417
    %v419 = vsel %vm318, %v415, -inf
    %420 = vmax.xlane.f32.xlu0 %v419
    %v421 = vpop.xlane.xlu0 %420
    %v422 = vsub.f32 %v414, %v418
    %v423 = vsub.f32 %v415, %v421
    %v424 = vmul.f32 %v422, 1.442695
    %v425 = vpow.pop %v424
    %v426 = vmul.f32 %v423, 1.442695
    %v427 = vpow.pop %v426
    %v428 = vsel %vm318, %v425, 0.0
    %429 = vadd.xlane.f32.xlu0 %v428
    %v430 = vpop.xlane.xlu0 %429
    %v431 = vsel %vm318, %v427, 0.0
    %432 = vadd.xlane.f32.xlu0 %v431
    %v433 = vpop.xlane.xlu0 %432
    %v434 = vrcp.pop %v430
    %v435 = vrcp.pop %v433
    %v436 = vmul.f32 %v425, %v434
    %v437 = vmul.f32 %v427, %v435
    %v438 = vpack.c.bf16 %v436, %v436
    %v439 = vpack.c.bf16 %v437, %v437
    %440 = vrot.lane.b32.xlu0 %v313, 64
    %v441 = vpop.permute.xlu0 %440
    %v443 = vsel %vm318, %v438, 0
    %vm445 = vcmask 1043456
    %v447 = vsel %vm445, %v441, 0
    %449 = vmatprep.subr.bf16.mxu0 0
    %450 = vmatpush1.bf16.msra.mxu0 %v447
    %451 = vmatprep.subr.bf16.mxu0 0
    %452 = vmatpush1.bf16.msra.mxu0 0
    %453 = vmatprep.subr.bf16.mxu0 0
    %454 = vmatpush1.bf16.msra.mxu0 0
    %455 = vmatprep.subr.bf16.mxu0 0
    %456 = vmatpush1.bf16.msra.mxu0 0
    %457 = vmatprep.subr.bf16.mxu0 0
    %458 = vmatpush1.bf16.msra.mxu0 0
    %459 = vmatprep.subr.bf16.mxu0 0
    %460 = vmatpush1.bf16.msra.mxu0 0
    %461 = vmatprep.subr.bf16.mxu0 0
    %462 = vmatpush1.bf16.msra.mxu0 0
    %463 = vmatprep.subr.bf16.mxu0 0
    %464 = vmatpush1.bf16.msra.mxu0 0
    %465 = vmatprep.subr.bf16.mxu0 0
    %466 = vmatpush1.bf16.msra.mxu0 0
    %467 = vmatprep.subr.bf16.mxu0 0
    %468 = vmatpush1.bf16.msra.mxu0 0
    %469 = vmatprep.subr.bf16.mxu0 0
    %470 = vmatpush1.bf16.msra.mxu0 0
    %471 = vmatprep.subr.bf16.mxu0 0
    %472 = vmatpush1.bf16.msra.mxu0 0
    %473 = vmatprep.subr.bf16.mxu0 0
    %474 = vmatpush1.bf16.msra.mxu0 0
    %475 = vmatprep.subr.bf16.mxu0 0
    %476 = vmatpush1.bf16.msra.mxu0 0
    %477 = vmatprep.subr.bf16.mxu0 0
    %478 = vmatpush1.bf16.msra.mxu0 0
    %479 = vmatprep.subr.bf16.mxu0 0
    %480 = vmatpush1.bf16.msra.mxu0 0
    %481 = vmatprep.mubr.bf16.mxu0 0
    %482 = vmatmul.mubr.bf16.gmra.mrb[0].mxu0 %v443
    %v483 = vpop.f32.mrb[0].mxu0
    %v484 = vadd.f32 0.0, %v483
    %v485 = vpop.f32.mrb[0].mxu0
    %v486 = vpop.f32.mrb[0].mxu0
    %v487 = vpop.f32.mrb[0].mxu0
    %488 = vdwg.mxu0
    %489 = vrot.lane.b32.xlu0 %v314, 64
    %v490 = vpop.permute.xlu0 %489
    %v492 = vsel %vm318, %v439, 0
    %v495 = vsel %vm445, %v490, 0
    %497 = vmatprep.subr.bf16.mxu0 0
    %498 = vmatpush1.bf16.msra.mxu0 %v495
    %499 = vmatprep.subr.bf16.mxu0 0
    %500 = vmatpush1.bf16.msra.mxu0 0
    %501 = vmatprep.subr.bf16.mxu0 0
    %502 = vmatpush1.bf16.msra.mxu0 0
    %503 = vmatprep.subr.bf16.mxu0 0
    %504 = vmatpush1.bf16.msra.mxu0 0
    %505 = vmatprep.subr.bf16.mxu0 0
    %506 = vmatpush1.bf16.msra.mxu0 0
    %507 = vmatprep.subr.bf16.mxu0 0
    %508 = vmatpush1.bf16.msra.mxu0 0
    %509 = vmatprep.subr.bf16.mxu0 0
    %510 = vmatpush1.bf16.msra.mxu0 0
    %511 = vmatprep.subr.bf16.mxu0 0
    %512 = vmatpush1.bf16.msra.mxu0 0
    %513 = vmatprep.subr.bf16.mxu0 0
    %514 = vmatpush1.bf16.msra.mxu0 0
    %515 = vmatprep.subr.bf16.mxu0 0
    %516 = vmatpush1.bf16.msra.mxu0 0
    %517 = vmatprep.subr.bf16.mxu0 0
    %518 = vmatpush1.bf16.msra.mxu0 0
    %519 = vmatprep.subr.bf16.mxu0 0
    %520 = vmatpush1.bf16.msra.mxu0 0
    %521 = vmatprep.subr.bf16.mxu0 0
    %522 = vmatpush1.bf16.msra.mxu0 0
    %523 = vmatprep.subr.bf16.mxu0 0
    %524 = vmatpush1.bf16.msra.mxu0 0
    %525 = vmatprep.subr.bf16.mxu0 0
    %526 = vmatpush1.bf16.msra.mxu0 0
    %527 = vmatprep.subr.bf16.mxu0 0
    %528 = vmatpush1.bf16.msra.mxu0 0
    %529 = vmatprep.mubr.bf16.mxu0 0
    %530 = vmatmul.mubr.bf16.gmra.mrb[0].mxu0 %v492
    %v531 = vpop.f32.mrb[0].mxu0
    %v532 = vadd.f32 0.0, %v531
    %v533 = vpop.f32.mrb[0].mxu0
    %v534 = vpop.f32.mrb[0].mxu0
    %v535 = vpop.f32.mrb[0].mxu0
    %536 = vdwg.mxu0
    %537 = vrot.lane.b32.xlu0 %v313, 120
    %v538 = vpop.permute.xlu0 %537
    %539 = vrot.lane.b32.xlu0 %v313, 88
    %v540 = vpop.permute.xlu0 %539
    %v542 = vsel %vm318, %v538, 0
    %v545 = vsel %vm318, %v540, 0
    %547 = vmatprep.subr.bf16.mxu0 0
    %548 = vmatpush1.bf16.xpose.msra.mxu0 %v545
    %549 = vmatprep.subr.bf16.mxu0 0
    %550 = vmatpush1.bf16.xpose.msra.mxu0 0
    %551 = vmatprep.subr.bf16.mxu0 0
    %552 = vmatpush1.bf16.xpose.msra.mxu0 0
    %553 = vmatprep.subr.bf16.mxu0 0
    %554 = vmatpush1.bf16.xpose.msra.mxu0 0
    %555 = vmatprep.subr.bf16.mxu0 0
    %556 = vmatpush1.bf16.xpose.msra.mxu0 0
    %557 = vmatprep.subr.bf16.mxu0 0
    %558 = vmatpush1.bf16.xpose.msra.mxu0 0
    %559 = vmatprep.subr.bf16.mxu0 0
    %560 = vmatpush1.bf16.xpose.msra.mxu0 0
    %561 = vmatprep.subr.bf16.mxu0 0
    %562 = vmatpush1.bf16.xpose.msra.mxu0 0
    %563 = vmatprep.subr.bf16.mxu0 0
    %564 = vmatpush1.bf16.xpose.msra.mxu0 0
    %565 = vmatprep.subr.bf16.mxu0 0
    %566 = vmatpush1.bf16.xpose.msra.mxu0 0
    %567 = vmatprep.subr.bf16.mxu0 0
    %568 = vmatpush1.bf16.xpose.msra.mxu0 0
    %569 = vmatprep.subr.bf16.mxu0 0
    %570 = vmatpush1.bf16.xpose.msra.mxu0 0
    %571 = vmatprep.subr.bf16.mxu0 0
    %572 = vmatpush1.bf16.xpose.msra.mxu0 0
    %573 = vmatprep.subr.bf16.mxu0 0
    %574 = vmatpush1.bf16.xpose.msra.mxu0 0
    %575 = vmatprep.subr.bf16.mxu0 0
    %576 = vmatpush1.bf16.xpose.msra.mxu0 0
    %577 = vmatprep.subr.bf16.mxu0 0
    %578 = vmatpush1.bf16.xpose.msra.mxu0 0
    %579 = vmatprep.mubr.bf16.mxu0 0
    %580 = vmatmul.mubr.bf16.gmra.mrb[0].mxu0 %v542
    %v581 = vpop.f32.mrb[0].mxu0
    %v582 = vadd.f32 0.0, %v581
    %v583 = vpop.f32.mrb[0].mxu0
    %v584 = vpop.f32.mrb[0].mxu0
    %v585 = vpop.f32.mrb[0].mxu0
    %586 = vdwg.mxu0
    %587 = vrot.lane.b32.xlu0 %v314, 120
    %v588 = vpop.permute.xlu0 %587
    %589 = vrot.lane.b32.xlu0 %v314, 88
    %v590 = vpop.permute.xlu0 %589
    %v592 = vsel %vm318, %v588, 0
    %v595 = vsel %vm318, %v590, 0
    %597 = vmatprep.subr.bf16.mxu0 0
    %598 = vmatpush1.bf16.xpose.msra.mxu0 %v595
    %599 = vmatprep.subr.bf16.mxu0 0
    %600 = vmatpush1.bf16.xpose.msra.mxu0 0
    %601 = vmatprep.subr.bf16.mxu0 0
    %602 = vmatpush1.bf16.xpose.msra.mxu0 0
    %603 = vmatprep.subr.bf16.mxu0 0
    %604 = vmatpush1.bf16.xpose.msra.mxu0 0
    %605 = vmatprep.subr.bf16.mxu0 0
    %606 = vmatpush1.bf16.xpose.msra.mxu0 0
    %607 = vmatprep.subr.bf16.mxu0 0
    %608 = vmatpush1.bf16.xpose.msra.mxu0 0
    %609 = vmatprep.subr.bf16.mxu0 0
    %610 = vmatpush1.bf16.xpose.msra.mxu0 0
    %611 = vmatprep.subr.bf16.mxu0 0
    %612 = vmatpush1.bf16.xpose.msra.mxu0 0
    %613 = vmatprep.subr.bf16.mxu0 0
    %614 = vmatpush1.bf16.xpose.msra.mxu0 0
    %615 = vmatprep.subr.bf16.mxu0 0
    %616 = vmatpush1.bf16.xpose.msra.mxu0 0
    %617 = vmatprep.subr.bf16.mxu0 0
    %618 = vmatpush1.bf16.xpose.msra.mxu0 0
    %619 = vmatprep.subr.bf16.mxu0 0
    %620 = vmatpush1.bf16.xpose.msra.mxu0 0
    %621 = vmatprep.subr.bf16.mxu0 0
    %622 = vmatpush1.bf16.xpose.msra.mxu0 0
    %623 = vmatprep.subr.bf16.mxu0 0
    %624 = vmatpush1.bf16.xpose.msra.mxu0 0
    %625 = vmatprep.subr.bf16.mxu0 0
    %626 = vmatpush1.bf16.xpose.msra.mxu0 0
    %627 = vmatprep.subr.bf16.mxu0 0
    %628 = vmatpush1.bf16.xpose.msra.mxu0 0
    %629 = vmatprep.mubr.bf16.mxu0 0
    %630 = vmatmul.mubr.bf16.gmra.mrb[0].mxu0 %v592
    %v631 = vpop.f32.mrb[0].mxu0
    %v632 = vadd.f32 0.0, %v631
    %v633 = vpop.f32.mrb[0].mxu0
    %v634 = vpop.f32.mrb[0].mxu0
    %v635 = vpop.f32.mrb[0].mxu0
    %636 = vdwg.mxu0
    %v637 = vmul.f32 %v582, 0.35355338
    %v638 = vmul.f32 %v632, 0.35355338
    %v639 = vsel %vm318, %v637, -inf
    %640 = vmax.xlane.f32.xlu0 %v639
    %v641 = vpop.xlane.xlu0 %640
    %v642 = vsel %vm318, %v638, -inf
    %643 = vmax.xlane.f32.xlu0 %v642
    %v644 = vpop.xlane.xlu0 %643
    %v645 = vsub.f32 %v637, %v641
    %v646 = vsub.f32 %v638, %v644
    %v647 = vmul.f32 %v645, 1.442695
    %v648 = vpow.pop %v647
    %v649 = vmul.f32 %v646, 1.442695
    %v650 = vpow.pop %v649
    %v651 = vsel %vm318, %v648, 0.0
    %652 = vadd.xlane.f32.xlu0 %v651
    %v653 = vpop.xlane.xlu0 %652
    %v654 = vsel %vm318, %v650, 0.0
    %655 = vadd.xlane.f32.xlu0 %v654
    %v656 = vpop.xlane.xlu0 %655
    %v657 = vrcp.pop %v653
    %v658 = vrcp.pop %v656
    %v659 = vmul.f32 %v648, %v657
    %v660 = vmul.f32 %v650, %v658
    %v661 = vpack.c.bf16 %v659, %v659
    %v662 = vpack.c.bf16 %v660, %v660
    %663 = vrot.lane.b32.xlu0 %v313, 56
    %v664 = vpop.permute.xlu0 %663
    %v666 = vsel %vm318, %v661, 0
    %v669 = vsel %vm445, %v664, 0
    %671 = vmatprep.subr.bf16.mxu0 0
    %672 = vmatpush1.bf16.msra.mxu0 %v669
    %673 = vmatprep.subr.bf16.mxu0 0
    %674 = vmatpush1.bf16.msra.mxu0 0
    %675 = vmatprep.subr.bf16.mxu0 0
    %676 = vmatpush1.bf16.msra.mxu0 0
    %677 = vmatprep.subr.bf16.mxu0 0
    %678 = vmatpush1.bf16.msra.mxu0 0
    %679 = vmatprep.subr.bf16.mxu0 0
    %680 = vmatpush1.bf16.msra.mxu0 0
    %681 = vmatprep.subr.bf16.mxu0 0
    %682 = vmatpush1.bf16.msra.mxu0 0
    %683 = vmatprep.subr.bf16.mxu0 0
    %684 = vmatpush1.bf16.msra.mxu0 0
    %685 = vmatprep.subr.bf16.mxu0 0
    %686 = vmatpush1.bf16.msra.mxu0 0
    %687 = vmatprep.subr.bf16.mxu0 0
    %688 = vmatpush1.bf16.msra.mxu0 0
    %689 = vmatprep.subr.bf16.mxu0 0
    %690 = vmatpush1.bf16.msra.mxu0 0
    %691 = vmatprep.subr.bf16.mxu0 0
    %692 = vmatpush1.bf16.msra.mxu0 0
    %693 = vmatprep.subr.bf16.mxu0 0
    %694 = vmatpush1.bf16.msra.mxu0 0
    %695 = vmatprep.subr.bf16.mxu0 0
    %696 = vmatpush1.bf16.msra.mxu0 0
    %697 = vmatprep.subr.bf16.mxu0 0
    %698 = vmatpush1.bf16.msra.mxu0 0
    %699 = vmatprep.subr.bf16.mxu0 0
    %700 = vmatpush1.bf16.msra.mxu0 0
    %701 = vmatprep.subr.bf16.mxu0 0
    %702 = vmatpush1.bf16.msra.mxu0 0
    %703 = vmatprep.mubr.bf16.mxu0 0
    %704 = vmatmul.mubr.bf16.gmra.mrb[0].mxu0 %v666
    %v705 = vpop.f32.mrb[0].mxu0
    %v706 = vadd.f32 0.0, %v705
    %v707 = vpop.f32.mrb[0].mxu0
    %v708 = vpop.f32.mrb[0].mxu0
    %v709 = vpop.f32.mrb[0].mxu0
    %710 = vdwg.mxu0
    %711 = vrot.lane.b32.xlu0 %v314, 56
    %v712 = vpop.permute.xlu0 %711
    %v714 = vsel %vm318, %v662, 0
    %v717 = vsel %vm445, %v712, 0
    %719 = vmatprep.subr.bf16.mxu0 0
    %720 = vmatpush1.bf16.msra.mxu0 %v717
    %721 = vmatprep.subr.bf16.mxu0 0
    %722 = vmatpush1.bf16.msra.mxu0 0
    %723 = vmatprep.subr.bf16.mxu0 0
    %724 = vmatpush1.bf16.msra.mxu0 0
    %725 = vmatprep.subr.bf16.mxu0 0
    %726 = vmatpush1.bf16.msra.mxu0 0
    %727 = vmatprep.subr.bf16.mxu0 0
    %728 = vmatpush1.bf16.msra.mxu0 0
    %729 = vmatprep.subr.bf16.mxu0 0
    %730 = vmatpush1.bf16.msra.mxu0 0
    %731 = vmatprep.subr.bf16.mxu0 0
    %732 = vmatpush1.bf16.msra.mxu0 0
    %733 = vmatprep.subr.bf16.mxu0 0
    %734 = vmatpush1.bf16.msra.mxu0 0
    %735 = vmatprep.subr.bf16.mxu0 0
    %736 = vmatpush1.bf16.msra.mxu0 0
    %737 = vmatprep.subr.bf16.mxu0 0
    %738 = vmatpush1.bf16.msra.mxu0 0
    %739 = vmatprep.subr.bf16.mxu0 0
    %740 = vmatpush1.bf16.msra.mxu0 0
    %741 = vmatprep.subr.bf16.mxu0 0
    %742 = vmatpush1.bf16.msra.mxu0 0
    %743 = vmatprep.subr.bf16.mxu0 0
    %744 = vmatpush1.bf16.msra.mxu0 0
    %745 = vmatprep.subr.bf16.mxu0 0
    %746 = vmatpush1.bf16.msra.mxu0 0
    %747 = vmatprep.subr.bf16.mxu0 0
    %748 = vmatpush1.bf16.msra.mxu0 0
    %749 = vmatprep.subr.bf16.mxu0 0
    %750 = vmatpush1.bf16.msra.mxu0 0
    %751 = vmatprep.mubr.bf16.mxu0 0
    %752 = vmatmul.mubr.bf16.gmra.mrb[0].mxu0 %v714
    %v753 = vpop.f32.mrb[0].mxu0
    %v754 = vadd.f32 0.0, %v753
    %v755 = vpop.f32.mrb[0].mxu0
    %v756 = vpop.f32.mrb[0].mxu0
    %v757 = vpop.f32.mrb[0].mxu0
    %758 = vdwg.mxu0
    %759 = vrot.lane.b32.xlu0 %v313, 112
    %v760 = vpop.permute.xlu0 %759
    %761 = vrot.lane.b32.xlu0 %v313, 80
    %v762 = vpop.permute.xlu0 %761
    %v764 = vsel %vm318, %v760, 0
    %v767 = vsel %vm318, %v762, 0
    %769 = vmatprep.subr.bf16.mxu0 0
    %770 = vmatpush1.bf16.xpose.msra.mxu0 %v767
    %771 = vmatprep.subr.bf16.mxu0 0
    %772 = vmatpush1.bf16.xpose.msra.mxu0 0
    %773 = vmatprep.subr.bf16.mxu0 0
    %774 = vmatpush1.bf16.xpose.msra.mxu0 0
    %775 = vmatprep.subr.bf16.mxu0 0
    %776 = vmatpush1.bf16.xpose.msra.mxu0 0
    %777 = vmatprep.subr.bf16.mxu0 0
    %778 = vmatpush1.bf16.xpose.msra.mxu0 0
    %779 = vmatprep.subr.bf16.mxu0 0
    %780 = vmatpush1.bf16.xpose.msra.mxu0 0
    %781 = vmatprep.subr.bf16.mxu0 0
    %782 = vmatpush1.bf16.xpose.msra.mxu0 0
    %783 = vmatprep.subr.bf16.mxu0 0
    %784 = vmatpush1.bf16.xpose.msra.mxu0 0
    %785 = vmatprep.subr.bf16.mxu0 0
    %786 = vmatpush1.bf16.xpose.msra.mxu0 0
    %787 = vmatprep.subr.bf16.mxu0 0
    %788 = vmatpush1.bf16.xpose.msra.mxu0 0
    %789 = vmatprep.subr.bf16.mxu0 0
    %790 = vmatpush1.bf16.xpose.msra.mxu0 0
    %791 = vmatprep.subr.bf16.mxu0 0
    %792 = vmatpush1.bf16.xpose.msra.mxu0 0
    %793 = vmatprep.subr.bf16.mxu0 0
    %794 = vmatpush1.bf16.xpose.msra.mxu0 0
    %795 = vmatprep.subr.bf16.mxu0 0
    %796 = vmatpush1.bf16.xpose.msra.mxu0 0
    %797 = vmatprep.subr.bf16.mxu0 0
    %798 = vmatpush1.bf16.xpose.msra.mxu0 0
    %799 = vmatprep.subr.bf16.mxu0 0
    %800 = vmatpush1.bf16.xpose.msra.mxu0 0
    %801 = vmatprep.mubr.bf16.mxu0 0
    %802 = vmatmul.mubr.bf16.gmra.mrb[0].mxu0 %v764
    %v803 = vpop.f32.mrb[0].mxu0
    %v804 = vadd.f32 0.0, %v803
    %v805 = vpop.f32.mrb[0].mxu0
    %v806 = vpop.f32.mrb[0].mxu0
    %v807 = vpop.f32.mrb[0].mxu0
    %808 = vdwg.mxu0
    %809 = vrot.lane.b32.xlu0 %v314, 112
    %v810 = vpop.permute.xlu0 %809
    %811 = vrot.lane.b32.xlu0 %v314, 80
    %v812 = vpop.permute.xlu0 %811
    %v814 = vsel %vm318, %v810, 0
    %v817 = vsel %vm318, %v812, 0
    %819 = vmatprep.subr.bf16.mxu0 0
    %820 = vmatpush1.bf16.xpose.msra.mxu0 %v817
    %821 = vmatprep.subr.bf16.mxu0 0
    %822 = vmatpush1.bf16.xpose.msra.mxu0 0
    %823 = vmatprep.subr.bf16.mxu0 0
    %824 = vmatpush1.bf16.xpose.msra.mxu0 0
    %825 = vmatprep.subr.bf16.mxu0 0
    %826 = vmatpush1.bf16.xpose.msra.mxu0 0
    %827 = vmatprep.subr.bf16.mxu0 0
    %828 = vmatpush1.bf16.xpose.msra.mxu0 0
    %829 = vmatprep.subr.bf16.mxu0 0
    %830 = vmatpush1.bf16.xpose.msra.mxu0 0
    %831 = vmatprep.subr.bf16.mxu0 0
    %832 = vmatpush1.bf16.xpose.msra.mxu0 0
    %833 = vmatprep.subr.bf16.mxu0 0
    %834 = vmatpush1.bf16.xpose.msra.mxu0 0
    %835 = vmatprep.subr.bf16.mxu0 0
    %836 = vmatpush1.bf16.xpose.msra.mxu0 0
    %837 = vmatprep.subr.bf16.mxu0 0
    %838 = vmatpush1.bf16.xpose.msra.mxu0 0
    %839 = vmatprep.subr.bf16.mxu0 0
    %840 = vmatpush1.bf16.xpose.msra.mxu0 0
    %841 = vmatprep.subr.bf16.mxu0 0
    %842 = vmatpush1.bf16.xpose.msra.mxu0 0
    %843 = vmatprep.subr.bf16.mxu0 0
    %844 = vmatpush1.bf16.xpose.msra.mxu0 0
    %845 = vmatprep.subr.bf16.mxu0 0
    %846 = vmatpush1.bf16.xpose.msra.mxu0 0
    %847 = vmatprep.subr.bf16.mxu0 0
    %848 = vmatpush1.bf16.xpose.msra.mxu0 0
    %849 = vmatprep.subr.bf16.mxu0 0
    %850 = vmatpush1.bf16.xpose.msra.mxu0 0
    %851 = vmatprep.mubr.bf16.mxu0 0
    %852 = vmatmul.mubr.bf16.gmra.mrb[0].mxu0 %v814
    %v853 = vpop.f32.mrb[0].mxu0
    %v854 = vadd.f32 0.0, %v853
    %v855 = vpop.f32.mrb[0].mxu0
    %v856 = vpop.f32.mrb[0].mxu0
    %v857 = vpop.f32.mrb[0].mxu0
    %858 = vdwg.mxu0
    %v859 = vmul.f32 %v804, 0.35355338
    %v860 = vmul.f32 %v854, 0.35355338
    %v861 = vsel %vm318, %v859, -inf
    %862 = vmax.xlane.f32.xlu0 %v861
    %v863 = vpop.xlane.xlu0 %862
    %v864 = vsel %vm318, %v860, -inf
    %865 = vmax.xlane.f32.xlu0 %v864
    %v866 = vpop.xlane.xlu0 %865
    %v867 = vsub.f32 %v859, %v863
    %v868 = vsub.f32 %v860, %v866
    %v869 = vmul.f32 %v867, 1.442695
    %v870 = vpow.pop %v869
    %v871 = vmul.f32 %v868, 1.442695
    %v872 = vpow.pop %v871
    %v873 = vsel %vm318, %v870, 0.0
    %874 = vadd.xlane.f32.xlu0 %v873
    %v875 = vpop.xlane.xlu0 %874
    %v876 = vsel %vm318, %v872, 0.0
    %877 = vadd.xlane.f32.xlu0 %v876
    %v878 = vpop.xlane.xlu0 %877
    %v879 = vrcp.pop %v875
    %v880 = vrcp.pop %v878
    %v881 = vmul.f32 %v870, %v879
    %v882 = vmul.f32 %v872, %v880
    %v883 = vpack.c.bf16 %v881, %v881
    %v884 = vpack.c.bf16 %v882, %v882
    %885 = vrot.lane.b32.xlu0 %v313, 48
    %v886 = vpop.permute.xlu0 %885
    %v888 = vsel %vm318, %v883, 0
    %v891 = vsel %vm445, %v886, 0
    %893 = vmatprep.subr.bf16.mxu0 0
    %894 = vmatpush1.bf16.msra.mxu0 %v891
    %895 = vmatprep.subr.bf16.mxu0 0
    %896 = vmatpush1.bf16.msra.mxu0 0
    %897 = vmatprep.subr.bf16.mxu0 0
    %898 = vmatpush1.bf16.msra.mxu0 0
    %899 = vmatprep.subr.bf16.mxu0 0
    %900 = vmatpush1.bf16.msra.mxu0 0
    %901 = vmatprep.subr.bf16.mxu0 0
    %902 = vmatpush1.bf16.msra.mxu0 0
    %903 = vmatprep.subr.bf16.mxu0 0
    %904 = vmatpush1.bf16.msra.mxu0 0
    %905 = vmatprep.subr.bf16.mxu0 0
    %906 = vmatpush1.bf16.msra.mxu0 0
    %907 = vmatprep.subr.bf16.mxu0 0
    %908 = vmatpush1.bf16.msra.mxu0 0
    %909 = vmatprep.subr.bf16.mxu0 0
    %910 = vmatpush1.bf16.msra.mxu0 0
    %911 = vmatprep.subr.bf16.mxu0 0
    %912 = vmatpush1.bf16.msra.mxu0 0
    %913 = vmatprep.subr.bf16.mxu0 0
    %914 = vmatpush1.bf16.msra.mxu0 0
    %915 = vmatprep.subr.bf16.mxu0 0
    %916 = vmatpush1.bf16.msra.mxu0 0
    %917 = vmatprep.subr.bf16.mxu0 0
    %918 = vmatpush1.bf16.msra.mxu0 0
    %919 = vmatprep.subr.bf16.mxu0 0
    %920 = vmatpush1.bf16.msra.mxu0 0
    %921 = vmatprep.subr.bf16.mxu0 0
    %922 = vmatpush1.bf16.msra.mxu0 0
    %923 = vmatprep.subr.bf16.mxu0 0
    %924 = vmatpush1.bf16.msra.mxu0 0
    %925 = vmatprep.mubr.bf16.mxu0 0
    %926 = vmatmul.mubr.bf16.gmra.mrb[0].mxu0 %v888
    %v927 = vpop.f32.mrb[0].mxu0
    %v928 = vadd.f32 0.0, %v927
    %v929 = vpop.f32.mrb[0].mxu0
    %v930 = vpop.f32.mrb[0].mxu0
    %v931 = vpop.f32.mrb[0].mxu0
    %932 = vdwg.mxu0
    %933 = vrot.lane.b32.xlu0 %v314, 48
    %v934 = vpop.permute.xlu0 %933
    %v936 = vsel %vm318, %v884, 0
    %v939 = vsel %vm445, %v934, 0
    %941 = vmatprep.subr.bf16.mxu0 0
    %942 = vmatpush1.bf16.msra.mxu0 %v939
    %943 = vmatprep.subr.bf16.mxu0 0
    %944 = vmatpush1.bf16.msra.mxu0 0
    %945 = vmatprep.subr.bf16.mxu0 0
    %946 = vmatpush1.bf16.msra.mxu0 0
    %947 = vmatprep.subr.bf16.mxu0 0
    %948 = vmatpush1.bf16.msra.mxu0 0
    %949 = vmatprep.subr.bf16.mxu0 0
    %950 = vmatpush1.bf16.msra.mxu0 0
    %951 = vmatprep.subr.bf16.mxu0 0
    %952 = vmatpush1.bf16.msra.mxu0 0
    %953 = vmatprep.subr.bf16.mxu0 0
    %954 = vmatpush1.bf16.msra.mxu0 0
    %955 = vmatprep.subr.bf16.mxu0 0
    %956 = vmatpush1.bf16.msra.mxu0 0
    %957 = vmatprep.subr.bf16.mxu0 0
    %958 = vmatpush1.bf16.msra.mxu0 0
    %959 = vmatprep.subr.bf16.mxu0 0
    %960 = vmatpush1.bf16.msra.mxu0 0
    %961 = vmatprep.subr.bf16.mxu0 0
    %962 = vmatpush1.bf16.msra.mxu0 0
    %963 = vmatprep.subr.bf16.mxu0 0
    %964 = vmatpush1.bf16.msra.mxu0 0
    %965 = vmatprep.subr.bf16.mxu0 0
    %966 = vmatpush1.bf16.msra.mxu0 0
    %967 = vmatprep.subr.bf16.mxu0 0
    %968 = vmatpush1.bf16.msra.mxu0 0
    %969 = vmatprep.subr.bf16.mxu0 0
    %970 = vmatpush1.bf16.msra.mxu0 0
    %971 = vmatprep.subr.bf16.mxu0 0
    %972 = vmatpush1.bf16.msra.mxu0 0
    %973 = vmatprep.mubr.bf16.mxu0 0
    %974 = vmatmul.mubr.bf16.gmra.mrb[0].mxu0 %v936
    %v975 = vpop.f32.mrb[0].mxu0
    %v976 = vadd.f32 0.0, %v975
    %v977 = vpop.f32.mrb[0].mxu0
    %v978 = vpop.f32.mrb[0].mxu0
    %v979 = vpop.f32.mrb[0].mxu0
    %980 = vdwg.mxu0
    %981 = vrot.lane.b32.xlu0 %v313, 104
    %v982 = vpop.permute.xlu0 %981
    %983 = vrot.lane.b32.xlu0 %v313, 72
    %v984 = vpop.permute.xlu0 %983
    %v986 = vsel %vm318, %v982, 0
    %v989 = vsel %vm318, %v984, 0
    %991 = vmatprep.subr.bf16.mxu0 0
    %992 = vmatpush1.bf16.xpose.msra.mxu0 %v989
    %993 = vmatprep.subr.bf16.mxu0 0
    %994 = vmatpush1.bf16.xpose.msra.mxu0 0
    %995 = vmatprep.subr.bf16.mxu0 0
    %996 = vmatpush1.bf16.xpose.msra.mxu0 0
    %997 = vmatprep.subr.bf16.mxu0 0
    %998 = vmatpush1.bf16.xpose.msra.mxu0 0
    %999 = vmatprep.subr.bf16.mxu0 0
    %1000 = vmatpush1.bf16.xpose.msra.mxu0 0
    %1001 = vmatprep.subr.bf16.mxu0 0
    %1002 = vmatpush1.bf16.xpose.msra.mxu0 0
    %1003 = vmatprep.subr.bf16.mxu0 0
    %1004 = vmatpush1.bf16.xpose.msra.mxu0 0
    %1005 = vmatprep.subr.bf16.mxu0 0
    %1006 = vmatpush1.bf16.xpose.msra.mxu0 0
    %1007 = vmatprep.subr.bf16.mxu0 0
    %1008 = vmatpush1.bf16.xpose.msra.mxu0 0
    %1009 = vmatprep.subr.bf16.mxu0 0
    %1010 = vmatpush1.bf16.xpose.msra.mxu0 0
    %1011 = vmatprep.subr.bf16.mxu0 0
    %1012 = vmatpush1.bf16.xpose.msra.mxu0 0
    %1013 = vmatprep.subr.bf16.mxu0 0
    %1014 = vmatpush1.bf16.xpose.msra.mxu0 0
    %1015 = vmatprep.subr.bf16.mxu0 0
    %1016 = vmatpush1.bf16.xpose.msra.mxu0 0
    %1017 = vmatprep.subr.bf16.mxu0 0
    %1018 = vmatpush1.bf16.xpose.msra.mxu0 0
    %1019 = vmatprep.subr.bf16.mxu0 0
    %1020 = vmatpush1.bf16.xpose.msra.mxu0 0
    %1021 = vmatprep.subr.bf16.mxu0 0
    %1022 = vmatpush1.bf16.xpose.msra.mxu0 0
    %1023 = vmatprep.mubr.bf16.mxu0 0
    %1024 = vmatmul.mubr.bf16.gmra.mrb[0].mxu0 %v986
    %v1025 = vpop.f32.mrb[0].mxu0
    %v1026 = vadd.f32 0.0, %v1025
    %v1027 = vpop.f32.mrb[0].mxu0
    %v1028 = vpop.f32.mrb[0].mxu0
    %v1029 = vpop.f32.mrb[0].mxu0
    %1030 = vdwg.mxu0
    %1031 = vrot.lane.b32.xlu0 %v314, 104
    %v1032 = vpop.permute.xlu0 %1031
    %1033 = vrot.lane.b32.xlu0 %v314, 72
    %v1034 = vpop.permute.xlu0 %1033
    %v1036 = vsel %vm318, %v1032, 0
    %v1039 = vsel %vm318, %v1034, 0
    %1041 = vmatprep.subr.bf16.mxu0 0
    %1042 = vmatpush1.bf16.xpose.msra.mxu0 %v1039
    %1043 = vmatprep.subr.bf16.mxu0 0
    %1044 = vmatpush1.bf16.xpose.msra.mxu0 0
    %1045 = vmatprep.subr.bf16.mxu0 0
    %1046 = vmatpush1.bf16.xpose.msra.mxu0 0
    %1047 = vmatprep.subr.bf16.mxu0 0
    %1048 = vmatpush1.bf16.xpose.msra.mxu0 0
    %1049 = vmatprep.subr.bf16.mxu0 0
    %1050 = vmatpush1.bf16.xpose.msra.mxu0 0
    %1051 = vmatprep.subr.bf16.mxu0 0
    %1052 = vmatpush1.bf16.xpose.msra.mxu0 0
    %1053 = vmatprep.subr.bf16.mxu0 0
    %1054 = vmatpush1.bf16.xpose.msra.mxu0 0
    %1055 = vmatprep.subr.bf16.mxu0 0
    %1056 = vmatpush1.bf16.xpose.msra.mxu0 0
    %1057 = vmatprep.subr.bf16.mxu0 0
    %1058 = vmatpush1.bf16.xpose.msra.mxu0 0
    %1059 = vmatprep.subr.bf16.mxu0 0
    %1060 = vmatpush1.bf16.xpose.msra.mxu0 0
    %1061 = vmatprep.subr.bf16.mxu0 0
    %1062 = vmatpush1.bf16.xpose.msra.mxu0 0
    %1063 = vmatprep.subr.bf16.mxu0 0
    %1064 = vmatpush1.bf16.xpose.msra.mxu0 0
    %1065 = vmatprep.subr.bf16.mxu0 0
    %1066 = vmatpush1.bf16.xpose.msra.mxu0 0
    %1067 = vmatprep.subr.bf16.mxu0 0
    %1068 = vmatpush1.bf16.xpose.msra.mxu0 0
    %1069 = vmatprep.subr.bf16.mxu0 0
    %1070 = vmatpush1.bf16.xpose.msra.mxu0 0
    %1071 = vmatprep.subr.bf16.mxu0 0
    %1072 = vmatpush1.bf16.xpose.msra.mxu0 0
    %1073 = vmatprep.mubr.bf16.mxu0 0
    %1074 = vmatmul.mubr.bf16.gmra.mrb[0].mxu0 %v1036
    %v1075 = vpop.f32.mrb[0].mxu0
    %v1076 = vadd.f32 0.0, %v1075
    %v1077 = vpop.f32.mrb[0].mxu0
    %v1078 = vpop.f32.mrb[0].mxu0
    %v1079 = vpop.f32.mrb[0].mxu0
    %1080 = vdwg.mxu0
    %v1081 = vmul.f32 %v1026, 0.35355338
    %v1082 = vmul.f32 %v1076, 0.35355338
    %v1083 = vsel %vm318, %v1081, -inf
    %1084 = vmax.xlane.f32.xlu0 %v1083
    %v1085 = vpop.xlane.xlu0 %1084
    %v1086 = vsel %vm318, %v1082, -inf
    %1087 = vmax.xlane.f32.xlu0 %v1086
    %v1088 = vpop.xlane.xlu0 %1087
    %v1089 = vsub.f32 %v1081, %v1085
    %v1090 = vsub.f32 %v1082, %v1088
    %v1091 = vmul.f32 %v1089, 1.442695
    %v1092 = vpow.pop %v1091
    %v1093 = vmul.f32 %v1090, 1.442695
    %v1094 = vpow.pop %v1093
    %v1095 = vsel %vm318, %v1092, 0.0
    %1096 = vadd.xlane.f32.xlu0 %v1095
    %v1097 = vpop.xlane.xlu0 %1096
    %v1098 = vsel %vm318, %v1094, 0.0
    %1099 = vadd.xlane.f32.xlu0 %v1098
    %v1100 = vpop.xlane.xlu0 %1099
    %v1101 = vrcp.pop %v1097
    %v1102 = vrcp.pop %v1100
    %v1103 = vmul.f32 %v1092, %v1101
    %v1104 = vmul.f32 %v1094, %v1102
    %v1105 = vpack.c.bf16 %v1103, %v1103
    %v1106 = vpack.c.bf16 %v1104, %v1104
    %1107 = vrot.lane.b32.xlu0 %v313, 40
    %v1108 = vpop.permute.xlu0 %1107
    %v1110 = vsel %vm318, %v1105, 0
    %v1113 = vsel %vm445, %v1108, 0
    %1115 = vmatprep.subr.bf16.mxu0 0
    %1116 = vmatpush1.bf16.msra.mxu0 %v1113
    %1117 = vmatprep.subr.bf16.mxu0 0
    %1118 = vmatpush1.bf16.msra.mxu0 0
    %1119 = vmatprep.subr.bf16.mxu0 0
    %1120 = vmatpush1.bf16.msra.mxu0 0
    %1121 = vmatprep.subr.bf16.mxu0 0
    %1122 = vmatpush1.bf16.msra.mxu0 0
    %1123 = vmatprep.subr.bf16.mxu0 0
    %1124 = vmatpush1.bf16.msra.mxu0 0
    %1125 = vmatprep.subr.bf16.mxu0 0
    %1126 = vmatpush1.bf16.msra.mxu0 0
    %1127 = vmatprep.subr.bf16.mxu0 0
    %1128 = vmatpush1.bf16.msra.mxu0 0
    %1129 = vmatprep.subr.bf16.mxu0 0
    %1130 = vmatpush1.bf16.msra.mxu0 0
    %1131 = vmatprep.subr.bf16.mxu0 0
    %1132 = vmatpush1.bf16.msra.mxu0 0
    %1133 = vmatprep.subr.bf16.mxu0 0
    %1134 = vmatpush1.bf16.msra.mxu0 0
    %1135 = vmatprep.subr.bf16.mxu0 0
    %1136 = vmatpush1.bf16.msra.mxu0 0
    %1137 = vmatprep.subr.bf16.mxu0 0
    %1138 = vmatpush1.bf16.msra.mxu0 0
    %1139 = vmatprep.subr.bf16.mxu0 0
    %1140 = vmatpush1.bf16.msra.mxu0 0
    %1141 = vmatprep.subr.bf16.mxu0 0
    %1142 = vmatpush1.bf16.msra.mxu0 0
    %1143 = vmatprep.subr.bf16.mxu0 0
    %1144 = vmatpush1.bf16.msra.mxu0 0
    %1145 = vmatprep.subr.bf16.mxu0 0
    %1146 = vmatpush1.bf16.msra.mxu0 0
    %1147 = vmatprep.mubr.bf16.mxu0 0
    %1148 = vmatmul.mubr.bf16.gmra.mrb[0].mxu0 %v1110
    %v1149 = vpop.f32.mrb[0].mxu0
    %v1150 = vadd.f32 0.0, %v1149
    %v1151 = vpop.f32.mrb[0].mxu0
    %v1152 = vpop.f32.mrb[0].mxu0
    %v1153 = vpop.f32.mrb[0].mxu0
    %1154 = vdwg.mxu0
    %1155 = vrot.lane.b32.xlu0 %v314, 40
    %v1156 = vpop.permute.xlu0 %1155
    %v1158 = vsel %vm318, %v1106, 0
    %v1161 = vsel %vm445, %v1156, 0
    %1163 = vmatprep.subr.bf16.mxu0 0
    %1164 = vmatpush1.bf16.msra.mxu0 %v1161
    %1165 = vmatprep.subr.bf16.mxu0 0
    %1166 = vmatpush1.bf16.msra.mxu0 0
    %1167 = vmatprep.subr.bf16.mxu0 0
    %1168 = vmatpush1.bf16.msra.mxu0 0
    %1169 = vmatprep.subr.bf16.mxu0 0
    %1170 = vmatpush1.bf16.msra.mxu0 0
    %1171 = vmatprep.subr.bf16.mxu0 0
    %1172 = vmatpush1.bf16.msra.mxu0 0
    %1173 = vmatprep.subr.bf16.mxu0 0
    %1174 = vmatpush1.bf16.msra.mxu0 0
    %1175 = vmatprep.subr.bf16.mxu0 0
    %1176 = vmatpush1.bf16.msra.mxu0 0
    %1177 = vmatprep.subr.bf16.mxu0 0
    %1178 = vmatpush1.bf16.msra.mxu0 0
    %1179 = vmatprep.subr.bf16.mxu0 0
    %1180 = vmatpush1.bf16.msra.mxu0 0
    %1181 = vmatprep.subr.bf16.mxu0 0
    %1182 = vmatpush1.bf16.msra.mxu0 0
    %1183 = vmatprep.subr.bf16.mxu0 0
    %1184 = vmatpush1.bf16.msra.mxu0 0
    %1185 = vmatprep.subr.bf16.mxu0 0
    %1186 = vmatpush1.bf16.msra.mxu0 0
    %1187 = vmatprep.subr.bf16.mxu0 0
    %1188 = vmatpush1.bf16.msra.mxu0 0
    %1189 = vmatprep.subr.bf16.mxu0 0
    %1190 = vmatpush1.bf16.msra.mxu0 0
    %1191 = vmatprep.subr.bf16.mxu0 0
    %1192 = vmatpush1.bf16.msra.mxu0 0
    %1193 = vmatprep.subr.bf16.mxu0 0
    %1194 = vmatpush1.bf16.msra.mxu0 0
    %1195 = vmatprep.mubr.bf16.mxu0 0
    %1196 = vmatmul.mubr.bf16.gmra.mrb[0].mxu0 %v1158
    %v1197 = vpop.f32.mrb[0].mxu0
    %v1198 = vadd.f32 0.0, %v1197
    %v1199 = vpop.f32.mrb[0].mxu0
    %v1200 = vpop.f32.mrb[0].mxu0
    %v1201 = vpop.f32.mrb[0].mxu0
    %1202 = vdwg.mxu0
    %1205 = vrot.lane.b32.xlu0 %v706, 8
    %v1206 = vpop.permute.xlu0 %1205
    %1207 = vrot.lane.b32.xlu0 %v754, 8
    %v1208 = vpop.permute.xlu0 %1207
    %1213 = vrot.lane.b32.xlu0 %v928, 16
    %v1214 = vpop.permute.xlu0 %1213
    %1215 = vrot.lane.b32.xlu0 %v976, 16
    %v1216 = vpop.permute.xlu0 %1215
    %1221 = vrot.lane.b32.xlu0 %v1150, 24
    %v1222 = vpop.permute.xlu0 %1221
    %1223 = vrot.lane.b32.xlu0 %v1198, 24
    %v1224 = vpop.permute.xlu0 %1223
    %v1227 = vsel %vm318, %v484, %v1206
    %v1228 = vsel %vm318, %v532, %v1208
    %vm1229 = vcmask 130048
    %v1230 = vsel %vm1229, %v1227, %v1214
    %v1231 = vsel %vm1229, %v1228, %v1216
    %vm1232 = vcmask 195584
    %v1233 = vsel %vm1232, %v1230, %v1222
    %v1234 = vsel %vm1232, %v1231, %v1224
    %v1235 = vpack.c.bf16 %v1234, %v1233
    %v1236 = vld [vmem:[#allocation9] sm:$0xf]
    %v1237 = vld [vmem:[#allocation9 + $0x4] sm:$0xf]
    %v1238 = vld [vmem:[#allocation9 + $0x8] sm:$0xf]
    %v1239 = vld [vmem:[#allocation9 + $0xc] sm:$0xf]
    %v1240 = vld [vmem:[#allocation11] sm:$0x1]
    %v1242 = vlaneseq
    %v1243 = vshrl.u32 %v1242, 7
    %v1244 = vsub.s32 0, %v1243
    %v1245 = vrot.slane %v1240, %v1244
    %v1251 = vunpack.c.l.b16 %v1236
    %v1252 = vunpack.c.l.b16 %v1237
    %v1253 = vunpack.c.l.b16 %v1238
    %v1254 = vunpack.c.l.b16 %v1239
    %v1255 = vpack.c.b16 %v1252, %v1251
    %v1256 = vpack.c.b16 %v1254, %v1253
    %v1260 = vsel %vm268, %v1235, 0
    %1262 = vmatprep.subr.bf16.mxu0 0
    %1263 = vmatpush1.bf16.msra.mxu0 %v1255
    %1264 = vmatprep.subr.bf16.mxu0 0
    %1265 = vmatpush1.bf16.msra.mxu0 %v1256
    %1266 = vmatprep.subr.bf16.mxu0 0
    %1267 = vmatpush1.bf16.msra.mxu0 0
    %1268 = vmatprep.subr.bf16.mxu0 0
    %1269 = vmatpush1.bf16.msra.mxu0 0
    %1270 = vmatprep.subr.bf16.mxu0 0
    %1271 = vmatpush1.bf16.msra.mxu0 0
    %1272 = vmatprep.subr.bf16.mxu0 0
    %1273 = vmatpush1.bf16.msra.mxu0 0
    %1274 = vmatprep.subr.bf16.mxu0 0
    %1275 = vmatpush1.bf16.msra.mxu0 0
    %1276 = vmatprep.subr.bf16.mxu0 0
    %1277 = vmatpush1.bf16.msra.mxu0 0
    %1278 = vmatprep.subr.bf16.mxu0 0
    %1279 = vmatpush1.bf16.msra.mxu0 0
    %1280 = vmatprep.subr.bf16.mxu0 0
    %1281 = vmatpush1.bf16.msra.mxu0 0
    %1282 = vmatprep.subr.bf16.mxu0 0
    %1283 = vmatpush1.bf16.msra.mxu0 0
    %1284 = vmatprep.subr.bf16.mxu0 0
    %1285 = vmatpush1.bf16.msra.mxu0 0
    %1286 = vmatprep.subr.bf16.mxu0 0
    %1287 = vmatpush1.bf16.msra.mxu0 0
    %1288 = vmatprep.subr.bf16.mxu0 0
    %1289 = vmatpush1.bf16.msra.mxu0 0
    %1290 = vmatprep.subr.bf16.mxu0 0
    %1291 = vmatpush1.bf16.msra.mxu0 0
    %1292 = vmatprep.subr.bf16.mxu0 0
    %1293 = vmatpush1.bf16.msra.mxu0 0
    %1294 = vmatprep.mubr.bf16.mxu0 0
    %1295 = vmatmul.mubr.bf16.gmra.mrb[0].mxu0 %v1260
    %v1296 = vpop.f32.mrb[0].mxu0
    %v1297 = vadd.f32 %v1245, %v1296
    %v1298 = vpop.f32.mrb[0].mxu0
    %v1299 = vpop.f32.mrb[0].mxu0
    %v1300 = vadd.f32 %v1245, %v1299
    %v1301 = vpop.f32.mrb[0].mxu0
    %1302 = vdwg.mxu0
    %v1303 = vadd.f32 %v242, %v1297
    %v1304 = vadd.f32 %v243, %v1300
    %v1305 = vld [vmem:[#allocation12] sm:$0x1]
    %v1306 = vld [vmem:[#allocation14] sm:$0x1]
    %v1307 = vsel %vm268, %v1303, 0.0
    %1308 = vadd.xlane.f32.xlu0 %v1307
    %v1309 = vpop.xlane.xlu0 %1308
    %v1310 = vsel %vm268, %v1304, 0.0
    %1311 = vadd.xlane.f32.xlu0 %v1310
    %v1312 = vpop.xlane.xlu0 %1311
    %v1313 = vrcp.pop 32.0
    %v1314 = vmul.f32 %v1309, %v1313
    %v1315 = vmul.f32 %v1312, %v1313
    %v1316 = vsub.f32 %v1303, %v1314
    %v1317 = vsub.f32 %v1304, %v1315
    %v1318 = vmul.f32 %v1316, %v1316
    %v1319 = vmul.f32 %v1317, %v1317
    %v1320 = vsel %vm268, %v1318, 0.0
    %1321 = vadd.xlane.f32.xlu0 %v1320
    %v1322 = vpop.xlane.xlu0 %1321
    %v1323 = vsel %vm268, %v1319, 0.0
    %1324 = vadd.xlane.f32.xlu0 %v1323
    %v1325 = vpop.xlane.xlu0 %1324
    %v1326 = vmul.f32 %v1322, %v1313
    %v1327 = vmul.f32 %v1325, %v1313
    %v1328 = vadd.f32 %v1326, 1e-05
    %v1329 = vadd.f32 %v1327, 1e-05
    %v1330 = vrsqrt.pop %v1328
    %v1331 = vrsqrt.pop %v1329
    %v1332 = vmul.f32 %v1316, %v1330
    %v1333 = vmul.f32 %v1317, %v1331
    %v1335 = vlaneseq
    %v1336 = vshrl.u32 %v1335, 7
    %v1337 = vsub.s32 0, %v1336
    %v1338 = vrot.slane %v1305, %v1337
    %v1340 = vmul.f32 %v1332, %v1338
    %v1341 = vmul.f32 %v1333, %v1338
    %v1343 = vlaneseq
    %v1344 = vshrl.u32 %v1343, 7
    %v1345 = vsub.s32 0, %v1344
    %v1346 = vrot.slane %v1306, %v1345
    %v1348 = vadd.f32 %v1340, %v1346
    %v1349 = vadd.f32 %v1341, %v1346
    %v1350 = vpack.c.bf16 %v1349, %v1348
    %v1351 = vld [vmem:[#allocation15] sm:$0xf]
    %v1352 = vld [vmem:[#allocation15 + $0x4] sm:$0xf]
    %v1353 = vld [vmem:[#allocation15 + $0x8] sm:$0xf]
    %v1354 = vld [vmem:[#allocation15 + $0xc] sm:$0xf]
    %v1355 = vld [vmem:[#allocation17] sm:$0x1]
    %v1357 = vlaneseq
    %v1358 = vshrl.u32 %v1357, 7
    %v1359 = vsub.s32 0, %v1358
    %v1360 = vrot.slane %v1355, %v1359
    %v1366 = vunpack.c.l.b16 %v1351
    %v1367 = vunpack.c.l.b16 %v1352
    %v1368 = vunpack.c.l.b16 %v1353
    %v1369 = vunpack.c.l.b16 %v1354
    %v1370 = vpack.c.b16 %v1367, %v1366
    %v1371 = vpack.c.b16 %v1369, %v1368
    %v1375 = vsel %vm268, %v1350, 0
    %1377 = vmatprep.subr.bf16.mxu0 0
    %1378 = vmatpush1.bf16.msra.mxu0 %v1370
    %1379 = vmatprep.subr.bf16.mxu0 0
    %1380 = vmatpush1.bf16.msra.mxu0 %v1371
    %1381 = vmatprep.subr.bf16.mxu0 0
    %1382 = vmatpush1.bf16.msra.mxu0 0
    %1383 = vmatprep.subr.bf16.mxu0 0
    %1384 = vmatpush1.bf16.msra.mxu0 0
    %1385 = vmatprep.subr.bf16.mxu0 0
    %1386 = vmatpush1.bf16.msra.mxu0 0
    %1387 = vmatprep.subr.bf16.mxu0 0
    %1388 = vmatpush1.bf16.msra.mxu0 0
    %1389 = vmatprep.subr.bf16.mxu0 0
    %1390 = vmatpush1.bf16.msra.mxu0 0
    %1391 = vmatprep.subr.bf16.mxu0 0
    %1392 = vmatpush1.bf16.msra.mxu0 0
    %1393 = vmatprep.subr.bf16.mxu0 0
    %1394 = vmatpush1.bf16.msra.mxu0 0
    %1395 = vmatprep.subr.bf16.mxu0 0
    %1396 = vmatpush1.bf16.msra.mxu0 0
    %1397 = vmatprep.subr.bf16.mxu0 0
    %1398 = vmatpush1.bf16.msra.mxu0 0
    %1399 = vmatprep.subr.bf16.mxu0 0
    %1400 = vmatpush1.bf16.msra.mxu0 0
    %1401 = vmatprep.subr.bf16.mxu0 0
    %1402 = vmatpush1.bf16.msra.mxu0 0
    %1403 = vmatprep.subr.bf16.mxu0 0
    %1404 = vmatpush1.bf16.msra.mxu0 0
    %1405 = vmatprep.subr.bf16.mxu0 0
    %1406 = vmatpush1.bf16.msra.mxu0 0
    %1407 = vmatprep.subr.bf16.mxu0 0
    %1408 = vmatpush1.bf16.msra.mxu0 0
    %1409 = vmatprep.mubr.bf16.mxu0 0
    %1410 = vmatmul.mubr.bf16.gmra.mrb[0].mxu0 %v1375
    %v1411 = vpop.f32.mrb[0].mxu0
    %v1412 = vadd.f32 %v1360, %v1411
    %v1413 = vpop.f32.mrb[0].mxu0
    %v1414 = vpop.f32.mrb[0].mxu0
    %v1415 = vadd.f32 %v1360, %v1414
    %v1416 = vpop.f32.mrb[0].mxu0
    %1417 = vdwg.mxu0
    %v1418 = vmul.f32 %v1412, %v1412
    %v1419 = vmul.f32 %v1415, %v1415
    %v1420 = vmul.f32 %v1412, %v1418
    %v1421 = vmul.f32 %v1415, %v1419
    %v1422 = vmul.f32 %v1420, 0.044715
    %v1423 = vmul.f32 %v1421, 0.044715
    %v1424 = vadd.f32 %v1412, %v1422
    %v1425 = vadd.f32 %v1415, %v1423
    %v1426 = vmul.f32 %v1424, 0.7978846
    %v1427 = vmul.f32 %v1425, 0.7978846
    %v1428 = vtanh.pop %v1426
    %v1429 = vtanh.pop %v1427
    %v1430 = vadd.f32 %v1428, 1.0
    %v1431 = vadd.f32 %v1429, 1.0
    %v1432 = vmul.f32 %v1430, 0.5
    %v1433 = vmul.f32 %v1431, 0.5
    %v1434 = vmul.f32 %v1412, %v1432
    %v1435 = vmul.f32 %v1415, %v1433
    %v1436 = vpack.c.bf16 %v1435, %v1434
    %v1437 = vld [vmem:[#allocation18] sm:$0xf]
    %v1438 = vld [vmem:[#allocation18 + $0x4] sm:$0xf]
    %v1439 = vld [vmem:[#allocation18 + $0x8] sm:$0xf]
    %v1440 = vld [vmem:[#allocation18 + $0xc] sm:$0xf]
    %v1441 = vld [vmem:[#allocation18 + $0x10] sm:$0xf]
    %v1442 = vld [vmem:[#allocation18 + $0x14] sm:$0xf]
    %v1443 = vld [vmem:[#allocation18 + $0x18] sm:$0xf]
    %v1444 = vld [vmem:[#allocation18 + $0x1c] sm:$0xf]
    %v1445 = vld [vmem:[#allocation20] sm:$0x1]
    %v1447 = vlaneseq
    %v1448 = vshrl.u32 %v1447, 7
    %v1449 = vsub.s32 0, %v1448
    %v1450 = vrot.slane %v1445, %v1449
    %v1460 = vunpack.c.l.b16 %v1437
    %v1461 = vunpack.c.l.b16 %v1438
    %v1462 = vunpack.c.l.b16 %v1439
    %v1463 = vunpack.c.l.b16 %v1440
    %v1464 = vunpack.c.l.b16 %v1441
    %v1465 = vunpack.c.l.b16 %v1442
    %v1466 = vunpack.c.l.b16 %v1443
    %v1467 = vunpack.c.l.b16 %v1444
    %v1468 = vpack.c.b16 %v1461, %v1460
    %v1469 = vpack.c.b16 %v1463, %v1462
    %v1470 = vpack.c.b16 %v1465, %v1464
    %v1471 = vpack.c.b16 %v1467, %v1466
    %vm1476 = vcmask 523264
    %v1478 = vsel %vm1476, %v1436, 0
    %1480 = vmatprep.subr.bf16.mxu0 0
    %1481 = vmatpush1.bf16.msra.mxu0 %v1468
    %1482 = vmatprep.subr.bf16.mxu0 0
    %1483 = vmatpush1.bf16.msra.mxu0 %v1469
    %1484 = vmatprep.subr.bf16.mxu0 0
    %1485 = vmatpush1.bf16.msra.mxu0 %v1470
    %1486 = vmatprep.subr.bf16.mxu0 0
    %1487 = vmatpush1.bf16.msra.mxu0 %v1471
    %1488 = vmatprep.subr.bf16.mxu0 0
    %1489 = vmatpush1.bf16.msra.mxu0 0
    %1490 = vmatprep.subr.bf16.mxu0 0
    %1491 = vmatpush1.bf16.msra.mxu0 0
    %1492 = vmatprep.subr.bf16.mxu0 0
    %1493 = vmatpush1.bf16.msra.mxu0 0
    %1494 = vmatprep.subr.bf16.mxu0 0
    %1495 = vmatpush1.bf16.msra.mxu0 0
    %1496 = vmatprep.subr.bf16.mxu0 0
    %1497 = vmatpush1.bf16.msra.mxu0 0
    %1498 = vmatprep.subr.bf16.mxu0 0
    %1499 = vmatpush1.bf16.msra.mxu0 0
    %1500 = vmatprep.subr.bf16.mxu0 0
    %1501 = vmatpush1.bf16.msra.mxu0 0
    %1502 = vmatprep.subr.bf16.mxu0 0
    %1503 = vmatpush1.bf16.msra.mxu0 0
    %1504 = vmatprep.subr.bf16.mxu0 0
    %1505 = vmatpush1.bf16.msra.mxu0 0
    %1506 = vmatprep.subr.bf16.mxu0 0
    %1507 = vmatpush1.bf16.msra.mxu0 0
    %1508 = vmatprep.subr.bf16.mxu0 0
    %1509 = vmatpush1.bf16.msra.mxu0 0
    %1510 = vmatprep.subr.bf16.mxu0 0
    %1511 = vmatpush1.bf16.msra.mxu0 0
    %1512 = vmatprep.mubr.bf16.mxu0 0
    %1513 = vmatmul.mubr.bf16.gmra.mrb[0].mxu0 %v1478
    %v1514 = vpop.f32.mrb[0].mxu0
    %v1515 = vadd.f32 %v1450, %v1514
    %v1516 = vpop.f32.mrb[0].mxu0
    %v1517 = vpop.f32.mrb[0].mxu0
    %v1518 = vadd.f32 %v1450, %v1517
    %v1519 = vpop.f32.mrb[0].mxu0
    %1520 = vdwg.mxu0
    %v1521 = vadd.f32 %v1348, %v1515
    %v1522 = vadd.f32 %v1349, %v1518
    %v1523 = vld [vmem:[#allocation21] sm:$0x1]
    %v1524 = vld [vmem:[#allocation23] sm:$0x1]
    %v1525 = vsel %vm268, %v1521, 0.0
    %1526 = vadd.xlane.f32.xlu0 %v1525
    %v1527 = vpop.xlane.xlu0 %1526
    %v1528 = vsel %vm268, %v1522, 0.0
    %1529 = vadd.xlane.f32.xlu0 %v1528
    %v1530 = vpop.xlane.xlu0 %1529
    %v1531 = vmul.f32 %v1527, %v1313
    %v1532 = vmul.f32 %v1530, %v1313
    %v1533 = vsub.f32 %v1521, %v1531
    %v1534 = vsub.f32 %v1522, %v1532
    %v1535 = vmul.f32 %v1533, %v1533
    %v1536 = vmul.f32 %v1534, %v1534
    %v1537 = vsel %vm268, %v1535, 0.0
    %1538 = vadd.xlane.f32.xlu0 %v1537
    %v1539 = vpop.xlane.xlu0 %1538
    %v1540 = vsel %vm268, %v1536, 0.0
    %1541 = vadd.xlane.f32.xlu0 %v1540
    %v1542 = vpop.xlane.xlu0 %1541
    %v1543 = vmul.f32 %v1539, %v1313
    %v1544 = vmul.f32 %v1542, %v1313
    %v1545 = vadd.f32 %v1543, 1e-05
    %v1546 = vadd.f32 %v1544, 1e-05
    %v1547 = vrsqrt.pop %v1545
    %v1548 = vrsqrt.pop %v1546
    %v1549 = vmul.f32 %v1533, %v1547
    %v1550 = vmul.f32 %v1534, %v1548
    %v1552 = vlaneseq
    %v1553 = vshrl.u32 %v1552, 7
    %v1554 = vsub.s32 0, %v1553
    %v1555 = vrot.slane %v1523, %v1554
    %v1557 = vmul.f32 %v1549, %v1555
    %v1558 = vmul.f32 %v1550, %v1555
    %v1560 = vlaneseq
    %v1561 = vshrl.u32 %v1560, 7
    %v1562 = vsub.s32 0, %v1561
    %v1563 = vrot.slane %v1524, %v1562
    %v1565 = vadd.f32 %v1557, %v1563
    %v1566 = vadd.f32 %v1558, %v1563
    %v1567 = vpack.c.bf16 %v1566, %v1565
    %s1568 = scalar_lea.vmem [#allocation6], 16
    %v1569 = vld [vmem:[%s1568] sm:$0xf]
    %v1570 = vld [vmem:[%s1568 + $0x4] sm:$0xf]
    %v1571 = vld [vmem:[%s1568 + $0x8] sm:$0xf]
    %v1572 = vld [vmem:[%s1568 + $0xc] sm:$0xf]
    %s1573 = scalar_lea.vmem [#allocation8], 1
    %v1574 = vld [vmem:[%s1573] sm:$0x1]
    %v1576 = vlaneseq
    %v1577 = vshrl.u32 %v1576, 7
    %v1578 = vsub.s32 0, %v1577
    %v1579 = vrot.slane %v1574, %v1578
    %v1585 = vunpack.c.l.b16 %v1569
    %v1586 = vunpack.c.l.b16 %v1570
    %v1587 = vunpack.c.l.b16 %v1571
    %v1588 = vunpack.c.l.b16 %v1572
    %v1589 = vpack.c.b16 %v1586, %v1585
    %v1590 = vpack.c.b16 %v1588, %v1587
    %v1594 = vsel %vm268, %v1567, 0
    %1596 = vmatprep.subr.bf16.mxu0 0
    %1597 = vmatpush1.bf16.msra.mxu0 %v1589
    %1598 = vmatprep.subr.bf16.mxu0 0
    %1599 = vmatpush1.bf16.msra.mxu0 %v1590
    %1600 = vmatprep.subr.bf16.mxu0 0
    %1601 = vmatpush1.bf16.msra.mxu0 0
    %1602 = vmatprep.subr.bf16.mxu0 0
    %1603 = vmatpush1.bf16.msra.mxu0 0
    %1604 = vmatprep.subr.bf16.mxu0 0
    %1605 = vmatpush1.bf16.msra.mxu0 0
    %1606 = vmatprep.subr.bf16.mxu0 0
    %1607 = vmatpush1.bf16.msra.mxu0 0
    %1608 = vmatprep.subr.bf16.mxu0 0
    %1609 = vmatpush1.bf16.msra.mxu0 0
    %1610 = vmatprep.subr.bf16.mxu0 0
    %1611 = vmatpush1.bf16.msra.mxu0 0
    %1612 = vmatprep.subr.bf16.mxu0 0
    %1613 = vmatpush1.bf16.msra.mxu0 0
    %1614 = vmatprep.subr.bf16.mxu0 0
    %1615 = vmatpush1.bf16.msra.mxu0 0
    %1616 = vmatprep.subr.bf16.mxu0 0
    %1617 = vmatpush1.bf16.msra.mxu0 0
    %1618 = vmatprep.subr.bf16.mxu0 0
    %1619 = vmatpush1.bf16.msra.mxu0 0
    %1620 = vmatprep.subr.bf16.mxu0 0
    %1621 = vmatpush1.bf16.msra.mxu0 0
    %1622 = vmatprep.subr.bf16.mxu0 0
    %1623 = vmatpush1.bf16.msra.mxu0 0
    %1624 = vmatprep.subr.bf16.mxu0 0
    %1625 = vmatpush1.bf16.msra.mxu0 0
    %1626 = vmatprep.subr.bf16.mxu0 0
    %1627 = vmatpush1.bf16.msra.mxu0 0
    %1628 = vmatprep.mubr.bf16.mxu0 0
    %1629 = vmatmul.mubr.bf16.gmra.mrb[0].mxu0 %v1594
    %v1630 = vpop.f32.mrb[0].mxu0
    %v1631 = vadd.f32 %v1579, %v1630
    %v1632 = vpop.f32.mrb[0].mxu0
    %v1633 = vpop.f32.mrb[0].mxu0
    %v1634 = vadd.f32 %v1579, %v1633
    %v1635 = vpop.f32.mrb[0].mxu0
    %1636 = vdwg.mxu0
    %v1637 = vpack.c.bf16 %v1631, %v1631
    %v1638 = vpack.c.bf16 %v1634, %v1634
    %1640 = vrot.lane.b32.xlu0 %v1637, 96
    %v1641 = vpop.permute.xlu0 %1640
    %v1643 = vsel %vm318, %v1637, 0
    %v1646 = vsel %vm318, %v1641, 0
    %1648 = vmatprep.subr.bf16.mxu0 0
    %1649 = vmatpush1.bf16.xpose.msra.mxu0 %v1646
    %1650 = vmatprep.subr.bf16.mxu0 0
    %1651 = vmatpush1.bf16.xpose.msra.mxu0 0
    %1652 = vmatprep.subr.bf16.mxu0 0
    %1653 = vmatpush1.bf16.xpose.msra.mxu0 0
    %1654 = vmatprep.subr.bf16.mxu0 0
    %1655 = vmatpush1.bf16.xpose.msra.mxu0 0
    %1656 = vmatprep.subr.bf16.mxu0 0
    %1657 = vmatpush1.bf16.xpose.msra.mxu0 0
    %1658 = vmatprep.subr.bf16.mxu0 0
    %1659 = vmatpush1.bf16.xpose.msra.mxu0 0
    %1660 = vmatprep.subr.bf16.mxu0 0
    %1661 = vmatpush1.bf16.xpose.msra.mxu0 0
    %1662 = vmatprep.subr.bf16.mxu0 0
    %1663 = vmatpush1.bf16.xpose.msra.mxu0 0
    %1664 = vmatprep.subr.bf16.mxu0 0
    %1665 = vmatpush1.bf16.xpose.msra.mxu0 0
    %1666 = vmatprep.subr.bf16.mxu0 0
    %1667 = vmatpush1.bf16.xpose.msra.mxu0 0
    %1668 = vmatprep.subr.bf16.mxu0 0
    %1669 = vmatpush1.bf16.xpose.msra.mxu0 0
    %1670 = vmatprep.subr.bf16.mxu0 0
    %1671 = vmatpush1.bf16.xpose.msra.mxu0 0
    %1672 = vmatprep.subr.bf16.mxu0 0
    %1673 = vmatpush1.bf16.xpose.msra.mxu0 0
    %1674 = vmatprep.subr.bf16.mxu0 0
    %1675 = vmatpush1.bf16.xpose.msra.mxu0 0
    %1676 = vmatprep.subr.bf16.mxu0 0
    %1677 = vmatpush1.bf16.xpose.msra.mxu0 0
    %1678 = vmatprep.subr.bf16.mxu0 0
    %1679 = vmatpush1.bf16.xpose.msra.mxu0 0
    %1680 = vmatprep.mubr.bf16.mxu0 0
    %1681 = vmatmul.mubr.bf16.gmra.mrb[0].mxu0 %v1643
    %v1682 = vpop.f32.mrb[0].mxu0
    %v1683 = vadd.f32 0.0, %v1682
    %v1684 = vpop.f32.mrb[0].mxu0
    %v1685 = vpop.f32.mrb[0].mxu0
    %v1686 = vpop.f32.mrb[0].mxu0
    %1687 = vdwg.mxu0
    %1689 = vrot.lane.b32.xlu0 %v1638, 96
    %v1690 = vpop.permute.xlu0 %1689
    %v1692 = vsel %vm318, %v1638, 0
    %v1695 = vsel %vm318, %v1690, 0
    %1697 = vmatprep.subr.bf16.mxu0 0
    %1698 = vmatpush1.bf16.xpose.msra.mxu0 %v1695
    %1699 = vmatprep.subr.bf16.mxu0 0
    %1700 = vmatpush1.bf16.xpose.msra.mxu0 0
    %1701 = vmatprep.subr.bf16.mxu0 0
    %1702 = vmatpush1.bf16.xpose.msra.mxu0 0
    %1703 = vmatprep.subr.bf16.mxu0 0
    %1704 = vmatpush1.bf16.xpose.msra.mxu0 0
    %1705 = vmatprep.subr.bf16.mxu0 0
    %1706 = vmatpush1.bf16.xpose.msra.mxu0 0
    %1707 = vmatprep.subr.bf16.mxu0 0
    %1708 = vmatpush1.bf16.xpose.msra.mxu0 0
    %1709 = vmatprep.subr.bf16.mxu0 0
    %1710 = vmatpush1.bf16.xpose.msra.mxu0 0
    %1711 = vmatprep.subr.bf16.mxu0 0
    %1712 = vmatpush1.bf16.xpose.msra.mxu0 0
    %1713 = vmatprep.subr.bf16.mxu0 0
    %1714 = vmatpush1.bf16.xpose.msra.mxu0 0
    %1715 = vmatprep.subr.bf16.mxu0 0
    %1716 = vmatpush1.bf16.xpose.msra.mxu0 0
    %1717 = vmatprep.subr.bf16.mxu0 0
    %1718 = vmatpush1.bf16.xpose.msra.mxu0 0
    %1719 = vmatprep.subr.bf16.mxu0 0
    %1720 = vmatpush1.bf16.xpose.msra.mxu0 0
    %1721 = vmatprep.subr.bf16.mxu0 0
    %1722 = vmatpush1.bf16.xpose.msra.mxu0 0
    %1723 = vmatprep.subr.bf16.mxu0 0
    %1724 = vmatpush1.bf16.xpose.msra.mxu0 0
    %1725 = vmatprep.subr.bf16.mxu0 0
    %1726 = vmatpush1.bf16.xpose.msra.mxu0 0
    %1727 = vmatprep.subr.bf16.mxu0 0
    %1728 = vmatpush1.bf16.xpose.msra.mxu0 0
    %1729 = vmatprep.mubr.bf16.mxu0 0
    %1730 = vmatmul.mubr.bf16.gmra.mrb[0].mxu0 %v1692
    %v1731 = vpop.f32.mrb[0].mxu0
    %v1732 = vadd.f32 0.0, %v1731
    %v1733 = vpop.f32.mrb[0].mxu0
    %v1734 = vpop.f32.mrb[0].mxu0
    %v1735 = vpop.f32.mrb[0].mxu0
    %1736 = vdwg.mxu0
    %v1737 = vmul.f32 %v1683, 0.35355338
    %v1738 = vmul.f32 %v1732, 0.35355338
    %v1739 = vsel %vm318, %v1737, -inf
    %1740 = vmax.xlane.f32.xlu0 %v1739
    %v1741 = vpop.xlane.xlu0 %1740
    %v1742 = vsel %vm318, %v1738, -inf
    %1743 = vmax.xlane.f32.xlu0 %v1742
    %v1744 = vpop.xlane.xlu0 %1743
    %v1745 = vsub.f32 %v1737, %v1741
    %v1746 = vsub.f32 %v1738, %v1744
    %v1747 = vmul.f32 %v1745, 1.442695
    %v1748 = vpow.pop %v1747
    %v1749 = vmul.f32 %v1746, 1.442695
    %v1750 = vpow.pop %v1749
    %v1751 = vsel %vm318, %v1748, 0.0
    %1752 = vadd.xlane.f32.xlu0 %v1751
    %v1753 = vpop.xlane.xlu0 %1752
    %v1754 = vsel %vm318, %v1750, 0.0
    %1755 = vadd.xlane.f32.xlu0 %v1754
    %v1756 = vpop.xlane.xlu0 %1755
    %v1757 = vrcp.pop %v1753
    %v1758 = vrcp.pop %v1756
    %v1759 = vmul.f32 %v1748, %v1757
    %v1760 = vmul.f32 %v1750, %v1758
    %v1761 = vpack.c.bf16 %v1759, %v1759
    %v1762 = vpack.c.bf16 %v1760, %v1760
    %1763 = vrot.lane.b32.xlu0 %v1637, 64
    %v1764 = vpop.permute.xlu0 %1763
    %v1766 = vsel %vm318, %v1761, 0
    %v1769 = vsel %vm445, %v1764, 0
    %1771 = vmatprep.subr.bf16.mxu0 0
    %1772 = vmatpush1.bf16.msra.mxu0 %v1769
    %1773 = vmatprep.subr.bf16.mxu0 0
    %1774 = vmatpush1.bf16.msra.mxu0 0
    %1775 = vmatprep.subr.bf16.mxu0 0
    %1776 = vmatpush1.bf16.msra.mxu0 0
    %1777 = vmatprep.subr.bf16.mxu0 0
    %1778 = vmatpush1.bf16.msra.mxu0 0
    %1779 = vmatprep.subr.bf16.mxu0 0
    %1780 = vmatpush1.bf16.msra.mxu0 0
    %1781 = vmatprep.subr.bf16.mxu0 0
    %1782 = vmatpush1.bf16.msra.mxu0 0
    %1783 = vmatprep.subr.bf16.mxu0 0
    %1784 = vmatpush1.bf16.msra.mxu0 0
    %1785 = vmatprep.subr.bf16.mxu0 0
    %1786 = vmatpush1.bf16.msra.mxu0 0
    %1787 = vmatprep.subr.bf16.mxu0 0
    %1788 = vmatpush1.bf16.msra.mxu0 0
    %1789 = vmatprep.subr.bf16.mxu0 0
    %1790 = vmatpush1.bf16.msra.mxu0 0
    %1791 = vmatprep.subr.bf16.mxu0 0
    %1792 = vmatpush1.bf16.msra.mxu0 0
    %1793 = vmatprep.subr.bf16.mxu0 0
    %1794 = vmatpush1.bf16.msra.mxu0 0
    %1795 = vmatprep.subr.bf16.mxu0 0
    %1796 = vmatpush1.bf16.msra.mxu0 0
    %1797 = vmatprep.subr.bf16.mxu0 0
    %1798 = vmatpush1.bf16.msra.mxu0 0
    %1799 = vmatprep.subr.bf16.mxu0 0
    %1800 = vmatpush1.bf16.msra.mxu0 0
    %1801 = vmatprep.subr.bf16.mxu0 0
    %1802 = vmatpush1.bf16.msra.mxu0 0
    %1803 = vmatprep.mubr.bf16.mxu0 0
    %1804 = vmatmul.mubr.bf16.gmra.mrb[0].mxu0 %v1766
    %v1805 = vpop.f32.mrb[0].mxu0
    %v1806 = vadd.f32 0.0, %v1805
    %v1807 = vpop.f32.mrb[0].mxu0
    %v1808 = vpop.f32.mrb[0].mxu0
    %v1809 = vpop.f32.mrb[0].mxu0
    %1810 = vdwg.mxu0
    %1811 = vrot.lane.b32.xlu0 %v1638, 64
    %v1812 = vpop.permute.xlu0 %1811
    %v1814 = vsel %vm318, %v1762, 0
    %v1817 = vsel %vm445, %v1812, 0
    %1819 = vmatprep.subr.bf16.mxu0 0
    %1820 = vmatpush1.bf16.msra.mxu0 %v1817
    %1821 = vmatprep.subr.bf16.mxu0 0
    %1822 = vmatpush1.bf16.msra.mxu0 0
    %1823 = vmatprep.subr.bf16.mxu0 0
    %1824 = vmatpush1.bf16.msra.mxu0 0
    %1825 = vmatprep.subr.bf16.mxu0 0
    %1826 = vmatpush1.bf16.msra.mxu0 0
    %1827 = vmatprep.subr.bf16.mxu0 0
    %1828 = vmatpush1.bf16.msra.mxu0 0
    %1829 = vmatprep.subr.bf16.mxu0 0
    %1830 = vmatpush1.bf16.msra.mxu0 0
    %1831 = vmatprep.subr.bf16.mxu0 0
    %1832 = vmatpush1.bf16.msra.mxu0 0
    %1833 = vmatprep.subr.bf16.mxu0 0
    %1834 = vmatpush1.bf16.msra.mxu0 0
    %1835 = vmatprep.subr.bf16.mxu0 0
    %1836 = vmatpush1.bf16.msra.mxu0 0
    %1837 = vmatprep.subr.bf16.mxu0 0
    %1838 = vmatpush1.bf16.msra.mxu0 0
    %1839 = vmatprep.subr.bf16.mxu0 0
    %1840 = vmatpush1.bf16.msra.mxu0 0
    %1841 = vmatprep.subr.bf16.mxu0 0
    %1842 = vmatpush1.bf16.msra.mxu0 0
    %1843 = vmatprep.subr.bf16.mxu0 0
    %1844 = vmatpush1.bf16.msra.mxu0 0
    %1845 = vmatprep.subr.bf16.mxu0 0
    %1846 = vmatpush1.bf16.msra.mxu0 0
    %1847 = vmatprep.subr.bf16.mxu0 0
    %1848 = vmatpush1.bf16.msra.mxu0 0
    %1849 = vmatprep.subr.bf16.mxu0 0
    %1850 = vmatpush1.bf16.msra.mxu0 0
    %1851 = vmatprep.mubr.bf16.mxu0 0
    %1852 = vmatmul.mubr.bf16.gmra.mrb[0].mxu0 %v1814
    %v1853 = vpop.f32.mrb[0].mxu0
    %v1854 = vadd.f32 0.0, %v1853
    %v1855 = vpop.f32.mrb[0].mxu0
    %v1856 = vpop.f32.mrb[0].mxu0
    %v1857 = vpop.f32.mrb[0].mxu0
    %1858 = vdwg.mxu0
    %1859 = vrot.lane.b32.xlu0 %v1637, 120
    %v1860 = vpop.permute.xlu0 %1859
    %1861 = vrot.lane.b32.xlu0 %v1637, 88
    %v1862 = vpop.permute.xlu0 %1861
    %v1864 = vsel %vm318, %v1860, 0
    %v1867 = vsel %vm318, %v1862, 0
    %1869 = vmatprep.subr.bf16.mxu0 0
    %1870 = vmatpush1.bf16.xpose.msra.mxu0 %v1867
    %1871 = vmatprep.subr.bf16.mxu0 0
    %1872 = vmatpush1.bf16.xpose.msra.mxu0 0
    %1873 = vmatprep.subr.bf16.mxu0 0
    %1874 = vmatpush1.bf16.xpose.msra.mxu0 0
    %1875 = vmatprep.subr.bf16.mxu0 0
    %1876 = vmatpush1.bf16.xpose.msra.mxu0 0
    %1877 = vmatprep.subr.bf16.mxu0 0
    %1878 = vmatpush1.bf16.xpose.msra.mxu0 0
    %1879 = vmatprep.subr.bf16.mxu0 0
    %1880 = vmatpush1.bf16.xpose.msra.mxu0 0
    %1881 = vmatprep.subr.bf16.mxu0 0
    %1882 = vmatpush1.bf16.xpose.msra.mxu0 0
    %1883 = vmatprep.subr.bf16.mxu0 0
    %1884 = vmatpush1.bf16.xpose.msra.mxu0 0
    %1885 = vmatprep.subr.bf16.mxu0 0
    %1886 = vmatpush1.bf16.xpose.msra.mxu0 0
    %1887 = vmatprep.subr.bf16.mxu0 0
    %1888 = vmatpush1.bf16.xpose.msra.mxu0 0
    %1889 = vmatprep.subr.bf16.mxu0 0
    %1890 = vmatpush1.bf16.xpose.msra.mxu0 0
    %1891 = vmatprep.subr.bf16.mxu0 0
    %1892 = vmatpush1.bf16.xpose.msra.mxu0 0
    %1893 = vmatprep.subr.bf16.mxu0 0
    %1894 = vmatpush1.bf16.xpose.msra.mxu0 0
    %1895 = vmatprep.subr.bf16.mxu0 0
    %1896 = vmatpush1.bf16.xpose.msra.mxu0 0
    %1897 = vmatprep.subr.bf16.mxu0 0
    %1898 = vmatpush1.bf16.xpose.msra.mxu0 0
    %1899 = vmatprep.subr.bf16.mxu0 0
    %1900 = vmatpush1.bf16.xpose.msra.mxu0 0
    %1901 = vmatprep.mubr.bf16.mxu0 0
    %1902 = vmatmul.mubr.bf16.gmra.mrb[0].mxu0 %v1864
    %v1903 = vpop.f32.mrb[0].mxu0
    %v1904 = vadd.f32 0.0, %v1903
    %v1905 = vpop.f32.mrb[0].mxu0
    %v1906 = vpop.f32.mrb[0].mxu0
    %v1907 = vpop.f32.mrb[0].mxu0
    %1908 = vdwg.mxu0
    %1909 = vrot.lane.b32.xlu0 %v1638, 120
    %v1910 = vpop.permute.xlu0 %1909
    %1911 = vrot.lane.b32.xlu0 %v1638, 88
    %v1912 = vpop.permute.xlu0 %1911
    %v1914 = vsel %vm318, %v1910, 0
    %v1917 = vsel %vm318, %v1912, 0
    %1919 = vmatprep.subr.bf16.mxu0 0
    %1920 = vmatpush1.bf16.xpose.msra.mxu0 %v1917
    %1921 = vmatprep.subr.bf16.mxu0 0
    %1922 = vmatpush1.bf16.xpose.msra.mxu0 0
    %1923 = vmatprep.subr.bf16.mxu0 0
    %1924 = vmatpush1.bf16.xpose.msra.mxu0 0
    %1925 = vmatprep.subr.bf16.mxu0 0
    %1926 = vmatpush1.bf16.xpose.msra.mxu0 0
    %1927 = vmatprep.subr.bf16.mxu0 0
    %1928 = vmatpush1.bf16.xpose.msra.mxu0 0
    %1929 = vmatprep.subr.bf16.mxu0 0
    %1930 = vmatpush1.bf16.xpose.msra.mxu0 0
    %1931 = vmatprep.subr.bf16.mxu0 0
    %1932 = vmatpush1.bf16.xpose.msra.mxu0 0
    %1933 = vmatprep.subr.bf16.mxu0 0
    %1934 = vmatpush1.bf16.xpose.msra.mxu0 0
    %1935 = vmatprep.subr.bf16.mxu0 0
    %1936 = vmatpush1.bf16.xpose.msra.mxu0 0
    %1937 = vmatprep.subr.bf16.mxu0 0
    %1938 = vmatpush1.bf16.xpose.msra.mxu0 0
    %1939 = vmatprep.subr.bf16.mxu0 0
    %1940 = vmatpush1.bf16.xpose.msra.mxu0 0
    %1941 = vmatprep.subr.bf16.mxu0 0
    %1942 = vmatpush1.bf16.xpose.msra.mxu0 0
    %1943 = vmatprep.subr.bf16.mxu0 0
    %1944 = vmatpush1.bf16.xpose.msra.mxu0 0
    %1945 = vmatprep.subr.bf16.mxu0 0
    %1946 = vmatpush1.bf16.xpose.msra.mxu0 0
    %1947 = vmatprep.subr.bf16.mxu0 0
    %1948 = vmatpush1.bf16.xpose.msra.mxu0 0
    %1949 = vmatprep.subr.bf16.mxu0 0
    %1950 = vmatpush1.bf16.xpose.msra.mxu0 0
    %1951 = vmatprep.mubr.bf16.mxu0 0
    %1952 = vmatmul.mubr.bf16.gmra.mrb[0].mxu0 %v1914
    %v1953 = vpop.f32.mrb[0].mxu0
    %v1954 = vadd.f32 0.0, %v1953
    %v1955 = vpop.f32.mrb[0].mxu0
    %v1956 = vpop.f32.mrb[0].mxu0
    %v1957 = vpop.f32.mrb[0].mxu0
    %1958 = vdwg.mxu0
    %v1959 = vmul.f32 %v1904, 0.35355338
    %v1960 = vmul.f32 %v1954, 0.35355338
    %v1961 = vsel %vm318, %v1959, -inf
    %1962 = vmax.xlane.f32.xlu0 %v1961
    %v1963 = vpop.xlane.xlu0 %1962
    %v1964 = vsel %vm318, %v1960, -inf
    %1965 = vmax.xlane.f32.xlu0 %v1964
    %v1966 = vpop.xlane.xlu0 %1965
    %v1967 = vsub.f32 %v1959, %v1963
    %v1968 = vsub.f32 %v1960, %v1966
    %v1969 = vmul.f32 %v1967, 1.442695
    %v1970 = vpow.pop %v1969
    %v1971 = vmul.f32 %v1968, 1.442695
    %v1972 = vpow.pop %v1971
    %v1973 = vsel %vm318, %v1970, 0.0
    %1974 = vadd.xlane.f32.xlu0 %v1973
    %v1975 = vpop.xlane.xlu0 %1974
    %v1976 = vsel %vm318, %v1972, 0.0
    %1977 = vadd.xlane.f32.xlu0 %v1976
    %v1978 = vpop.xlane.xlu0 %1977
    %v1979 = vrcp.pop %v1975
    %v1980 = vrcp.pop %v1978
    %v1981 = vmul.f32 %v1970, %v1979
    %v1982 = vmul.f32 %v1972, %v1980
    %v1983 = vpack.c.bf16 %v1981, %v1981
    %v1984 = vpack.c.bf16 %v1982, %v1982
    %1985 = vrot.lane.b32.xlu0 %v1637, 56
    %v1986 = vpop.permute.xlu0 %1985
    %v1988 = vsel %vm318, %v1983, 0
    %v1991 = vsel %vm445, %v1986, 0
    %1993 = vmatprep.subr.bf16.mxu0 0
    %1994 = vmatpush1.bf16.msra.mxu0 %v1991
    %1995 = vmatprep.subr.bf16.mxu0 0
    %1996 = vmatpush1.bf16.msra.mxu0 0
    %1997 = vmatprep.subr.bf16.mxu0 0
    %1998 = vmatpush1.bf16.msra.mxu0 0
    %1999 = vmatprep.subr.bf16.mxu0 0
    %2000 = vmatpush1.bf16.msra.mxu0 0
    %2001 = vmatprep.subr.bf16.mxu0 0
    %2002 = vmatpush1.bf16.msra.mxu0 0
    %2003 = vmatprep.subr.bf16.mxu0 0
    %2004 = vmatpush1.bf16.msra.mxu0 0
    %2005 = vmatprep.subr.bf16.mxu0 0
    %2006 = vmatpush1.bf16.msra.mxu0 0
    %2007 = vmatprep.subr.bf16.mxu0 0
    %2008 = vmatpush1.bf16.msra.mxu0 0
    %2009 = vmatprep.subr.bf16.mxu0 0
    %2010 = vmatpush1.bf16.msra.mxu0 0
    %2011 = vmatprep.subr.bf16.mxu0 0
    %2012 = vmatpush1.bf16.msra.mxu0 0
    %2013 = vmatprep.subr.bf16.mxu0 0
    %2014 = vmatpush1.bf16.msra.mxu0 0
    %2015 = vmatprep.subr.bf16.mxu0 0
    %2016 = vmatpush1.bf16.msra.mxu0 0
    %2017 = vmatprep.subr.bf16.mxu0 0
    %2018 = vmatpush1.bf16.msra.mxu0 0
    %2019 = vmatprep.subr.bf16.mxu0 0
    %2020 = vmatpush1.bf16.msra.mxu0 0
    %2021 = vmatprep.subr.bf16.mxu0 0
    %2022 = vmatpush1.bf16.msra.mxu0 0
    %2023 = vmatprep.subr.bf16.mxu0 0
    %2024 = vmatpush1.bf16.msra.mxu0 0
    %2025 = vmatprep.mubr.bf16.mxu0 0
    %2026 = vmatmul.mubr.bf16.gmra.mrb[0].mxu0 %v1988
    %v2027 = vpop.f32.mrb[0].mxu0
    %v2028 = vadd.f32 0.0, %v2027
    %v2029 = vpop.f32.mrb[0].mxu0
    %v2030 = vpop.f32.mrb[0].mxu0
    %v2031 = vpop.f32.mrb[0].mxu0
    %2032 = vdwg.mxu0
    %2033 = vrot.lane.b32.xlu0 %v1638, 56
    %v2034 = vpop.permute.xlu0 %2033
    %v2036 = vsel %vm318, %v1984, 0
    %v2039 = vsel %vm445, %v2034, 0
    %2041 = vmatprep.subr.bf16.mxu0 0
    %2042 = vmatpush1.bf16.msra.mxu0 %v2039
    %2043 = vmatprep.subr.bf16.mxu0 0
    %2044 = vmatpush1.bf16.msra.mxu0 0
    %2045 = vmatprep.subr.bf16.mxu0 0
    %2046 = vmatpush1.bf16.msra.mxu0 0
    %2047 = vmatprep.subr.bf16.mxu0 0
    %2048 = vmatpush1.bf16.msra.mxu0 0
    %2049 = vmatprep.subr.bf16.mxu0 0
    %2050 = vmatpush1.bf16.msra.mxu0 0
    %2051 = vmatprep.subr.bf16.mxu0 0
    %2052 = vmatpush1.bf16.msra.mxu0 0
    %2053 = vmatprep.subr.bf16.mxu0 0
    %2054 = vmatpush1.bf16.msra.mxu0 0
    %2055 = vmatprep.subr.bf16.mxu0 0
    %2056 = vmatpush1.bf16.msra.mxu0 0
    %2057 = vmatprep.subr.bf16.mxu0 0
    %2058 = vmatpush1.bf16.msra.mxu0 0
    %2059 = vmatprep.subr.bf16.mxu0 0
    %2060 = vmatpush1.bf16.msra.mxu0 0
    %2061 = vmatprep.subr.bf16.mxu0 0
    %2062 = vmatpush1.bf16.msra.mxu0 0
    %2063 = vmatprep.subr.bf16.mxu0 0
    %2064 = vmatpush1.bf16.msra.mxu0 0
    %2065 = vmatprep.subr.bf16.mxu0 0
    %2066 = vmatpush1.bf16.msra.mxu0 0
    %2067 = vmatprep.subr.bf16.mxu0 0
    %2068 = vmatpush1.bf16.msra.mxu0 0
    %2069 = vmatprep.subr.bf16.mxu0 0
    %2070 = vmatpush1.bf16.msra.mxu0 0
    %2071 = vmatprep.subr.bf16.mxu0 0
    %2072 = vmatpush1.bf16.msra.mxu0 0
    %2073 = vmatprep.mubr.bf16.mxu0 0
    %2074 = vmatmul.mubr.bf16.gmra.mrb[0].mxu0 %v2036
    %v2075 = vpop.f32.mrb[0].mxu0
    %v2076 = vadd.f32 0.0, %v2075
    %v2077 = vpop.f32.mrb[0].mxu0
    %v2078 = vpop.f32.mrb[0].mxu0
    %v2079 = vpop.f32.mrb[0].mxu0
    %2080 = vdwg.mxu0
    %2081 = vrot.lane.b32.xlu0 %v1637, 112
    %v2082 = vpop.permute.xlu0 %2081
    %2083 = vrot.lane.b32.xlu0 %v1637, 80
    %v2084 = vpop.permute.xlu0 %2083
    %v2086 = vsel %vm318, %v2082, 0
    %v2089 = vsel %vm318, %v2084, 0
    %2091 = vmatprep.subr.bf16.mxu0 0
    %2092 = vmatpush1.bf16.xpose.msra.mxu0 %v2089
    %2093 = vmatprep.subr.bf16.mxu0 0
    %2094 = vmatpush1.bf16.xpose.msra.mxu0 0
    %2095 = vmatprep.subr.bf16.mxu0 0
    %2096 = vmatpush1.bf16.xpose.msra.mxu0 0
    %2097 = vmatprep.subr.bf16.mxu0 0
    %2098 = vmatpush1.bf16.xpose.msra.mxu0 0
    %2099 = vmatprep.subr.bf16.mxu0 0
    %2100 = vmatpush1.bf16.xpose.msra.mxu0 0
    %2101 = vmatprep.subr.bf16.mxu0 0
    %2102 = vmatpush1.bf16.xpose.msra.mxu0 0
    %2103 = vmatprep.subr.bf16.mxu0 0
    %2104 = vmatpush1.bf16.xpose.msra.mxu0 0
    %2105 = vmatprep.subr.bf16.mxu0 0
    %2106 = vmatpush1.bf16.xpose.msra.mxu0 0
    %2107 = vmatprep.subr.bf16.mxu0 0
    %2108 = vmatpush1.bf16.xpose.msra.mxu0 0
    %2109 = vmatprep.subr.bf16.mxu0 0
    %2110 = vmatpush1.bf16.xpose.msra.mxu0 0
    %2111 = vmatprep.subr.bf16.mxu0 0
    %2112 = vmatpush1.bf16.xpose.msra.mxu0 0
    %2113 = vmatprep.subr.bf16.mxu0 0
    %2114 = vmatpush1.bf16.xpose.msra.mxu0 0
    %2115 = vmatprep.subr.bf16.mxu0 0
    %2116 = vmatpush1.bf16.xpose.msra.mxu0 0
    %2117 = vmatprep.subr.bf16.mxu0 0
    %2118 = vmatpush1.bf16.xpose.msra.mxu0 0
    %2119 = vmatprep.subr.bf16.mxu0 0
    %2120 = vmatpush1.bf16.xpose.msra.mxu0 0
    %2121 = vmatprep.subr.bf16.mxu0 0
    %2122 = vmatpush1.bf16.xpose.msra.mxu0 0
    %2123 = vmatprep.mubr.bf16.mxu0 0
    %2124 = vmatmul.mubr.bf16.gmra.mrb[0].mxu0 %v2086
    %v2125 = vpop.f32.mrb[0].mxu0
    %v2126 = vadd.f32 0.0, %v2125
    %v2127 = vpop.f32.mrb[0].mxu0
    %v2128 = vpop.f32.mrb[0].mxu0
    %v2129 = vpop.f32.mrb[0].mxu0
    %2130 = vdwg.mxu0
    %2131 = vrot.lane.b32.xlu0 %v1638, 112
    %v2132 = vpop.permute.xlu0 %2131
    %2133 = vrot.lane.b32.xlu0 %v1638, 80
    %v2134 = vpop.permute.xlu0 %2133
    %v2136 = vsel %vm318, %v2132, 0
    %v2139 = vsel %vm318, %v2134, 0
    %2141 = vmatprep.subr.bf16.mxu0 0
    %2142 = vmatpush1.bf16.xpose.msra.mxu0 %v2139
    %2143 = vmatprep.subr.bf16.mxu0 0
    %2144 = vmatpush1.bf16.xpose.msra.mxu0 0
    %2145 = vmatprep.subr.bf16.mxu0 0
    %2146 = vmatpush1.bf16.xpose.msra.mxu0 0
    %2147 = vmatprep.subr.bf16.mxu0 0
    %2148 = vmatpush1.bf16.xpose.msra.mxu0 0
    %2149 = vmatprep.subr.bf16.mxu0 0
    %2150 = vmatpush1.bf16.xpose.msra.mxu0 0
    %2151 = vmatprep.subr.bf16.mxu0 0
    %2152 = vmatpush1.bf16.xpose.msra.mxu0 0
    %2153 = vmatprep.subr.bf16.mxu0 0
    %2154 = vmatpush1.bf16.xpose.msra.mxu0 0
    %2155 = vmatprep.subr.bf16.mxu0 0
    %2156 = vmatpush1.bf16.xpose.msra.mxu0 0
    %2157 = vmatprep.subr.bf16.mxu0 0
    %2158 = vmatpush1.bf16.xpose.msra.mxu0 0
    %2159 = vmatprep.subr.bf16.mxu0 0
    %2160 = vmatpush1.bf16.xpose.msra.mxu0 0
    %2161 = vmatprep.subr.bf16.mxu0 0
    %2162 = vmatpush1.bf16.xpose.msra.mxu0 0
    %2163 = vmatprep.subr.bf16.mxu0 0
    %2164 = vmatpush1.bf16.xpose.msra.mxu0 0
    %2165 = vmatprep.subr.bf16.mxu0 0
    %2166 = vmatpush1.bf16.xpose.msra.mxu0 0
    %2167 = vmatprep.subr.bf16.mxu0 0
    %2168 = vmatpush1.bf16.xpose.msra.mxu0 0
    %2169 = vmatprep.subr.bf16.mxu0 0
    %2170 = vmatpush1.bf16.xpose.msra.mxu0 0
    %2171 = vmatprep.subr.bf16.mxu0 0
    %2172 = vmatpush1.bf16.xpose.msra.mxu0 0
    %2173 = vmatprep.mubr.bf16.mxu0 0
    %2174 = vmatmul.mubr.bf16.gmra.mrb[0].mxu0 %v2136
    %v2175 = vpop.f32.mrb[0].mxu0
    %v2176 = vadd.f32 0.0, %v2175
    %v2177 = vpop.f32.mrb[0].mxu0
    %v2178 = vpop.f32.mrb[0].mxu0
    %v2179 = vpop.f32.mrb[0].mxu0
    %2180 = vdwg.mxu0
    %v2181 = vmul.f32 %v2126, 0.35355338
    %v2182 = vmul.f32 %v2176, 0.35355338
    %v2183 = vsel %vm318, %v2181, -inf
    %2184 = vmax.xlane.f32.xlu0 %v2183
    %v2185 = vpop.xlane.xlu0 %2184
    %v2186 = vsel %vm318, %v2182, -inf
    %2187 = vmax.xlane.f32.xlu0 %v2186
    %v2188 = vpop.xlane.xlu0 %2187
    %v2189 = vsub.f32 %v2181, %v2185
    %v2190 = vsub.f32 %v2182, %v2188
    %v2191 = vmul.f32 %v2189, 1.442695
    %v2192 = vpow.pop %v2191
    %v2193 = vmul.f32 %v2190, 1.442695
    %v2194 = vpow.pop %v2193
    %v2195 = vsel %vm318, %v2192, 0.0
    %2196 = vadd.xlane.f32.xlu0 %v2195
    %v2197 = vpop.xlane.xlu0 %2196
    %v2198 = vsel %vm318, %v2194, 0.0
    %2199 = vadd.xlane.f32.xlu0 %v2198
    %v2200 = vpop.xlane.xlu0 %2199
    %v2201 = vrcp.pop %v2197
    %v2202 = vrcp.pop %v2200
    %v2203 = vmul.f32 %v2192, %v2201
    %v2204 = vmul.f32 %v2194, %v2202
    %v2205 = vpack.c.bf16 %v2203, %v2203
    %v2206 = vpack.c.bf16 %v2204, %v2204
    %2207 = vrot.lane.b32.xlu0 %v1637, 48
    %v2208 = vpop.permute.xlu0 %2207
    %v2210 = vsel %vm318, %v2205, 0
    %v2213 = vsel %vm445, %v2208, 0
    %2215 = vmatprep.subr.bf16.mxu0 0
    %2216 = vmatpush1.bf16.msra.mxu0 %v2213
    %2217 = vmatprep.subr.bf16.mxu0 0
    %2218 = vmatpush1.bf16.msra.mxu0 0
    %2219 = vmatprep.subr.bf16.mxu0 0
    %2220 = vmatpush1.bf16.msra.mxu0 0
    %2221 = vmatprep.subr.bf16.mxu0 0
    %2222 = vmatpush1.bf16.msra.mxu0 0
    %2223 = vmatprep.subr.bf16.mxu0 0
    %2224 = vmatpush1.bf16.msra.mxu0 0
    %2225 = vmatprep.subr.bf16.mxu0 0
    %2226 = vmatpush1.bf16.msra.mxu0 0
    %2227 = vmatprep.subr.bf16.mxu0 0
    %2228 = vmatpush1.bf16.msra.mxu0 0
    %2229 = vmatprep.subr.bf16.mxu0 0
    %2230 = vmatpush1.bf16.msra.mxu0 0
    %2231 = vmatprep.subr.bf16.mxu0 0
    %2232 = vmatpush1.bf16.msra.mxu0 0
    %2233 = vmatprep.subr.bf16.mxu0 0
    %2234 = vmatpush1.bf16.msra.mxu0 0
    %2235 = vmatprep.subr.bf16.mxu0 0
    %2236 = vmatpush1.bf16.msra.mxu0 0
    %2237 = vmatprep.subr.bf16.mxu0 0
    %2238 = vmatpush1.bf16.msra.mxu0 0
    %2239 = vmatprep.subr.bf16.mxu0 0
    %2240 = vmatpush1.bf16.msra.mxu0 0
    %2241 = vmatprep.subr.bf16.mxu0 0
    %2242 = vmatpush1.bf16.msra.mxu0 0
    %2243 = vmatprep.subr.bf16.mxu0 0
    %2244 = vmatpush1.bf16.msra.mxu0 0
    %2245 = vmatprep.subr.bf16.mxu0 0
    %2246 = vmatpush1.bf16.msra.mxu0 0
    %2247 = vmatprep.mubr.bf16.mxu0 0
    %2248 = vmatmul.mubr.bf16.gmra.mrb[0].mxu0 %v2210
    %v2249 = vpop.f32.mrb[0].mxu0
    %v2250 = vadd.f32 0.0, %v2249
    %v2251 = vpop.f32.mrb[0].mxu0
    %v2252 = vpop.f32.mrb[0].mxu0
    %v2253 = vpop.f32.mrb[0].mxu0
    %2254 = vdwg.mxu0
    %2255 = vrot.lane.b32.xlu0 %v1638, 48
    %v2256 = vpop.permute.xlu0 %2255
    %v2258 = vsel %vm318, %v2206, 0
    %v2261 = vsel %vm445, %v2256, 0
    %2263 = vmatprep.subr.bf16.mxu0 0
    %2264 = vmatpush1.bf16.msra.mxu0 %v2261
    %2265 = vmatprep.subr.bf16.mxu0 0
    %2266 = vmatpush1.bf16.msra.mxu0 0
    %2267 = vmatprep.subr.bf16.mxu0 0
    %2268 = vmatpush1.bf16.msra.mxu0 0
    %2269 = vmatprep.subr.bf16.mxu0 0
    %2270 = vmatpush1.bf16.msra.mxu0 0
    %2271 = vmatprep.subr.bf16.mxu0 0
    %2272 = vmatpush1.bf16.msra.mxu0 0
    %2273 = vmatprep.subr.bf16.mxu0 0
    %2274 = vmatpush1.bf16.msra.mxu0 0
    %2275 = vmatprep.subr.bf16.mxu0 0
    %2276 = vmatpush1.bf16.msra.mxu0 0
    %2277 = vmatprep.subr.bf16.mxu0 0
    %2278 = vmatpush1.bf16.msra.mxu0 0
    %2279 = vmatprep.subr.bf16.mxu0 0
    %2280 = vmatpush1.bf16.msra.mxu0 0
    %2281 = vmatprep.subr.bf16.mxu0 0
    %2282 = vmatpush1.bf16.msra.mxu0 0
    %2283 = vmatprep.subr.bf16.mxu0 0
    %2284 = vmatpush1.bf16.msra.mxu0 0
    %2285 = vmatprep.subr.bf16.mxu0 0
    %2286 = vmatpush1.bf16.msra.mxu0 0
    %2287 = vmatprep.subr.bf16.mxu0 0
    %2288 = vmatpush1.bf16.msra.mxu0 0
    %2289 = vmatprep.subr.bf16.mxu0 0
    %2290 = vmatpush1.bf16.msra.mxu0 0
    %2291 = vmatprep.subr.bf16.mxu0 0
    %2292 = vmatpush1.bf16.msra.mxu0 0
    %2293 = vmatprep.subr.bf16.mxu0 0
    %2294 = vmatpush1.bf16.msra.mxu0 0
    %2295 = vmatprep.mubr.bf16.mxu0 0
    %2296 = vmatmul.mubr.bf16.gmra.mrb[0].mxu0 %v2258
    %v2297 = vpop.f32.mrb[0].mxu0
    %v2298 = vadd.f32 0.0, %v2297
    %v2299 = vpop.f32.mrb[0].mxu0
    %v2300 = vpop.f32.mrb[0].mxu0
    %v2301 = vpop.f32.mrb[0].mxu0
    %2302 = vdwg.mxu0
    %2303 = vrot.lane.b32.xlu0 %v1637, 104
    %v2304 = vpop.permute.xlu0 %2303
    %2305 = vrot.lane.b32.xlu0 %v1637, 72
    %v2306 = vpop.permute.xlu0 %2305
    %v2308 = vsel %vm318, %v2304, 0
    %v2311 = vsel %vm318, %v2306, 0
    %2313 = vmatprep.subr.bf16.mxu0 0
    %2314 = vmatpush1.bf16.xpose.msra.mxu0 %v2311
    %2315 = vmatprep.subr.bf16.mxu0 0
    %2316 = vmatpush1.bf16.xpose.msra.mxu0 0
    %2317 = vmatprep.subr.bf16.mxu0 0
    %2318 = vmatpush1.bf16.xpose.msra.mxu0 0
    %2319 = vmatprep.subr.bf16.mxu0 0
    %2320 = vmatpush1.bf16.xpose.msra.mxu0 0
    %2321 = vmatprep.subr.bf16.mxu0 0
    %2322 = vmatpush1.bf16.xpose.msra.mxu0 0
    %2323 = vmatprep.subr.bf16.mxu0 0
    %2324 = vmatpush1.bf16.xpose.msra.mxu0 0
    %2325 = vmatprep.subr.bf16.mxu0 0
    %2326 = vmatpush1.bf16.xpose.msra.mxu0 0
    %2327 = vmatprep.subr.bf16.mxu0 0
    %2328 = vmatpush1.bf16.xpose.msra.mxu0 0
    %2329 = vmatprep.subr.bf16.mxu0 0
    %2330 = vmatpush1.bf16.xpose.msra.mxu0 0
    %2331 = vmatprep.subr.bf16.mxu0 0
    %2332 = vmatpush1.bf16.xpose.msra.mxu0 0
    %2333 = vmatprep.subr.bf16.mxu0 0
    %2334 = vmatpush1.bf16.xpose.msra.mxu0 0
    %2335 = vmatprep.subr.bf16.mxu0 0
    %2336 = vmatpush1.bf16.xpose.msra.mxu0 0
    %2337 = vmatprep.subr.bf16.mxu0 0
    %2338 = vmatpush1.bf16.xpose.msra.mxu0 0
    %2339 = vmatprep.subr.bf16.mxu0 0
    %2340 = vmatpush1.bf16.xpose.msra.mxu0 0
    %2341 = vmatprep.subr.bf16.mxu0 0
    %2342 = vmatpush1.bf16.xpose.msra.mxu0 0
    %2343 = vmatprep.subr.bf16.mxu0 0
    %2344 = vmatpush1.bf16.xpose.msra.mxu0 0
    %2345 = vmatprep.mubr.bf16.mxu0 0
    %2346 = vmatmul.mubr.bf16.gmra.mrb[0].mxu0 %v2308
    %v2347 = vpop.f32.mrb[0].mxu0
    %v2348 = vadd.f32 0.0, %v2347
    %v2349 = vpop.f32.mrb[0].mxu0
    %v2350 = vpop.f32.mrb[0].mxu0
    %v2351 = vpop.f32.mrb[0].mxu0
    %2352 = vdwg.mxu0
    %2353 = vrot.lane.b32.xlu0 %v1638, 104
    %v2354 = vpop.permute.xlu0 %2353
    %2355 = vrot.lane.b32.xlu0 %v1638, 72
    %v2356 = vpop.permute.xlu0 %2355
    %v2358 = vsel %vm318, %v2354, 0
    %v2361 = vsel %vm318, %v2356, 0
    %2363 = vmatprep.subr.bf16.mxu0 0
    %2364 = vmatpush1.bf16.xpose.msra.mxu0 %v2361
    %2365 = vmatprep.subr.bf16.mxu0 0
    %2366 = vmatpush1.bf16.xpose.msra.mxu0 0
    %2367 = vmatprep.subr.bf16.mxu0 0
    %2368 = vmatpush1.bf16.xpose.msra.mxu0 0
    %2369 = vmatprep.subr.bf16.mxu0 0
    %2370 = vmatpush1.bf16.xpose.msra.mxu0 0
    %2371 = vmatprep.subr.bf16.mxu0 0
    %2372 = vmatpush1.bf16.xpose.msra.mxu0 0
    %2373 = vmatprep.subr.bf16.mxu0 0
    %2374 = vmatpush1.bf16.xpose.msra.mxu0 0
    %2375 = vmatprep.subr.bf16.mxu0 0
    %2376 = vmatpush1.bf16.xpose.msra.mxu0 0
    %2377 = vmatprep.subr.bf16.mxu0 0
    %2378 = vmatpush1.bf16.xpose.msra.mxu0 0
    %2379 = vmatprep.subr.bf16.mxu0 0
    %2380 = vmatpush1.bf16.xpose.msra.mxu0 0
    %2381 = vmatprep.subr.bf16.mxu0 0
    %2382 = vmatpush1.bf16.xpose.msra.mxu0 0
    %2383 = vmatprep.subr.bf16.mxu0 0
    %2384 = vmatpush1.bf16.xpose.msra.mxu0 0
    %2385 = vmatprep.subr.bf16.mxu0 0
    %2386 = vmatpush1.bf16.xpose.msra.mxu0 0
    %2387 = vmatprep.subr.bf16.mxu0 0
    %2388 = vmatpush1.bf16.xpose.msra.mxu0 0
    %2389 = vmatprep.subr.bf16.mxu0 0
    %2390 = vmatpush1.bf16.xpose.msra.mxu0 0
    %2391 = vmatprep.subr.bf16.mxu0 0
    %2392 = vmatpush1.bf16.xpose.msra.mxu0 0
    %2393 = vmatprep.subr.bf16.mxu0 0
    %2394 = vmatpush1.bf16.xpose.msra.mxu0 0
    %2395 = vmatprep.mubr.bf16.mxu0 0
    %2396 = vmatmul.mubr.bf16.gmra.mrb[0].mxu0 %v2358
    %v2397 = vpop.f32.mrb[0].mxu0
    %v2398 = vadd.f32 0.0, %v2397
    %v2399 = vpop.f32.mrb[0].mxu0
    %v2400 = vpop.f32.mrb[0].mxu0
    %v2401 = vpop.f32.mrb[0].mxu0
    %2402 = vdwg.mxu0
    %v2403 = vmul.f32 %v2348, 0.35355338
    %v2404 = vmul.f32 %v2398, 0.35355338
    %v2405 = vsel %vm318, %v2403, -inf
    %2406 = vmax.xlane.f32.xlu0 %v2405
    %v2407 = vpop.xlane.xlu0 %2406
    %v2408 = vsel %vm318, %v2404, -inf
    %2409 = vmax.xlane.f32.xlu0 %v2408
    %v2410 = vpop.xlane.xlu0 %2409
    %v2411 = vsub.f32 %v2403, %v2407
    %v2412 = vsub.f32 %v2404, %v2410
    %v2413 = vmul.f32 %v2411, 1.442695
    %v2414 = vpow.pop %v2413
    %v2415 = vmul.f32 %v2412, 1.442695
    %v2416 = vpow.pop %v2415
    %v2417 = vsel %vm318, %v2414, 0.0
    %2418 = vadd.xlane.f32.xlu0 %v2417
    %v2419 = vpop.xlane.xlu0 %2418
    %v2420 = vsel %vm318, %v2416, 0.0
    %2421 = vadd.xlane.f32.xlu0 %v2420
    %v2422 = vpop.xlane.xlu0 %2421
    %v2423 = vrcp.pop %v2419
    %v2424 = vrcp.pop %v2422
    %v2425 = vmul.f32 %v2414, %v2423
    %v2426 = vmul.f32 %v2416, %v2424
    %v2427 = vpack.c.bf16 %v2425, %v2425
    %v2428 = vpack.c.bf16 %v2426, %v2426
    %2429 = vrot.lane.b32.xlu0 %v1637, 40
    %v2430 = vpop.permute.xlu0 %2429
    %v2432 = vsel %vm318, %v2427, 0
    %v2435 = vsel %vm445, %v2430, 0
    %2437 = vmatprep.subr.bf16.mxu0 0
    %2438 = vmatpush1.bf16.msra.mxu0 %v2435
    %2439 = vmatprep.subr.bf16.mxu0 0
    %2440 = vmatpush1.bf16.msra.mxu0 0
    %2441 = vmatprep.subr.bf16.mxu0 0
    %2442 = vmatpush1.bf16.msra.mxu0 0
    %2443 = vmatprep.subr.bf16.mxu0 0
    %2444 = vmatpush1.bf16.msra.mxu0 0
    %2445 = vmatprep.subr.bf16.mxu0 0
    %2446 = vmatpush1.bf16.msra.mxu0 0
    %2447 = vmatprep.subr.bf16.mxu0 0
    %2448 = vmatpush1.bf16.msra.mxu0 0
    %2449 = vmatprep.subr.bf16.mxu0 0
    %2450 = vmatpush1.bf16.msra.mxu0 0
    %2451 = vmatprep.subr.bf16.mxu0 0
    %2452 = vmatpush1.bf16.msra.mxu0 0
    %2453 = vmatprep.subr.bf16.mxu0 0
    %2454 = vmatpush1.bf16.msra.mxu0 0
    %2455 = vmatprep.subr.bf16.mxu0 0
    %2456 = vmatpush1.bf16.msra.mxu0 0
    %2457 = vmatprep.subr.bf16.mxu0 0
    %2458 = vmatpush1.bf16.msra.mxu0 0
    %2459 = vmatprep.subr.bf16.mxu0 0
    %2460 = vmatpush1.bf16.msra.mxu0 0
    %2461 = vmatprep.subr.bf16.mxu0 0
    %2462 = vmatpush1.bf16.msra.mxu0 0
    %2463 = vmatprep.subr.bf16.mxu0 0
    %2464 = vmatpush1.bf16.msra.mxu0 0
    %2465 = vmatprep.subr.bf16.mxu0 0
    %2466 = vmatpush1.bf16.msra.mxu0 0
    %2467 = vmatprep.subr.bf16.mxu0 0
    %2468 = vmatpush1.bf16.msra.mxu0 0
    %2469 = vmatprep.mubr.bf16.mxu0 0
    %2470 = vmatmul.mubr.bf16.gmra.mrb[0].mxu0 %v2432
    %v2471 = vpop.f32.mrb[0].mxu0
    %v2472 = vadd.f32 0.0, %v2471
    %v2473 = vpop.f32.mrb[0].mxu0
    %v2474 = vpop.f32.mrb[0].mxu0
    %v2475 = vpop.f32.mrb[0].mxu0
    %2476 = vdwg.mxu0
    %2477 = vrot.lane.b32.xlu0 %v1638, 40
    %v2478 = vpop.permute.xlu0 %2477
    %v2480 = vsel %vm318, %v2428, 0
    %v2483 = vsel %vm445, %v2478, 0
    %2485 = vmatprep.subr.bf16.mxu0 0
    %2486 = vmatpush1.bf16.msra.mxu0 %v2483
    %2487 = vmatprep.subr.bf16.mxu0 0
    %2488 = vmatpush1.bf16.msra.mxu0 0
    %2489 = vmatprep.subr.bf16.mxu0 0
    %2490 = vmatpush1.bf16.msra.mxu0 0
    %2491 = vmatprep.subr.bf16.mxu0 0
    %2492 = vmatpush1.bf16.msra.mxu0 0
    %2493 = vmatprep.subr.bf16.mxu0 0
    %2494 = vmatpush1.bf16.msra.mxu0 0
    %2495 = vmatprep.subr.bf16.mxu0 0
    %2496 = vmatpush1.bf16.msra.mxu0 0
    %2497 = vmatprep.subr.bf16.mxu0 0
    %2498 = vmatpush1.bf16.msra.mxu0 0
    %2499 = vmatprep.subr.bf16.mxu0 0
    %2500 = vmatpush1.bf16.msra.mxu0 0
    %2501 = vmatprep.subr.bf16.mxu0 0
    %2502 = vmatpush1.bf16.msra.mxu0 0
    %2503 = vmatprep.subr.bf16.mxu0 0
    %2504 = vmatpush1.bf16.msra.mxu0 0
    %2505 = vmatprep.subr.bf16.mxu0 0
    %2506 = vmatpush1.bf16.msra.mxu0 0
    %2507 = vmatprep.subr.bf16.mxu0 0
    %2508 = vmatpush1.bf16.msra.mxu0 0
    %2509 = vmatprep.subr.bf16.mxu0 0
    %2510 = vmatpush1.bf16.msra.mxu0 0
    %2511 = vmatprep.subr.bf16.mxu0 0
    %2512 = vmatpush1.bf16.msra.mxu0 0
    %2513 = vmatprep.subr.bf16.mxu0 0
    %2514 = vmatpush1.bf16.msra.mxu0 0
    %2515 = vmatprep.subr.bf16.mxu0 0
    %2516 = vmatpush1.bf16.msra.mxu0 0
    %2517 = vmatprep.mubr.bf16.mxu0 0
    %2518 = vmatmul.mubr.bf16.gmra.mrb[0].mxu0 %v2480
    %v2519 = vpop.f32.mrb[0].mxu0
    %v2520 = vadd.f32 0.0, %v2519
    %v2521 = vpop.f32.mrb[0].mxu0
    %v2522 = vpop.f32.mrb[0].mxu0
    %v2523 = vpop.f32.mrb[0].mxu0
    %2524 = vdwg.mxu0
    %2527 = vrot.lane.b32.xlu0 %v2028, 8
    %v2528 = vpop.permute.xlu0 %2527
    %2529 = vrot.lane.b32.xlu0 %v2076, 8
    %v2530 = vpop.permute.xlu0 %2529
    %2535 = vrot.lane.b32.xlu0 %v2250, 16
    %v2536 = vpop.permute.xlu0 %2535
    %2537 = vrot.lane.b32.xlu0 %v2298, 16
    %v2538 = vpop.permute.xlu0 %2537
    %2543 = vrot.lane.b32.xlu0 %v2472, 24
    %v2544 = vpop.permute.xlu0 %2543
    %2545 = vrot.lane.b32.xlu0 %v2520, 24
    %v2546 = vpop.permute.xlu0 %2545
    %v2549 = vsel %vm318, %v1806, %v2528
    %v2550 = vsel %vm318, %v1854, %v2530
    %v2551 = vsel %vm1229, %v2549, %v2536
    %v2552 = vsel %vm1229, %v2550, %v2538
    %v2553 = vsel %vm1232, %v2551, %v2544
    %v2554 = vsel %vm1232, %v2552, %v2546
    %v2555 = vpack.c.bf16 %v2554, %v2553
    %s2556 = scalar_lea.vmem [#allocation9], 16
    %v2557 = vld [vmem:[%s2556] sm:$0xf]
    %v2558 = vld [vmem:[%s2556 + $0x4] sm:$0xf]
    %v2559 = vld [vmem:[%s2556 + $0x8] sm:$0xf]
    %v2560 = vld [vmem:[%s2556 + $0xc] sm:$0xf]
    %s2561 = scalar_lea.vmem [#allocation11], 1
    %v2562 = vld [vmem:[%s2561] sm:$0x1]
    %v2564 = vlaneseq
    %v2565 = vshrl.u32 %v2564, 7
    %v2566 = vsub.s32 0, %v2565
    %v2567 = vrot.slane %v2562, %v2566
    %v2573 = vunpack.c.l.b16 %v2557
    %v2574 = vunpack.c.l.b16 %v2558
    %v2575 = vunpack.c.l.b16 %v2559
    %v2576 = vunpack.c.l.b16 %v2560
    %v2577 = vpack.c.b16 %v2574, %v2573
    %v2578 = vpack.c.b16 %v2576, %v2575
    %v2582 = vsel %vm268, %v2555, 0
    %2584 = vmatprep.subr.bf16.mxu0 0
    %2585 = vmatpush1.bf16.msra.mxu0 %v2577
    %2586 = vmatprep.subr.bf16.mxu0 0
    %2587 = vmatpush1.bf16.msra.mxu0 %v2578
    %2588 = vmatprep.subr.bf16.mxu0 0
    %2589 = vmatpush1.bf16.msra.mxu0 0
    %2590 = vmatprep.subr.bf16.mxu0 0
    %2591 = vmatpush1.bf16.msra.mxu0 0
    %2592 = vmatprep.subr.bf16.mxu0 0
    %2593 = vmatpush1.bf16.msra.mxu0 0
    %2594 = vmatprep.subr.bf16.mxu0 0
    %2595 = vmatpush1.bf16.msra.mxu0 0
    %2596 = vmatprep.subr.bf16.mxu0 0
    %2597 = vmatpush1.bf16.msra.mxu0 0
    %2598 = vmatprep.subr.bf16.mxu0 0
    %2599 = vmatpush1.bf16.msra.mxu0 0
    %2600 = vmatprep.subr.bf16.mxu0 0
    %2601 = vmatpush1.bf16.msra.mxu0 0
    %2602 = vmatprep.subr.bf16.mxu0 0
    %2603 = vmatpush1.bf16.msra.mxu0 0
    %2604 = vmatprep.subr.bf16.mxu0 0
    %2605 = vmatpush1.bf16.msra.mxu0 0
    %2606 = vmatprep.subr.bf16.mxu0 0
    %2607 = vmatpush1.bf16.msra.mxu0 0
    %2608 = vmatprep.subr.bf16.mxu0 0
    %2609 = vmatpush1.bf16.msra.mxu0 0
    %2610 = vmatprep.subr.bf16.mxu0 0
    %2611 = vmatpush1.bf16.msra.mxu0 0
    %2612 = vmatprep.subr.bf16.mxu0 0
    %2613 = vmatpush1.bf16.msra.mxu0 0
    %2614 = vmatprep.subr.bf16.mxu0 0
    %2615 = vmatpush1.bf16.msra.mxu0 0
    %2616 = vmatprep.mubr.bf16.mxu0 0
    %2617 = vmatmul.mubr.bf16.gmra.mrb[0].mxu0 %v2582
    %v2618 = vpop.f32.mrb[0].mxu0
    %v2619 = vadd.f32 %v2567, %v2618
    %v2620 = vpop.f32.mrb[0].mxu0
    %v2621 = vpop.f32.mrb[0].mxu0
    %v2622 = vadd.f32 %v2567, %v2621
    %v2623 = vpop.f32.mrb[0].mxu0
    %2624 = vdwg.mxu0
    %v2625 = vadd.f32 %v1565, %v2619
    %v2626 = vadd.f32 %v1566, %v2622
    %s2627 = scalar_lea.vmem [#allocation12], 1
    %v2628 = vld [vmem:[%s2627] sm:$0x1]
    %s2629 = scalar_lea.vmem [#allocation14], 1
    %v2630 = vld [vmem:[%s2629] sm:$0x1]
    %v2631 = vsel %vm268, %v2625, 0.0
    %2632 = vadd.xlane.f32.xlu0 %v2631
    %v2633 = vpop.xlane.xlu0 %2632
    %v2634 = vsel %vm268, %v2626, 0.0
    %2635 = vadd.xlane.f32.xlu0 %v2634
    %v2636 = vpop.xlane.xlu0 %2635
    %v2637 = vmul.f32 %v2633, %v1313
    %v2638 = vmul.f32 %v2636, %v1313
    %v2639 = vsub.f32 %v2625, %v2637
    %v2640 = vsub.f32 %v2626, %v2638
    %v2641 = vmul.f32 %v2639, %v2639
    %v2642 = vmul.f32 %v2640, %v2640
    %v2643 = vsel %vm268, %v2641, 0.0
    %2644 = vadd.xlane.f32.xlu0 %v2643
    %v2645 = vpop.xlane.xlu0 %2644
    %v2646 = vsel %vm268, %v2642, 0.0
    %2647 = vadd.xlane.f32.xlu0 %v2646
    %v2648 = vpop.xlane.xlu0 %2647
    %v2649 = vmul.f32 %v2645, %v1313
    %v2650 = vmul.f32 %v2648, %v1313
    %v2651 = vadd.f32 %v2649, 1e-05
    %v2652 = vadd.f32 %v2650, 1e-05
    %v2653 = vrsqrt.pop %v2651
    %v2654 = vrsqrt.pop %v2652
    %v2655 = vmul.f32 %v2639, %v2653
    %v2656 = vmul.f32 %v2640, %v2654
    %v2658 = vlaneseq
    %v2659 = vshrl.u32 %v2658, 7
    %v2660 = vsub.s32 0, %v2659
    %v2661 = vrot.slane %v2628, %v2660
    %v2663 = vmul.f32 %v2655, %v2661
    %v2664 = vmul.f32 %v2656, %v2661
    %v2666 = vlaneseq
    %v2667 = vshrl.u32 %v2666, 7
    %v2668 = vsub.s32 0, %v2667
    %v2669 = vrot.slane %v2630, %v2668
    %v2671 = vadd.f32 %v2663, %v2669
    %v2672 = vadd.f32 %v2664, %v2669
    %v2673 = vpack.c.bf16 %v2672, %v2671
    %s2674 = scalar_lea.vmem [#allocation15], 16
    %v2675 = vld [vmem:[%s2674] sm:$0xf]
    %v2676 = vld [vmem:[%s2674 + $0x4] sm:$0xf]
    %v2677 = vld [vmem:[%s2674 + $0x8] sm:$0xf]
    %v2678 = vld [vmem:[%s2674 + $0xc] sm:$0xf]
    %s2679 = scalar_lea.vmem [#allocation17], 1
    %v2680 = vld [vmem:[%s2679] sm:$0x1]
    %v2682 = vlaneseq
    %v2683 = vshrl.u32 %v2682, 7
    %v2684 = vsub.s32 0, %v2683
    %v2685 = vrot.slane %v2680, %v2684
    %v2691 = vunpack.c.l.b16 %v2675
    %v2692 = vunpack.c.l.b16 %v2676
    %v2693 = vunpack.c.l.b16 %v2677
    %v2694 = vunpack.c.l.b16 %v2678
    %v2695 = vpack.c.b16 %v2692, %v2691
    %v2696 = vpack.c.b16 %v2694, %v2693
    %v2700 = vsel %vm268, %v2673, 0
    %2702 = vmatprep.subr.bf16.mxu0 0
    %2703 = vmatpush1.bf16.msra.mxu0 %v2695
    %2704 = vmatprep.subr.bf16.mxu0 0
    %2705 = vmatpush1.bf16.msra.mxu0 %v2696
    %2706 = vmatprep.subr.bf16.mxu0 0
    %2707 = vmatpush1.bf16.msra.mxu0 0
    %2708 = vmatprep.subr.bf16.mxu0 0
    %2709 = vmatpush1.bf16.msra.mxu0 0
    %2710 = vmatprep.subr.bf16.mxu0 0
    %2711 = vmatpush1.bf16.msra.mxu0 0
    %2712 = vmatprep.subr.bf16.mxu0 0
    %2713 = vmatpush1.bf16.msra.mxu0 0
    %2714 = vmatprep.subr.bf16.mxu0 0
    %2715 = vmatpush1.bf16.msra.mxu0 0
    %2716 = vmatprep.subr.bf16.mxu0 0
    %2717 = vmatpush1.bf16.msra.mxu0 0
    %2718 = vmatprep.subr.bf16.mxu0 0
    %2719 = vmatpush1.bf16.msra.mxu0 0
    %2720 = vmatprep.subr.bf16.mxu0 0
    %2721 = vmatpush1.bf16.msra.mxu0 0
    %2722 = vmatprep.subr.bf16.mxu0 0
    %2723 = vmatpush1.bf16.msra.mxu0 0
    %2724 = vmatprep.subr.bf16.mxu0 0
    %2725 = vmatpush1.bf16.msra.mxu0 0
    %2726 = vmatprep.subr.bf16.mxu0 0
    %2727 = vmatpush1.bf16.msra.mxu0 0
    %2728 = vmatprep.subr.bf16.mxu0 0
    %2729 = vmatpush1.bf16.msra.mxu0 0
    %2730 = vmatprep.subr.bf16.mxu0 0
    %2731 = vmatpush1.bf16.msra.mxu0 0
    %2732 = vmatprep.subr.bf16.mxu0 0
    %2733 = vmatpush1.bf16.msra.mxu0 0
    %2734 = vmatprep.mubr.bf16.mxu0 0
    %2735 = vmatmul.mubr.bf16.gmra.mrb[0].mxu0 %v2700
    %v2736 = vpop.f32.mrb[0].mxu0
    %v2737 = vadd.f32 %v2685, %v2736
    %v2738 = vpop.f32.mrb[0].mxu0
    %v2739 = vpop.f32.mrb[0].mxu0
    %v2740 = vadd.f32 %v2685, %v2739
    %v2741 = vpop.f32.mrb[0].mxu0
    %2742 = vdwg.mxu0
    %v2743 = vmul.f32 %v2737, %v2737
    %v2744 = vmul.f32 %v2740, %v2740
    %v2745 = vmul.f32 %v2737, %v2743
    %v2746 = vmul.f32 %v2740, %v2744
    %v2747 = vmul.f32 %v2745, 0.044715
    %v2748 = vmul.f32 %v2746, 0.044715
    %v2749 = vadd.f32 %v2737, %v2747
    %v2750 = vadd.f32 %v2740, %v2748
    %v2751 = vmul.f32 %v2749, 0.7978846
    %v2752 = vmul.f32 %v2750, 0.7978846
    %v2753 = vtanh.pop %v2751
    %v2754 = vtanh.pop %v2752
    %v2755 = vadd.f32 %v2753, 1.0
    %v2756 = vadd.f32 %v2754, 1.0
    %v2757 = vmul.f32 %v2755, 0.5
    %v2758 = vmul.f32 %v2756, 0.5
    %v2759 = vmul.f32 %v2737, %v2757
    %v2760 = vmul.f32 %v2740, %v2758
    %v2761 = vpack.c.bf16 %v2760, %v2759
    %s2762 = scalar_lea.vmem [#allocation18], 32
    %v2763 = vld [vmem:[%s2762] sm:$0xf]
    %v2764 = vld [vmem:[%s2762 + $0x4] sm:$0xf]
    %v2765 = vld [vmem:[%s2762 + $0x8] sm:$0xf]
    %v2766 = vld [vmem:[%s2762 + $0xc] sm:$0xf]
    %v2767 = vld [vmem:[%s2762 + $0x10] sm:$0xf]
    %v2768 = vld [vmem:[%s2762 + $0x14] sm:$0xf]
    %v2769 = vld [vmem:[%s2762 + $0x18] sm:$0xf]
    %v2770 = vld [vmem:[%s2762 + $0x1c] sm:$0xf]
    %s2771 = scalar_lea.vmem [#allocation20], 1
    %v2772 = vld [vmem:[%s2771] sm:$0x1]
    %v2774 = vlaneseq
    %v2775 = vshrl.u32 %v2774, 7
    %v2776 = vsub.s32 0, %v2775
    %v2777 = vrot.slane %v2772, %v2776
    %v2787 = vunpack.c.l.b16 %v2763
    %v2788 = vunpack.c.l.b16 %v2764
    %v2789 = vunpack.c.l.b16 %v2765
    %v2790 = vunpack.c.l.b16 %v2766
    %v2791 = vunpack.c.l.b16 %v2767
    %v2792 = vunpack.c.l.b16 %v2768
    %v2793 = vunpack.c.l.b16 %v2769
    %v2794 = vunpack.c.l.b16 %v2770
    %v2795 = vpack.c.b16 %v2788, %v2787
    %v2796 = vpack.c.b16 %v2790, %v2789
    %v2797 = vpack.c.b16 %v2792, %v2791
    %v2798 = vpack.c.b16 %v2794, %v2793
    %v2804 = vsel %vm1476, %v2761, 0
    %2806 = vmatprep.subr.bf16.mxu0 0
    %2807 = vmatpush1.bf16.msra.mxu0 %v2795
    %2808 = vmatprep.subr.bf16.mxu0 0
    %2809 = vmatpush1.bf16.msra.mxu0 %v2796
    %2810 = vmatprep.subr.bf16.mxu0 0
    %2811 = vmatpush1.bf16.msra.mxu0 %v2797
    %2812 = vmatprep.subr.bf16.mxu0 0
    %2813 = vmatpush1.bf16.msra.mxu0 %v2798
    %2814 = vmatprep.subr.bf16.mxu0 0
    %2815 = vmatpush1.bf16.msra.mxu0 0
    %2816 = vmatprep.subr.bf16.mxu0 0
    %2817 = vmatpush1.bf16.msra.mxu0 0
    %2818 = vmatprep.subr.bf16.mxu0 0
    %2819 = vmatpush1.bf16.msra.mxu0 0
    %2820 = vmatprep.subr.bf16.mxu0 0
    %2821 = vmatpush1.bf16.msra.mxu0 0
    %2822 = vmatprep.subr.bf16.mxu0 0
    %2823 = vmatpush1.bf16.msra.mxu0 0
    %2824 = vmatprep.subr.bf16.mxu0 0
    %2825 = vmatpush1.bf16.msra.mxu0 0
    %2826 = vmatprep.subr.bf16.mxu0 0
    %2827 = vmatpush1.bf16.msra.mxu0 0
    %2828 = vmatprep.subr.bf16.mxu0 0
    %2829 = vmatpush1.bf16.msra.mxu0 0
    %2830 = vmatprep.subr.bf16.mxu0 0
    %2831 = vmatpush1.bf16.msra.mxu0 0
    %2832 = vmatprep.subr.bf16.mxu0 0
    %2833 = vmatpush1.bf16.msra.mxu0 0
    %2834 = vmatprep.subr.bf16.mxu0 0
    %2835 = vmatpush1.bf16.msra.mxu0 0
    %2836 = vmatprep.subr.bf16.mxu0 0
    %2837 = vmatpush1.bf16.msra.mxu0 0
    %2838 = vmatprep.mubr.bf16.mxu0 0
    %2839 = vmatmul.mubr.bf16.gmra.mrb[0].mxu0 %v2804
    %v2840 = vpop.f32.mrb[0].mxu0
    %v2841 = vadd.f32 %v2777, %v2840
    %v2842 = vpop.f32.mrb[0].mxu0
    %v2843 = vpop.f32.mrb[0].mxu0
    %v2844 = vadd.f32 %v2777, %v2843
    %v2845 = vpop.f32.mrb[0].mxu0
    %2846 = vdwg.mxu0
    %v2847 = vadd.f32 %v2671, %v2841
    %v2848 = vadd.f32 %v2672, %v2844
    %s2849 = scalar_lea.vmem [#allocation21], 1
    %v2850 = vld [vmem:[%s2849] sm:$0x1]
    %s2851 = scalar_lea.vmem [#allocation23], 1
    %v2852 = vld [vmem:[%s2851] sm:$0x1]
    %v2853 = vsel %vm268, %v2847, 0.0
    %2854 = vadd.xlane.f32.xlu0 %v2853
    %v2855 = vpop.xlane.xlu0 %2854
    %v2856 = vsel %vm268, %v2848, 0.0
    %2857 = vadd.xlane.f32.xlu0 %v2856
    %v2858 = vpop.xlane.xlu0 %2857
    %v2859 = vmul.f32 %v2855, %v1313
    %v2860 = vmul.f32 %v2858, %v1313
    %v2861 = vsub.f32 %v2847, %v2859
    %v2862 = vsub.f32 %v2848, %v2860
    %v2863 = vmul.f32 %v2861, %v2861
    %v2864 = vmul.f32 %v2862, %v2862
    %v2865 = vsel %vm268, %v2863, 0.0
    %2866 = vadd.xlane.f32.xlu0 %v2865
    %v2867 = vpop.xlane.xlu0 %2866
    %v2868 = vsel %vm268, %v2864, 0.0
    %2869 = vadd.xlane.f32.xlu0 %v2868
    %v2870 = vpop.xlane.xlu0 %2869
    %v2871 = vmul.f32 %v2867, %v1313
    %v2872 = vmul.f32 %v2870, %v1313
    %v2873 = vadd.f32 %v2871, 1e-05
    %v2874 = vadd.f32 %v2872, 1e-05
    %v2875 = vrsqrt.pop %v2873
    %v2876 = vrsqrt.pop %v2874
    %v2877 = vmul.f32 %v2861, %v2875
    %v2878 = vmul.f32 %v2862, %v2876
    %v2880 = vlaneseq
    %v2881 = vshrl.u32 %v2880, 7
    %v2882 = vsub.s32 0, %v2881
    %v2883 = vrot.slane %v2850, %v2882
    %v2885 = vmul.f32 %v2877, %v2883
    %v2886 = vmul.f32 %v2878, %v2883
    %v2888 = vlaneseq
    %v2889 = vshrl.u32 %v2888, 7
    %v2890 = vsub.s32 0, %v2889
    %v2891 = vrot.slane %v2852, %v2890
    %v2893 = vadd.f32 %v2885, %v2891
    %v2894 = vadd.f32 %v2886, %v2891
    %v2895 = vld [vmem:[#allocation24] sm:$0xff]
    %v2896 = vmul.f32 %v2893, %v2895
    %v2897 = vmul.f32 %v2894, %v2895
    %v2898 = vsel %vm268, %v2896, 0.0
    %2899 = vadd.xlane.f32.xlu0 %v2898
    %v2900 = vpop.xlane.xlu0 %2899
    %v2901 = vsel %vm268, %v2897, 0.0
    %2902 = vadd.xlane.f32.xlu0 %v2901
    %v2903 = vpop.xlane.xlu0 %2902
    %v2906 = vlaneseq
    %v2907 = vand.u32 %v2906, 127
    %v2908 = vlaneseq
    %v2909 = vshrl.u32 %v2908, 7
    %v2910 = vsub.s32 %v2907, %v2909
    %v2911 = vrot.slane %v2900, %v2910
    %v2912 = vlaneseq
    %v2913 = vshrl.u32 %v2912, 7
    %v2914 = vsub.s32 %v2907, %v2913
    %v2915 = vrot.slane %v2903, %v2914
    %vm2916 = vcmask 1041409
    %v2917 = vsel %vm2916, %v2915, %v2911
    %vm2919 = vcmask 58368
    %v2920 = vsel %vm2919, %v2917, 0.0
    %2921 = vadd.xlane.f32.xlu0 %v2920
    %v2922 = vpop.xlane.xlu0 %2921
    %v2923 = vld [vmem:[#allocation2] sm:$0x1]
    %v2925 = vlaneseq
    %v2926 = vshrl.u32 %v2925, 7
    %v2927 = vsub.s32 0, %v2926
    %v2928 = vrot.slane %v2923, %v2927
    %v2930 = vadd.f32 %v2922, %v2928
    %v2931 = vmax.f32 %v2930, 0.0
    %vm2932 = vcmask 1024
    %2933 = vst.msk [vmem:[#allocation26] sm:$0x3] %vm2932, %v2931
    // Predicated region
    $region118: #{cell_model_forward.1} parent=1 // pred_check
      _
    $region119: #{cell_model_forward.1} parent=1 // pred_check_branch
      %2935 = sbr.rel (0) target = $region121
    $region120: #{cell_model_forward.1} parent=1 // pred_region
      %s2937 = ssub.s32 32, 32
      %2938 = vsyncadd [#allocation5], %s2937
      %s2940 = sshll.u32 [#allocation26], 4
      %s2941 = int_to_ptr.vmem [resolvable:$true] %s2940
      %2943 = dma.vmem_to_hbm [thread:$0]  %s2941, 32, %s15, [#allocation5]
    $region121: #{cell_model_forward.1} parent=1 // pred_fallthru
      _
    // Predicated region
    $region122: #{cell_model_forward.1} parent=1 // pred_check
      _
    $region123: #{cell_model_forward.1} parent=1 // pred_check_branch
      %2945 = sbr.rel (0) target = $region125
    $region124: #{cell_model_forward.1} parent=1 // pred_region
      %2946 = dma.done [#allocation5], 32
    $region125: #{cell_model_forward.1} parent=1 // pred_fallthru
      _
    %2947 = vsyncpa [#allocation4], 1
    %2948 = vsyncpa [#allocation7], 1
    %2949 = vsyncpa [#allocation10], 1
    %2950 = vsyncpa [#allocation13], 1
    %2951 = vsyncpa [#allocation16], 1
    %2952 = vsyncpa [#allocation19], 1
    %2953 = vsyncpa [#allocation22], 1
    %2954 = vsyncpa [#allocation25], 1
    %2955 = vsyncpa [#allocation5], 1

</llo_original>
